<compile_context>
chip_gen: v5e
topology: v5e:2x2
jax: 0.10.0
libtpu: 0.0.40
codegen_flags: <defaults>
</compile_context>

<pallas_src>
import functools

import jax
import jax.numpy as jnp
from jax.experimental import pallas as pl
from jax.experimental.pallas import tpu as pltpu

LANE = 128


def _round_up(v, m):
    return (v + m - 1) // m * m


def _pad2(a, rows, cols):
    r, c = a.shape
    return jnp.pad(a, ((0, rows - r), (0, cols - c)))


# --------------------------------------------------------------------------
# Kernel bodies
# --------------------------------------------------------------------------
def _xw_kernel(x_ref, w_ref, o_ref):
    """filt[i_tile] = X[i_tile] @ W   (bf16 operands, f32 accumulate)."""
    o_ref[...] = jnp.dot(
        x_ref[...], w_ref[...], preferred_element_type=jnp.float32
    ).astype(o_ref.dtype)


def _phi_inv_kernel(phi_inv_ref, filt_ref, theta_ref, o_ref, acc_ref):
    """t[i_tile] = theta[i_tile] * sum_k phi_inv[i_tile, k] @ filt[k]."""
    k = pl.program_id(1)

    @pl.when(k == 0)
    def _():
        acc_ref[...] = jnp.zeros_like(acc_ref)

    acc_ref[...] += jnp.dot(
        phi_inv_ref[...], filt_ref[...], preferred_element_type=jnp.float32
    )

    @pl.when(k == pl.num_programs(1) - 1)
    def _():
        # theta is a (blk, 1) column: diag(theta) folded onto the (blk, H) tile
        o_ref[...] = (acc_ref[...] * theta_ref[...]).astype(o_ref.dtype)


def _phi_apply_kernel(phi_ref, t_ref, o_ref, acc_ref, *, num_classes=None):
    """h[i_tile] = relu(sum_k phi[i_tile, k] @ t[k]); optional masked log_softmax."""
    k = pl.program_id(1)

    @pl.when(k == 0)
    def _():
        acc_ref[...] = jnp.zeros_like(acc_ref)

    acc_ref[...] += jnp.dot(
        phi_ref[...], t_ref[...], preferred_element_type=jnp.float32
    )

    @pl.when(k == pl.num_programs(1) - 1)
    def _():
        h = jnp.maximum(acc_ref[...], 0.0)  # relu; dropout(training=False) == id
        if num_classes is None:
            o_ref[...] = h.astype(o_ref.dtype)
        else:
            # log_softmax over the real class columns only (lane dim is padded)
            cols = jax.lax.broadcasted_iota(jnp.int32, h.shape, 1)
            mask = cols < num_classes
            z = jnp.where(mask, h, -jnp.inf)
            m = jnp.max(z, axis=1, keepdims=True)
            z = z - m
            lse = jnp.log(jnp.sum(jnp.exp(z), axis=1, keepdims=True))
            o_ref[...] = jnp.where(mask, z - lse, 0.0).astype(o_ref.dtype)


# --------------------------------------------------------------------------
# One SparseGraphWaveletLayer (densified, reassociated)
# --------------------------------------------------------------------------
def _layer(phi_p, phi_inv_p, feat_p, w_p, theta_p, *, blk, last, num_classes=None):
    np_ = phi_p.shape[0]
    in_cols = feat_p.shape[1]
    out_cols = w_p.shape[1]
    n_row = np_ // blk
    n_k = np_ // blk

    mm_cost = pl.CostEstimate(
        flops=2 * np_ * np_ * out_cols,
        transcendentals=(np_ * out_cols) if (last and num_classes) else 0,
        bytes_accessed=2 * np_ * np_ + 4 * np_ * out_cols,
    )

    # (a) filt = feat @ W  -- small, lane-dense, row-parallel
    filt = pl.pallas_call(
        _xw_kernel,
        out_shape=jax.ShapeDtypeStruct((np_, out_cols), jnp.bfloat16),
        grid=(n_row,),
        in_specs=[
            pl.BlockSpec((blk, in_cols), lambda i: (i, 0)),
            pl.BlockSpec((in_cols, out_cols), lambda i: (0, 0)),
        ],
        out_specs=pl.BlockSpec((blk, out_cols), lambda i: (i, 0)),
        compiler_params=pltpu.CompilerParams(dimension_semantics=("parallel",)),
    )(feat_p, w_p)

    # (b) t = theta * (phi_inv @ filt)
    t = pl.pallas_call(
        _phi_inv_kernel,
        out_shape=jax.ShapeDtypeStruct((np_, out_cols), jnp.bfloat16),
        grid=(n_row, n_k),
        in_specs=[
            pl.BlockSpec((blk, blk), lambda i, k: (i, k)),
            pl.BlockSpec((blk, out_cols), lambda i, k: (k, 0)),
            pl.BlockSpec((blk, 1), lambda i, k: (i, 0)),
        ],
        out_specs=pl.BlockSpec((blk, out_cols), lambda i, k: (i, 0)),
        scratch_shapes=[pltpu.VMEM((blk, out_cols), jnp.float32)],
        compiler_params=pltpu.CompilerParams(
            dimension_semantics=("parallel", "arbitrary")
        ),
        cost_estimate=mm_cost,
    )(phi_inv_p, filt, theta_p)

    # (c) h = relu(phi @ t)  [+ masked log_softmax on the last layer]
    out_dtype = jnp.float32 if last else jnp.bfloat16
    kern = functools.partial(
        _phi_apply_kernel, num_classes=num_classes if last else None
    )
    h = pl.pallas_call(
        kern,
        out_shape=jax.ShapeDtypeStruct((np_, out_cols), out_dtype),
        grid=(n_row, n_k),
        in_specs=[
            pl.BlockSpec((blk, blk), lambda i, k: (i, k)),
            pl.BlockSpec((blk, out_cols), lambda i, k: (k, 0)),
        ],
        out_specs=pl.BlockSpec((blk, out_cols), lambda i, k: (i, 0)),
        scratch_shapes=[pltpu.VMEM((blk, out_cols), jnp.float32)],
        compiler_params=pltpu.CompilerParams(
            dimension_semantics=("parallel", "arbitrary")
        ),
        cost_estimate=mm_cost,
    )(phi_p, t)
    return h


# --------------------------------------------------------------------------
# Full Wavelet2NeuralNetwork forward
# --------------------------------------------------------------------------
def wavelet2_forward(phi, phi_inv, x, w1, theta1, w2, theta2, *, block=512):
    n = phi.shape[0]
    f = x.shape[1]
    hdim = w1.shape[1]
    c = w2.shape[1]

    blk = min(_round_up(block, 128), _round_up(n, 128))
    np_ = _round_up(n, blk)
    fp = _round_up(f, LANE)
    hp = _round_up(hdim, LANE)
    cp = _round_up(c, LANE)

    bf = jnp.bfloat16
    # Cast the big streaming operands to bf16 in the wrapper: halves HBM bytes
    # on phi / phi_inv and gets native MXU throughput (accumulation stays f32).
    phi_p = _pad2(phi, np_, np_).astype(bf)
    phi_inv_p = _pad2(phi_inv, np_, np_).astype(bf)
    x_p = _pad2(x, np_, fp).astype(bf)
    w1_p = _pad2(w1, fp, hp).astype(bf)
    w2_p = _pad2(w2, hp, cp).astype(bf)
    th1_p = _pad2(theta1, np_, 1).astype(jnp.float32)
    th2_p = _pad2(theta2, np_, 1).astype(jnp.float32)

    h1 = _layer(phi_p, phi_inv_p, x_p, w1_p, th1_p, blk=blk, last=False)
    out_p = _layer(
        phi_p, phi_inv_p, h1, w2_p, th2_p, blk=blk, last=True, num_classes=c
    )
    return out_p[:n, :c]


# --------------------------------------------------------------------------
# Pure-JAX reference with the same bf16-operand / f32-accumulate semantics
# --------------------------------------------------------------------------
def _reference(phi, phi_inv, x, w1, theta1, w2, theta2):
    bf = jnp.bfloat16

    def mm(a, b):
        return jnp.dot(a.astype(bf), b.astype(bf), preferred_element_type=jnp.float32)

    filt1 = mm(x, w1).astype(bf)
    t1 = (mm(phi_inv, filt1) * theta1).astype(bf)
    h1 = jnp.maximum(mm(phi, t1), 0.0).astype(bf)

    filt2 = mm(h1, w2).astype(bf)
    t2 = (mm(phi_inv, filt2) * theta2).astype(bf)
    h2 = jnp.maximum(mm(phi, t2), 0.0)
    return jax.nn.log_softmax(h2, axis=1)


def _xavier_uniform(key, fan_in, fan_out):
    bound = (6.0 / (fan_in + fan_out)) ** 0.5
    return jax.random.uniform(key, (fan_in, fan_out), jnp.float32, -bound, bound)


if __name__ == "__main__":
    # Small, module-consistent shapes (graph with 384 nodes, 48 feats, 7 classes).
    ncount, feat_dim, hidden_dim, output_dim = 384, 48, 32, 7

    key = jax.random.PRNGKey(0)
    k_phi, k_phinv, k_x, k_w1, k_t1, k_w2, k_t2 = jax.random.split(key, 7)

    # Densified "sparse" operands (deterministic synthetic data).
    phi = jax.random.normal(k_phi, (ncount, ncount), jnp.float32) * 0.05
    phi_inv = jax.random.normal(k_phinv, (ncount, ncount), jnp.float32) * 0.05
    x = jax.random.normal(k_x, (ncount, feat_dim), jnp.float32)

    # Parameters, initialized as in GraphWaveletLayer.init_parameters().
    w1 = _xavier_uniform(k_w1, feat_dim, hidden_dim)
    theta1 = jax.random.uniform(k_t1, (ncount, 1), jnp.float32, 0.9, 1.1)
    w2 = _xavier_uniform(k_w2, hidden_dim, output_dim)
    theta2 = jax.random.uniform(k_t2, (ncount, 1), jnp.float32, 0.9, 1.1)

    # block=128 so the small test exercises a real (3, 3) tiled grid.
    fwd = jax.jit(functools.partial(wavelet2_forward, block=128))
    out = jax.block_until_ready(fwd(phi, phi_inv, x, w1, theta1, w2, theta2))

    ref = _reference(phi, phi_inv, x, w1, theta1, w2, theta2)
    assert out.shape == (ncount, output_dim)
    assert jnp.allclose(out, ref, atol=1e-2, rtol=1e-2), "mismatch vs reference"

    print("KERNEL_OK")
</pallas_src>

<mosaic_0001>
module attributes {stable_mosaic.version = 11 : i64} {
  func.func @_xw_kernel(%arg0: i32, %arg1: memref<128x128xbf16, #tpu.memory_space<vmem>>, %arg2: memref<128x128xbf16, #tpu.memory_space<vmem>>, %arg3: memref<128x128xbf16, #tpu.memory_space<vmem>>) attributes {dimension_semantics = [#tpu.dimension_semantics<parallel>], iteration_bounds = array<i64: 3>, scalar_prefetch = 0 : i64, scratch_operands = 0 : i64, tpu.core_type = #tpu.core_type<tc>, window_params = [{transform_indices = @transform_0, window_bounds = array<i64: 128, 128>}, {pipeline_mode = #tpu.pipeline_mode<synchronous>, transform_indices = @transform_1, window_bounds = array<i64: 128, 128>}, {transform_indices = @transform_2, window_bounds = array<i64: 128, 128>}]} {
    %c0 = arith.constant 0 : index
    %c0_0 = arith.constant 0 : index
    %0 = vector.load %arg1[%c0, %c0_0] : memref<128x128xbf16, #tpu.memory_space<vmem>>, vector<128x128xbf16>
    %c0_1 = arith.constant 0 : index
    %c0_2 = arith.constant 0 : index
    %1 = vector.load %arg2[%c0_1, %c0_2] : memref<128x128xbf16, #tpu.memory_space<vmem>>, vector<128x128xbf16>
    %cst = arith.constant dense<0.000000e+00> : vector<128x128xf32>
    %2 = tpu.matmul %0, %1, %cst {dimension_numbers = #tpu.dot_dimension_numbers<[1], [0], [0], [1], [0, 0, 1, 1], [], []>} : vector<128x128xbf16>, vector<128x128xbf16>, vector<128x128xf32> -> vector<128x128xf32>
    %3 = arith.truncf %2 : vector<128x128xf32> to vector<128x128xbf16>
    %c0_3 = arith.constant 0 : index
    %c0_4 = arith.constant 0 : index
    %4 = vector.load %arg3[%c0_3, %c0_4] : memref<128x128xbf16, #tpu.memory_space<vmem>>, vector<128x128xbf16>
    tpu.vector_store %arg3[%c0_3, %c0_4], %3 {strides = array<i32>} : memref<128x128xbf16, #tpu.memory_space<vmem>>, vector<128x128xbf16>,
    return
  }
  func.func @transform_0(%arg0: i32) -> (i32, i32) {
    %c0_i32 = arith.constant 0 : i32
    %c0_i32_0 = arith.constant 0 : i32
    return %arg0, %c0_i32 : i32, i32
  }
  func.func @transform_1(%arg0: i32) -> (i32, i32) {
    %c0_i32 = arith.constant 0 : i32
    %c0_i32_0 = arith.constant 0 : i32
    %c0_i32_1 = arith.constant 0 : i32
    return %c0_i32, %c0_i32_0 : i32, i32
  }
  func.func @transform_2(%arg0: i32) -> (i32, i32) {
    %c0_i32 = arith.constant 0 : i32
    %c0_i32_0 = arith.constant 0 : i32
    return %arg0, %c0_i32 : i32, i32
  }
}

module attributes {stable_mosaic.version = 11 : i64} {
  func.func @_phi_inv_kernel(%arg0: i32, %arg1: i32, %arg2: memref<128x128xbf16, #tpu.memory_space<vmem>>, %arg3: memref<128x128xbf16, #tpu.memory_space<vmem>>, %arg4: memref<128x1xf32, #tpu.memory_space<vmem>>, %arg5: memref<128x128xbf16, #tpu.memory_space<vmem>>, %arg6: memref<128x128xf32, #tpu.memory_space<vmem>>) attributes {dimension_semantics = [#tpu.dimension_semantics<parallel>, #tpu.dimension_semantics<arbitrary>], iteration_bounds = array<i64: 3, 3>, scalar_prefetch = 0 : i64, scratch_operands = 1 : i64, tpu.core_type = #tpu.core_type<tc>, window_params = [{transform_indices = @transform_0, window_bounds = array<i64: 128, 128>}, {transform_indices = @transform_1, window_bounds = array<i64: 128, 128>}, {transform_indices = @transform_2, window_bounds = array<i64: 128, 1>}, {transform_indices = @transform_3, window_bounds = array<i64: 128, 128>}]} {
    %c0_i32 = arith.constant 0 : i32
    %0 = arith.cmpi eq, %arg1, %c0_i32 : i32
    %1 = arith.extui %0 : i1 to i32
    %c0_i32_0 = arith.constant 0 : i32
    %2 = arith.cmpi ne, %1, %c0_i32_0 : i32
    scf.if %2 {
      %cst_9 = arith.constant 0.000000e+00 : f32
      %12 = vector.broadcast %cst_9 : f32 to vector<128x128xf32>
      %c0_10 = arith.constant 0 : index
      %c0_11 = arith.constant 0 : index
      %13 = vector.load %arg6[%c0_10, %c0_11] : memref<128x128xf32, #tpu.memory_space<vmem>>, vector<128x128xf32>
      tpu.vector_store %arg6[%c0_10, %c0_11], %12 {strides = array<i32>} : memref<128x128xf32, #tpu.memory_space<vmem>>, vector<128x128xf32>,
    } else {
    }
    %c0 = arith.constant 0 : index
    %c0_1 = arith.constant 0 : index
    %3 = vector.load %arg6[%c0, %c0_1] : memref<128x128xf32, #tpu.memory_space<vmem>>, vector<128x128xf32>
    %c0_2 = arith.constant 0 : index
    %c0_3 = arith.constant 0 : index
    %4 = vector.load %arg2[%c0_2, %c0_3] : memref<128x128xbf16, #tpu.memory_space<vmem>>, vector<128x128xbf16>
    %c0_4 = arith.constant 0 : index
    %c0_5 = arith.constant 0 : index
    %5 = vector.load %arg3[%c0_4, %c0_5] : memref<128x128xbf16, #tpu.memory_space<vmem>>, vector<128x128xbf16>
    %cst = arith.constant dense<0.000000e+00> : vector<128x128xf32>
    %6 = tpu.matmul %4, %5, %cst {dimension_numbers = #tpu.dot_dimension_numbers<[1], [0], [0], [1], [0, 0, 1, 1], [], []>} : vector<128x128xbf16>, vector<128x128xbf16>, vector<128x128xf32> -> vector<128x128xf32>
    %7 = arith.addf %3, %6 : vector<128x128xf32>
    %c0_6 = arith.constant 0 : index
    %c0_7 = arith.constant 0 : index
    %8 = vector.load %arg6[%c0_6, %c0_7] : memref<128x128xf32, #tpu.memory_space<vmem>>, vector<128x128xf32>
    tpu.vector_store %arg6[%c0_6, %c0_7], %7 {strides = array<i32>} : memref<128x128xf32, #tpu.memory_space<vmem>>, vector<128x128xf32>,
    %c2_i32 = arith.constant 2 : i32
    %9 = arith.cmpi eq, %arg1, %c2_i32 : i32
    %10 = arith.extui %9 : i1 to i32
    %c0_i32_8 = arith.constant 0 : i32
    %11 = arith.cmpi ne, %10, %c0_i32_8 : i32
    scf.if %11 {
      %c0_9 = arith.constant 0 : index
      %c0_10 = arith.constant 0 : index
      %12 = vector.load %arg6[%c0_9, %c0_10] : memref<128x128xf32, #tpu.memory_space<vmem>>, vector<128x128xf32>
      %c0_11 = arith.constant 0 : index
      %c0_12 = arith.constant 0 : index
      %13 = vector.load %arg4[%c0_11, %c0_12] : memref<128x1xf32, #tpu.memory_space<vmem>>, vector<128x1xf32>
      %14 = vector.broadcast %13 : vector<128x1xf32> to vector<128x128xf32>
      %15 = arith.mulf %12, %14 : vector<128x128xf32>
      %16 = arith.truncf %15 : vector<128x128xf32> to vector<128x128xbf16>
      %c0_13 = arith.constant 0 : index
      %c0_14 = arith.constant 0 : index
      %17 = vector.load %arg5[%c0_13, %c0_14] : memref<128x128xbf16, #tpu.memory_space<vmem>>, vector<128x128xbf16>
      tpu.vector_store %arg5[%c0_13, %c0_14], %16 {strides = array<i32>} : memref<128x128xbf16, #tpu.memory_space<vmem>>, vector<128x128xbf16>,
    } else {
    }
    return
  }
  func.func @transform_0(%arg0: i32, %arg1: i32) -> (i32, i32) {
    %c0_i32 = arith.constant 0 : i32
    return %arg0, %arg1 : i32, i32
  }
  func.func @transform_1(%arg0: i32, %arg1: i32) -> (i32, i32) {
    %c0_i32 = arith.constant 0 : i32
    %c0_i32_0 = arith.constant 0 : i32
    return %arg1, %c0_i32 : i32, i32
  }
  func.func @transform_2(%arg0: i32, %arg1: i32) -> (i32, i32) {
    %c0_i32 = arith.constant 0 : i32
    %c0_i32_0 = arith.constant 0 : i32
    return %arg0, %c0_i32 : i32, i32
  }
  func.func @transform_3(%arg0: i32, %arg1: i32) -> (i32, i32) {
    %c0_i32 = arith.constant 0 : i32
    %c0_i32_0 = arith.constant 0 : i32
    return %arg0, %c0_i32 : i32, i32
  }
}

module attributes {stable_mosaic.version = 11 : i64} {
  func.func @_phi_apply_kernel(%arg0: i32, %arg1: i32, %arg2: memref<128x128xbf16, #tpu.memory_space<vmem>>, %arg3: memref<128x128xbf16, #tpu.memory_space<vmem>>, %arg4: memref<128x128xbf16, #tpu.memory_space<vmem>>, %arg5: memref<128x128xf32, #tpu.memory_space<vmem>>) attributes {dimension_semantics = [#tpu.dimension_semantics<parallel>, #tpu.dimension_semantics<arbitrary>], iteration_bounds = array<i64: 3, 3>, scalar_prefetch = 0 : i64, scratch_operands = 1 : i64, tpu.core_type = #tpu.core_type<tc>, window_params = [{transform_indices = @transform_0, window_bounds = array<i64: 128, 128>}, {transform_indices = @transform_1, window_bounds = array<i64: 128, 128>}, {transform_indices = @transform_2, window_bounds = array<i64: 128, 128>}]} {
    %c0_i32 = arith.constant 0 : i32
    %0 = arith.cmpi eq, %arg1, %c0_i32 : i32
    %1 = arith.extui %0 : i1 to i32
    %c0_i32_0 = arith.constant 0 : i32
    %2 = arith.cmpi ne, %1, %c0_i32_0 : i32
    scf.if %2 {
      %cst_9 = arith.constant 0.000000e+00 : f32
      %12 = vector.broadcast %cst_9 : f32 to vector<128x128xf32>
      %c0_10 = arith.constant 0 : index
      %c0_11 = arith.constant 0 : index
      %13 = vector.load %arg5[%c0_10, %c0_11] : memref<128x128xf32, #tpu.memory_space<vmem>>, vector<128x128xf32>
      tpu.vector_store %arg5[%c0_10, %c0_11], %12 {strides = array<i32>} : memref<128x128xf32, #tpu.memory_space<vmem>>, vector<128x128xf32>,
    } else {
    }
    %c0 = arith.constant 0 : index
    %c0_1 = arith.constant 0 : index
    %3 = vector.load %arg5[%c0, %c0_1] : memref<128x128xf32, #tpu.memory_space<vmem>>, vector<128x128xf32>
    %c0_2 = arith.constant 0 : index
    %c0_3 = arith.constant 0 : index
    %4 = vector.load %arg2[%c0_2, %c0_3] : memref<128x128xbf16, #tpu.memory_space<vmem>>, vector<128x128xbf16>
    %c0_4 = arith.constant 0 : index
    %c0_5 = arith.constant 0 : index
    %5 = vector.load %arg3[%c0_4, %c0_5] : memref<128x128xbf16, #tpu.memory_space<vmem>>, vector<128x128xbf16>
    %cst = arith.constant dense<0.000000e+00> : vector<128x128xf32>
    %6 = tpu.matmul %4, %5, %cst {dimension_numbers = #tpu.dot_dimension_numbers<[1], [0], [0], [1], [0, 0, 1, 1], [], []>} : vector<128x128xbf16>, vector<128x128xbf16>, vector<128x128xf32> -> vector<128x128xf32>
    %7 = arith.addf %3, %6 : vector<128x128xf32>
    %c0_6 = arith.constant 0 : index
    %c0_7 = arith.constant 0 : index
    %8 = vector.load %arg5[%c0_6, %c0_7] : memref<128x128xf32, #tpu.memory_space<vmem>>, vector<128x128xf32>
    tpu.vector_store %arg5[%c0_6, %c0_7], %7 {strides = array<i32>} : memref<128x128xf32, #tpu.memory_space<vmem>>, vector<128x128xf32>,
    %c2_i32 = arith.constant 2 : i32
    %9 = arith.cmpi eq, %arg1, %c2_i32 : i32
    %10 = arith.extui %9 : i1 to i32
    %c0_i32_8 = arith.constant 0 : i32
    %11 = arith.cmpi ne, %10, %c0_i32_8 : i32
    scf.if %11 {
      %c0_9 = arith.constant 0 : index
      %c0_10 = arith.constant 0 : index
      %12 = vector.load %arg5[%c0_9, %c0_10] : memref<128x128xf32, #tpu.memory_space<vmem>>, vector<128x128xf32>
      %cst_11 = arith.constant 0.000000e+00 : f32
      %13 = vector.broadcast %cst_11 : f32 to vector<128x128xf32>
      %14 = arith.maximumf %12, %13 : vector<128x128xf32>
      %15 = arith.truncf %14 : vector<128x128xf32> to vector<128x128xbf16>
      %c0_12 = arith.constant 0 : index
      %c0_13 = arith.constant 0 : index
      %16 = vector.load %arg4[%c0_12, %c0_13] : memref<128x128xbf16, #tpu.memory_space<vmem>>, vector<128x128xbf16>
      tpu.vector_store %arg4[%c0_12, %c0_13], %15 {strides = array<i32>} : memref<128x128xbf16, #tpu.memory_space<vmem>>, vector<128x128xbf16>,
    } else {
    }
    return
  }
  func.func @transform_0(%arg0: i32, %arg1: i32) -> (i32, i32) {
    %c0_i32 = arith.constant 0 : i32
    return %arg0, %arg1 : i32, i32
  }
  func.func @transform_1(%arg0: i32, %arg1: i32) -> (i32, i32) {
    %c0_i32 = arith.constant 0 : i32
    %c0_i32_0 = arith.constant 0 : i32
    return %arg1, %c0_i32 : i32, i32
  }
  func.func @transform_2(%arg0: i32, %arg1: i32) -> (i32, i32) {
    %c0_i32 = arith.constant 0 : i32
    %c0_i32_0 = arith.constant 0 : i32
    return %arg0, %c0_i32 : i32, i32
  }
}

module attributes {stable_mosaic.version = 11 : i64} {
  func.func @_phi_apply_kernel(%arg0: i32, %arg1: i32, %arg2: memref<128x128xbf16, #tpu.memory_space<vmem>>, %arg3: memref<128x128xbf16, #tpu.memory_space<vmem>>, %arg4: memref<128x128xf32, #tpu.memory_space<vmem>>, %arg5: memref<128x128xf32, #tpu.memory_space<vmem>>) attributes {dimension_semantics = [#tpu.dimension_semantics<parallel>, #tpu.dimension_semantics<arbitrary>], iteration_bounds = array<i64: 3, 3>, scalar_prefetch = 0 : i64, scratch_operands = 1 : i64, tpu.core_type = #tpu.core_type<tc>, window_params = [{transform_indices = @transform_0, window_bounds = array<i64: 128, 128>}, {transform_indices = @transform_1, window_bounds = array<i64: 128, 128>}, {transform_indices = @transform_2, window_bounds = array<i64: 128, 128>}]} {
    %c0_i32 = arith.constant 0 : i32
    %0 = arith.cmpi eq, %arg1, %c0_i32 : i32
    %1 = arith.extui %0 : i1 to i32
    %c0_i32_0 = arith.constant 0 : i32
    %2 = arith.cmpi ne, %1, %c0_i32_0 : i32
    scf.if %2 {
      %cst_9 = arith.constant 0.000000e+00 : f32
      %12 = vector.broadcast %cst_9 : f32 to vector<128x128xf32>
      %c0_10 = arith.constant 0 : index
      %c0_11 = arith.constant 0 : index
      %13 = vector.load %arg5[%c0_10, %c0_11] : memref<128x128xf32, #tpu.memory_space<vmem>>, vector<128x128xf32>
      tpu.vector_store %arg5[%c0_10, %c0_11], %12 {strides = array<i32>} : memref<128x128xf32, #tpu.memory_space<vmem>>, vector<128x128xf32>,
    } else {
    }
    %c0 = arith.constant 0 : index
    %c0_1 = arith.constant 0 : index
    %3 = vector.load %arg5[%c0, %c0_1] : memref<128x128xf32, #tpu.memory_space<vmem>>, vector<128x128xf32>
    %c0_2 = arith.constant 0 : index
    %c0_3 = arith.constant 0 : index
    %4 = vector.load %arg2[%c0_2, %c0_3] : memref<128x128xbf16, #tpu.memory_space<vmem>>, vector<128x128xbf16>
    %c0_4 = arith.constant 0 : index
    %c0_5 = arith.constant 0 : index
    %5 = vector.load %arg3[%c0_4, %c0_5] : memref<128x128xbf16, #tpu.memory_space<vmem>>, vector<128x128xbf16>
    %cst = arith.constant dense<0.000000e+00> : vector<128x128xf32>
    %6 = tpu.matmul %4, %5, %cst {dimension_numbers = #tpu.dot_dimension_numbers<[1], [0], [0], [1], [0, 0, 1, 1], [], []>} : vector<128x128xbf16>, vector<128x128xbf16>, vector<128x128xf32> -> vector<128x128xf32>
    %7 = arith.addf %3, %6 : vector<128x128xf32>
    %c0_6 = arith.constant 0 : index
    %c0_7 = arith.constant 0 : index
    %8 = vector.load %arg5[%c0_6, %c0_7] : memref<128x128xf32, #tpu.memory_space<vmem>>, vector<128x128xf32>
    tpu.vector_store %arg5[%c0_6, %c0_7], %7 {strides = array<i32>} : memref<128x128xf32, #tpu.memory_space<vmem>>, vector<128x128xf32>,
    %c2_i32 = arith.constant 2 : i32
    %9 = arith.cmpi eq, %arg1, %c2_i32 : i32
    %10 = arith.extui %9 : i1 to i32
    %c0_i32_8 = arith.constant 0 : i32
    %11 = arith.cmpi ne, %10, %c0_i32_8 : i32
    scf.if %11 {
      %c0_9 = arith.constant 0 : index
      %c0_10 = arith.constant 0 : index
      %12 = vector.load %arg5[%c0_9, %c0_10] : memref<128x128xf32, #tpu.memory_space<vmem>>, vector<128x128xf32>
      %cst_11 = arith.constant 0.000000e+00 : f32
      %13 = vector.broadcast %cst_11 : f32 to vector<128x128xf32>
      %14 = arith.maximumf %12, %13 : vector<128x128xf32>
      %15 = tpu.iota {dimensions = array<i32: 1>} : vector<128x128xi32>
      %c7_i32 = arith.constant 7 : i32
      %16 = vector.broadcast %c7_i32 : i32 to vector<128x128xi32>
      %17 = arith.cmpi slt, %15, %16 : vector<128x128xi32>
      %cst_12 = arith.constant 0xFF800000 : f32
      %18 = vector.broadcast %cst_12 : f32 to vector<128x128xf32>
      %19 = arith.select %17, %14, %18 : vector<128x128xi1>, vector<128x128xf32>
      %cst_13 = arith.constant dense<0xFF800000> : vector<128xf32>
      %20 = vector.multi_reduction <maximumf>, %19, %cst_13 [1] : vector<128x128xf32> to vector<128xf32>
      %21 = vector.shape_cast %20 : vector<128xf32> to vector<128x1xf32>
      %22 = vector.broadcast %21 : vector<128x1xf32> to vector<128x128xf32>
      %23 = arith.subf %19, %22 : vector<128x128xf32>
      %24 = math.exp %23 : vector<128x128xf32>
      %cst_14 = arith.constant dense<0.000000e+00> : vector<128xf32>
      %25 = vector.multi_reduction <add>, %24, %cst_14 [1] : vector<128x128xf32> to vector<128xf32>
      %26 = vector.shape_cast %25 : vector<128xf32> to vector<128x1xf32>
      %27 = math.log %26 : vector<128x1xf32>
      %28 = vector.broadcast %27 : vector<128x1xf32> to vector<128x128xf32>
      %29 = arith.subf %23, %28 : vector<128x128xf32>
      %cst_15 = arith.constant 0.000000e+00 : f32
      %30 = vector.broadcast %cst_15 : f32 to vector<128x128xf32>
      %31 = arith.select %17, %29, %30 : vector<128x128xi1>, vector<128x128xf32>
      %c0_16 = arith.constant 0 : index
      %c0_17 = arith.constant 0 : index
      %32 = vector.load %arg4[%c0_16, %c0_17] : memref<128x128xf32, #tpu.memory_space<vmem>>, vector<128x128xf32>
      tpu.vector_store %arg4[%c0_16, %c0_17], %31 {strides = array<i32>} : memref<128x128xf32, #tpu.memory_space<vmem>>, vector<128x128xf32>,
    } else {
    }
    return
  }
  func.func @transform_0(%arg0: i32, %arg1: i32) -> (i32, i32) {
    %c0_i32 = arith.constant 0 : i32
    return %arg0, %arg1 : i32, i32
  }
  func.func @transform_1(%arg0: i32, %arg1: i32) -> (i32, i32) {
    %c0_i32 = arith.constant 0 : i32
    %c0_i32_0 = arith.constant 0 : i32
    return %arg1, %c0_i32 : i32, i32
  }
  func.func @transform_2(%arg0: i32, %arg1: i32) -> (i32, i32) {
    %c0_i32 = arith.constant 0 : i32
    %c0_i32_0 = arith.constant 0 : i32
    return %arg0, %c0_i32 : i32, i32
  }
}

module attributes {stable_mosaic.version = 11 : i64} {
  func.func @_phi_inv_kernel(%arg0: i32, %arg1: i32, %arg2: memref<128x128xbf16, #tpu.memory_space<vmem>>, %arg3: memref<128x128xbf16, #tpu.memory_space<vmem>>, %arg4: memref<128x1xf32, #tpu.memory_space<vmem>>, %arg5: memref<128x128xbf16, #tpu.memory_space<vmem>>, %arg6: memref<128x128xf32, #tpu.memory_space<vmem>>) attributes {dimension_semantics = [#tpu.dimension_semantics<parallel>, #tpu.dimension_semantics<arbitrary>], iteration_bounds = array<i64: 3, 3>, scalar_prefetch = 0 : i64, scratch_operands = 1 : i64, tpu.core_type = #tpu.core_type<tc>, window_params = [{transform_indices = @transform_0, window_bounds = array<i64: 128, 128>}, {transform_indices = @transform_1, window_bounds = array<i64: 128, 128>}, {transform_indices = @transform_2, window_bounds = array<i64: 128, 1>}, {transform_indices = @transform_3, window_bounds = array<i64: 128, 128>}]} {
    %c0_i32 = arith.constant 0 : i32
    %0 = arith.cmpi eq, %arg1, %c0_i32 : i32
    %1 = arith.extui %0 : i1 to i32
    %c0_i32_0 = arith.constant 0 : i32
    %2 = arith.cmpi ne, %1, %c0_i32_0 : i32
    scf.if %2 {
      %cst_9 = arith.constant 0.000000e+00 : f32
      %12 = vector.broadcast %cst_9 : f32 to vector<128x128xf32>
      %c0_10 = arith.constant 0 : index
      %c0_11 = arith.constant 0 : index
      %13 = vector.load %arg6[%c0_10, %c0_11] : memref<128x128xf32, #tpu.memory_space<vmem>>, vector<128x128xf32>
      tpu.vector_store %arg6[%c0_10, %c0_11], %12 {strides = array<i32>} : memref<128x128xf32, #tpu.memory_space<vmem>>, vector<128x128xf32>,
    } else {
    }
    %c0 = arith.constant 0 : index
    %c0_1 = arith.constant 0 : index
    %3 = vector.load %arg6[%c0, %c0_1] : memref<128x128xf32, #tpu.memory_space<vmem>>, vector<128x128xf32>
    %c0_2 = arith.constant 0 : index
    %c0_3 = arith.constant 0 : index
    %4 = vector.load %arg2[%c0_2, %c0_3] : memref<128x128xbf16, #tpu.memory_space<vmem>>, vector<128x128xbf16>
    %c0_4 = arith.constant 0 : index
    %c0_5 = arith.constant 0 : index
    %5 = vector.load %arg3[%c0_4, %c0_5] : memref<128x128xbf16, #tpu.memory_space<vmem>>, vector<128x128xbf16>
    %cst = arith.constant dense<0.000000e+00> : vector<128x128xf32>
    %6 = tpu.matmul %4, %5, %cst {dimension_numbers = #tpu.dot_dimension_numbers<[1], [0], [0], [1], [0, 0, 1, 1], [], []>} : vector<128x128xbf16>, vector<128x128xbf16>, vector<128x128xf32> -> vector<128x128xf32>
    %7 = arith.addf %3, %6 : vector<128x128xf32>
    %c0_6 = arith.constant 0 : index
    %c0_7 = arith.constant 0 : index
    %8 = vector.load %arg6[%c0_6, %c0_7] : memref<128x128xf32, #tpu.memory_space<vmem>>, vector<128x128xf32>
    tpu.vector_store %arg6[%c0_6, %c0_7], %7 {strides = array<i32>} : memref<128x128xf32, #tpu.memory_space<vmem>>, vector<128x128xf32>,
    %c2_i32 = arith.constant 2 : i32
    %9 = arith.cmpi eq, %arg1, %c2_i32 : i32
    %10 = arith.extui %9 : i1 to i32
    %c0_i32_8 = arith.constant 0 : i32
    %11 = arith.cmpi ne, %10, %c0_i32_8 : i32
    scf.if %11 {
      %c0_9 = arith.constant 0 : index
      %c0_10 = arith.constant 0 : index
      %12 = vector.load %arg6[%c0_9, %c0_10] : memref<128x128xf32, #tpu.memory_space<vmem>>, vector<128x128xf32>
      %c0_11 = arith.constant 0 : index
      %c0_12 = arith.constant 0 : index
      %13 = vector.load %arg4[%c0_11, %c0_12] : memref<128x1xf32, #tpu.memory_space<vmem>>, vector<128x1xf32>
      %14 = vector.broadcast %13 : vector<128x1xf32> to vector<128x128xf32>
      %15 = arith.mulf %12, %14 : vector<128x128xf32>
      %16 = arith.truncf %15 : vector<128x128xf32> to vector<128x128xbf16>
      %c0_13 = arith.constant 0 : index
      %c0_14 = arith.constant 0 : index
      %17 = vector.load %arg5[%c0_13, %c0_14] : memref<128x128xbf16, #tpu.memory_space<vmem>>, vector<128x128xbf16>
      tpu.vector_store %arg5[%c0_13, %c0_14], %16 {strides = array<i32>} : memref<128x128xbf16, #tpu.memory_space<vmem>>, vector<128x128xbf16>,
    } else {
    }
    return
  }
  func.func @transform_0(%arg0: i32, %arg1: i32) -> (i32, i32) {
    %c0_i32 = arith.constant 0 : i32
    return %arg0, %arg1 : i32, i32
  }
  func.func @transform_1(%arg0: i32, %arg1: i32) -> (i32, i32) {
    %c0_i32 = arith.constant 0 : i32
    %c0_i32_0 = arith.constant 0 : i32
    return %arg1, %c0_i32 : i32, i32
  }
  func.func @transform_2(%arg0: i32, %arg1: i32) -> (i32, i32) {
    %c0_i32 = arith.constant 0 : i32
    %c0_i32_0 = arith.constant 0 : i32
    return %arg0, %c0_i32 : i32, i32
  }
  func.func @transform_3(%arg0: i32, %arg1: i32) -> (i32, i32) {
    %c0_i32 = arith.constant 0 : i32
    %c0_i32_0 = arith.constant 0 : i32
    return %arg0, %c0_i32 : i32, i32
  }
}

</mosaic_0001>

<llo_original>
// kernel: wavelet2_forward.6
$region0: #{wavelet2_forward.6}
  #allocation0 [shape = 'u32[]', space=smem, size = 0x4, offset = 0x4, fixed_abs, tag = 'smem constant byte address 0x4 - core index']
  #allocation1 [shape = 'u32[72,128]{1,0:T(1,128)}', space=vmem, size = 0x9000, scoped, tag = 'internal scratch']
  %s0 = inlined_call_operand.vmem [shape: bf16[384,128], index: 0, kind: input, shape index: {}]
  %s1 = inlined_call_operand.vmem [shape: bf16[128,128], index: 1, kind: input, shape index: {}]
  %s2 = inlined_call_operand.vmem [shape: bf16[384,128], index: 2, kind: output, shape index: {}]
  %s3 = sld [smem:[#allocation0]]
  $region41: #{wavelet2_forward.6} parent=0
    _
  %s5 = ssub.s32 1, %s3
  %s6 = scalar_select 0, %s5, %s3
  loop: start=0, step=1, limit=5
  $region2: #{wavelet2_forward.6} parent=0 // loop_pre_header
    _
  $region3: #{wavelet2_forward.6} parent=0 // loop_header
    %s8 = sphi 0, %s12
    %p9 = scmp.ge.s32.totalorder %s8, 5
    %s18 = sphi 0, %s20
    %s21 = sphi 0, %s18
    %s22 = sphi 0, %s21
    %s38 = sphi 0, %s22
    %s42 = sphi 0, %s42
    %s44 = sphi 0, %s42
    %s45 = sphi 0, %s44
    %s59 = sphi 0, %s45
    %s65 = sphi 0, %s67
    %s68 = sphi 0, %s65
    %s69 = sphi 0, %s68
    %s85 = sphi 0, %s69
  $region4: #{wavelet2_forward.6} parent=0 // loop_header_branch
    %11 = sbr.rel (%p9) target = $region8
  $region5: #{wavelet2_forward.6} parent=0 // loop_body
    %s13 = ssub.s32 %s8, 1
    %s14 = ssub.s32 %s8, 2
    %s15 = sadd.s32 %s8, 1
    %s16 = ssub.s32 %s8, %s15
    %p17 = scmp.eq.s32.totalorder %s16, 0
    %s19 = sadd.s32 %s18, 1
    %s20 = scalar_select %p17, %s18, %s19
    %p23 = pneg %p17
    %p24 = scmp.eq.s32.totalorder %s8, 2
    %p25 = por %p23, %p24
    %p26 = scmp.ne.s32.totalorder %s18, %s21
    %p27 = scmp.eq.s32.totalorder %s8, 0
    %p28 = por %p26, %p27
    %p29 = scmp.ne.s32.totalorder %s18, %s21
    %p30 = scmp.eq.s32.totalorder %s13, 2
    %p31 = por %p29, %p30
    %p32 = scmp.ne.s32.totalorder %s21, %s22
    %p33 = scmp.eq.s32.totalorder %s13, 0
    %p34 = por %p32, %p33
    %p35 = scmp.ne.s32.totalorder %s21, %s22
    %p36 = scmp.eq.s32.totalorder %s14, 2
    %p37 = por %p35, %p36
    %p39 = scmp.ne.s32.totalorder %s22, %s38
    %p40 = scmp.eq.s32.totalorder %s14, 0
    %p41 = por %p39, %p40
    %s43 = sadd.s32 %s42, 1
    %p46 = scmp.eq.s32.totalorder %s8, 2
    %p47 = scmp.ne.s32.totalorder %s42, %s44
    %p48 = scmp.eq.s32.totalorder %s8, 0
    %p49 = por %p47, %p48
    %p50 = scmp.ne.s32.totalorder %s42, %s44
    %p51 = scmp.eq.s32.totalorder %s13, 2
    %p52 = por %p50, %p51
    %p53 = scmp.ne.s32.totalorder %s44, %s45
    %p54 = scmp.eq.s32.totalorder %s13, 0
    %p55 = por %p53, %p54
    %p56 = scmp.ne.s32.totalorder %s44, %s45
    %p57 = scmp.eq.s32.totalorder %s14, 2
    %p58 = por %p56, %p57
    %p60 = scmp.ne.s32.totalorder %s45, %s59
    %p61 = scmp.eq.s32.totalorder %s14, 0
    %p62 = por %p60, %p61
    %s63 = ssub.s32 %s8, %s15
    %p64 = scmp.eq.s32.totalorder %s63, 0
    %s66 = sadd.s32 %s65, 1
    %s67 = scalar_select %p64, %s65, %s66
    %p70 = pneg %p64
    %p71 = scmp.eq.s32.totalorder %s8, 2
    %p72 = por %p70, %p71
    %p73 = scmp.ne.s32.totalorder %s65, %s68
    %p74 = scmp.eq.s32.totalorder %s8, 0
    %p75 = por %p73, %p74
    %p76 = scmp.ne.s32.totalorder %s65, %s68
    %p77 = scmp.eq.s32.totalorder %s13, 2
    %p78 = por %p76, %p77
    %p79 = scmp.ne.s32.totalorder %s68, %s69
    %p80 = scmp.eq.s32.totalorder %s13, 0
    %p81 = por %p79, %p80
    %p82 = scmp.ne.s32.totalorder %s68, %s69
    %p83 = scmp.eq.s32.totalorder %s14, 2
    %p84 = por %p82, %p83
    %p86 = scmp.ne.s32.totalorder %s69, %s85
    %p87 = scmp.eq.s32.totalorder %s14, 0
    %p88 = por %p86, %p87
    %p89 = scmp.le.s32.totalorder 1, %s8
    %p90 = scmp.lt.s32.totalorder %s8, 4
    %p91 = pnand %p89, %p90
    %p92 = pneg %p91
    // Predicated region
    $region9: #{wavelet2_forward.6} parent=5 // pred_check
      _
    $region10: #{wavelet2_forward.6} parent=5 // pred_check_branch
      %94 = sbr.rel (%p91) target = $region12
    $region11: #{wavelet2_forward.6} parent=5 // pred_region
      %s95 = ssub.s32 %s8, 1
      // Predicated region
      $region13: #{wavelet2_forward.6} parent=11 // pred_check
        %p96 = pneg %p55
      $region14: #{wavelet2_forward.6} parent=11 // pred_check_branch
        %98 = sbr.rel (%p96) target = $region16
      $region15: #{wavelet2_forward.6} parent=11 // pred_region
        _
      $region16: #{wavelet2_forward.6} parent=11 // pred_fallthru
        _
    $region12: #{wavelet2_forward.6} parent=5 // pred_fallthru
      _
    %p99 = scmp.lt.s32.totalorder %s8, 3
    // Predicated region
    $region17: #{wavelet2_forward.6} parent=5 // pred_check
      %p100 = pneg %p99
    $region18: #{wavelet2_forward.6} parent=5 // pred_check_branch
      %102 = sbr.rel (%p100) target = $region20
    $region19: #{wavelet2_forward.6} parent=5 // pred_region
      // Predicated region
      $region21: #{wavelet2_forward.6} parent=19 // pred_check
        %p103 = pneg %p28
      $region22: #{wavelet2_forward.6} parent=19 // pred_check_branch
        %105 = sbr.rel (%p103) target = $region24
      $region23: #{wavelet2_forward.6} parent=19 // pred_region
        %s106 = smul.u32 16, %s8
        %p107 = scmp.lt.s32.totalorder %s106, 47
        %s108 = scalar_select %p107, %s106, 47
        %s109 = smul.addr %s108, 4
        %s110 = scalar_lea.vmem %s0, %s109
        %s111 = smul.u32 16, %s8
      $region24: #{wavelet2_forward.6} parent=19 // pred_fallthru
        _
    $region20: #{wavelet2_forward.6} parent=5 // pred_fallthru
      _
    %p112 = scmp.le.s32.totalorder 1, %s8
    %p113 = scmp.lt.s32.totalorder %s8, 4
    %p114 = pnand %p112, %p113
    %p115 = pneg %p114
    // Predicated region
    $region25: #{wavelet2_forward.6} parent=5 // pred_check
      _
    $region26: #{wavelet2_forward.6} parent=5 // pred_check_branch
      %117 = sbr.rel (%p114) target = $region28
    $region27: #{wavelet2_forward.6} parent=5 // pred_region
      %s118 = ssub.s32 %s8, 1
      %s119 = smul.u32 16, %s13
      %p120 = scmp.lt.s32.totalorder %s119, 47
      %s121 = scalar_select %p120, %s119, 47
      %s122 = smul.addr %s121, 4
      %s123 = scalar_lea.vmem %s0, %s122
      %p124 = pneg %p34
      %p125 = pneg %p31
      %p126 = pneg %p55
      %p127 = pneg %p52
      %p128 = pneg %p81
      %p129 = pneg %p78
      %s130 = smul.u32 16, %s13
      %p131 = scmp.lt.s32.totalorder %s130, 47
      %s132 = scalar_select %p131, %s130, 47
      %s133 = smul.addr %s132, 4
      %s134 = scalar_lea.vmem %s2, %s133
      %s135 = smul.u32 16, %s13
      %p136 = scmp.lt.s32.totalorder %s135, 47
      %s137 = scalar_select %p136, %s135, 47
      %s138 = smul.addr %s137, 4
      %s139 = scalar_lea.vmem %s0, %s138
      %s140 = smul.u32 16, %s13
      %s141 = smul.u32 16, %s13
      %p142 = scmp.lt.s32.totalorder %s141, 47
      %s143 = scalar_select %p142, %s141, 47
      %s144 = smul.addr %s143, 4
      %s145 = scalar_lea.vmem %s2, %s144
      %s146 = smul.u32 16, %s13
      %v147 = vld [vmem:[%s139] sm:$0xf]
      %v148 = vld [vmem:[%s139 + $0x4] sm:$0xf]
      %v149 = vld [vmem:[%s139 + $0x8] sm:$0xf]
      %v150 = vld [vmem:[%s139 + $0xc] sm:$0xf]
      %v151 = vld [vmem:[%s139 + $0x10] sm:$0xf]
      %v152 = vld [vmem:[%s139 + $0x14] sm:$0xf]
      %v153 = vld [vmem:[%s139 + $0x18] sm:$0xf]
      %v154 = vld [vmem:[%s139 + $0x1c] sm:$0xf]
      %v155 = vld [vmem:[%s139 + $0x20] sm:$0xf]
      %v156 = vld [vmem:[%s139 + $0x24] sm:$0xf]
      %v157 = vld [vmem:[%s139 + $0x28] sm:$0xf]
      %v158 = vld [vmem:[%s139 + $0x2c] sm:$0xf]
      %v159 = vld [vmem:[%s139 + $0x30] sm:$0xf]
      %v160 = vld [vmem:[%s139 + $0x34] sm:$0xf]
      %v161 = vld [vmem:[%s139 + $0x38] sm:$0xf]
      %v162 = vld [vmem:[%s139 + $0x3c] sm:$0xf]
      %v163 = vld [vmem:[%s1] sm:$0xf]
      %v164 = vld [vmem:[%s1 + $0x4] sm:$0xf]
      %v165 = vld [vmem:[%s1 + $0x8] sm:$0xf]
      %v166 = vld [vmem:[%s1 + $0xc] sm:$0xf]
      %v167 = vld [vmem:[%s1 + $0x10] sm:$0xf]
      %v168 = vld [vmem:[%s1 + $0x14] sm:$0xf]
      %v169 = vld [vmem:[%s1 + $0x18] sm:$0xf]
      %v170 = vld [vmem:[%s1 + $0x1c] sm:$0xf]
      %v171 = vld [vmem:[%s1 + $0x20] sm:$0xf]
      %v172 = vld [vmem:[%s1 + $0x24] sm:$0xf]
      %v173 = vld [vmem:[%s1 + $0x28] sm:$0xf]
      %v174 = vld [vmem:[%s1 + $0x2c] sm:$0xf]
      %v175 = vld [vmem:[%s1 + $0x30] sm:$0xf]
      %v176 = vld [vmem:[%s1 + $0x34] sm:$0xf]
      %v177 = vld [vmem:[%s1 + $0x38] sm:$0xf]
      %v178 = vld [vmem:[%s1 + $0x3c] sm:$0xf]
      %v195 = vunpack.c.l.b16 %v147
      %v196 = vunpack.c.l.b16 %v148
      %v197 = vunpack.c.l.b16 %v149
      %v198 = vunpack.c.l.b16 %v150
      %v199 = vunpack.c.l.b16 %v151
      %v200 = vunpack.c.l.b16 %v152
      %v201 = vunpack.c.l.b16 %v153
      %v202 = vunpack.c.l.b16 %v154
      %v203 = vunpack.c.l.b16 %v155
      %v204 = vunpack.c.l.b16 %v156
      %v205 = vunpack.c.l.b16 %v157
      %v206 = vunpack.c.l.b16 %v158
      %v207 = vunpack.c.l.b16 %v159
      %v208 = vunpack.c.l.b16 %v160
      %v209 = vunpack.c.l.b16 %v161
      %v210 = vunpack.c.l.b16 %v162
      %v211 = vpack.c.b16 %v196, %v195
      %v212 = vpack.c.b16 %v198, %v197
      %v213 = vpack.c.b16 %v200, %v199
      %v214 = vpack.c.b16 %v202, %v201
      %v215 = vpack.c.b16 %v204, %v203
      %v216 = vpack.c.b16 %v206, %v205
      %v217 = vpack.c.b16 %v208, %v207
      %v218 = vpack.c.b16 %v210, %v209
      %v243 = vunpack.c.l.b16 %v163
      %v244 = vunpack.c.l.b16 %v164
      %v245 = vunpack.c.l.b16 %v165
      %v246 = vunpack.c.l.b16 %v166
      %v247 = vunpack.c.l.b16 %v167
      %v248 = vunpack.c.l.b16 %v168
      %v249 = vunpack.c.l.b16 %v169
      %v250 = vunpack.c.l.b16 %v170
      %v251 = vunpack.c.l.b16 %v171
      %v252 = vunpack.c.l.b16 %v172
      %v253 = vunpack.c.l.b16 %v173
      %v254 = vunpack.c.l.b16 %v174
      %v255 = vunpack.c.l.b16 %v175
      %v256 = vunpack.c.l.b16 %v176
      %v257 = vunpack.c.l.b16 %v177
      %v258 = vunpack.c.l.b16 %v178
      %v259 = vpack.c.b16 %v244, %v243
      %v260 = vpack.c.b16 %v246, %v245
      %v261 = vpack.c.b16 %v248, %v247
      %v262 = vpack.c.b16 %v250, %v249
      %v263 = vpack.c.b16 %v252, %v251
      %v264 = vpack.c.b16 %v254, %v253
      %v265 = vpack.c.b16 %v256, %v255
      %v266 = vpack.c.b16 %v258, %v257
      %275 = vmatpush.bf16.msra.mxu0 %v266
      %276 = vmatpush.bf16.msra.mxu0 %v265
      %277 = vmatpush.bf16.msra.mxu0 %v264
      %278 = vmatpush.bf16.msra.mxu0 %v263
      %279 = vmatpush.bf16.msra.mxu0 %v262
      %280 = vmatpush.bf16.msra.mxu0 %v261
      %281 = vmatpush.bf16.msra.mxu0 %v260
      %282 = vmatpush.bf16.msra.mxu0 %v259
      %283 = vmatmul.bf16.gmra.mxu0 %v211
      %v284 = vpop.f32.mrf.mxu0
      %v285 = vadd.f32 0.0, %v284
      %v286 = vpop.f32.mrf.mxu0
      %v287 = vadd.f32 0.0, %v286
      %288 = vmatmul.bf16.gmra.mxu0 %v212
      %v289 = vpop.f32.mrf.mxu0
      %v290 = vadd.f32 0.0, %v289
      %v291 = vpop.f32.mrf.mxu0
      %v292 = vadd.f32 0.0, %v291
      %293 = vmatmul.bf16.gmra.mxu0 %v213
      %v294 = vpop.f32.mrf.mxu0
      %v295 = vadd.f32 0.0, %v294
      %v296 = vpop.f32.mrf.mxu0
      %v297 = vadd.f32 0.0, %v296
      %298 = vmatmul.bf16.gmra.mxu0 %v214
      %v299 = vpop.f32.mrf.mxu0
      %v300 = vadd.f32 0.0, %v299
      %v301 = vpop.f32.mrf.mxu0
      %v302 = vadd.f32 0.0, %v301
      %303 = vmatmul.bf16.gmra.mxu0 %v215
      %v304 = vpop.f32.mrf.mxu0
      %v305 = vadd.f32 0.0, %v304
      %v306 = vpop.f32.mrf.mxu0
      %v307 = vadd.f32 0.0, %v306
      %308 = vmatmul.bf16.gmra.mxu0 %v216
      %v309 = vpop.f32.mrf.mxu0
      %v310 = vadd.f32 0.0, %v309
      %v311 = vpop.f32.mrf.mxu0
      %v312 = vadd.f32 0.0, %v311
      %313 = vmatmul.bf16.gmra.mxu0 %v217
      %v314 = vpop.f32.mrf.mxu0
      %v315 = vadd.f32 0.0, %v314
      %v316 = vpop.f32.mrf.mxu0
      %v317 = vadd.f32 0.0, %v316
      %318 = vmatmul.bf16.gmra.mxu0 %v218
      %v319 = vpop.f32.mrf.mxu0
      %v320 = vadd.f32 0.0, %v319
      %v321 = vpop.f32.mrf.mxu0
      %v322 = vadd.f32 0.0, %v321
      %323 = vdwg.mxu0
      %v324 = vpack.c.bf16 %v285, %v285
      %v325 = vpack.c.bf16 %v287, %v287
      %v326 = vpack.c.bf16 %v290, %v290
      %v327 = vpack.c.bf16 %v292, %v292
      %v328 = vpack.c.bf16 %v295, %v295
      %v329 = vpack.c.bf16 %v297, %v297
      %v330 = vpack.c.bf16 %v300, %v300
      %v331 = vpack.c.bf16 %v302, %v302
      %v332 = vpack.c.bf16 %v305, %v305
      %v333 = vpack.c.bf16 %v307, %v307
      %v334 = vpack.c.bf16 %v310, %v310
      %v335 = vpack.c.bf16 %v312, %v312
      %v336 = vpack.c.bf16 %v315, %v315
      %v337 = vpack.c.bf16 %v317, %v317
      %v338 = vpack.c.bf16 %v320, %v320
      %v339 = vpack.c.bf16 %v322, %v322
      %340 = vst [vmem:[%s145] sm:$0xf] %v324
      %341 = vst [vmem:[%s145 + $0x4] sm:$0xf] %v325
      %342 = vst [vmem:[%s145 + $0x8] sm:$0xf] %v326
      %343 = vst [vmem:[%s145 + $0xc] sm:$0xf] %v327
      %344 = vst [vmem:[%s145 + $0x10] sm:$0xf] %v328
      %345 = vst [vmem:[%s145 + $0x14] sm:$0xf] %v329
      %346 = vst [vmem:[%s145 + $0x18] sm:$0xf] %v330
      %347 = vst [vmem:[%s145 + $0x1c] sm:$0xf] %v331
      %348 = vst [vmem:[%s145 + $0x20] sm:$0xf] %v332
      %349 = vst [vmem:[%s145 + $0x24] sm:$0xf] %v333
      %350 = vst [vmem:[%s145 + $0x28] sm:$0xf] %v334
      %351 = vst [vmem:[%s145 + $0x2c] sm:$0xf] %v335
      %352 = vst [vmem:[%s145 + $0x30] sm:$0xf] %v336
      %353 = vst [vmem:[%s145 + $0x34] sm:$0xf] %v337
      %354 = vst [vmem:[%s145 + $0x38] sm:$0xf] %v338
      %355 = vst [vmem:[%s145 + $0x3c] sm:$0xf] %v339
      %s356 = smul.u32 16, %s13
      %p357 = scmp.lt.s32.totalorder %s356, 47
      %s358 = scalar_select %p357, %s356, 47
      %s359 = smul.addr %s358, 4
      %s360 = scalar_lea.vmem %s2, %s359
      // Predicated region
      $region29: #{wavelet2_forward.6} parent=27 // pred_check
        %p361 = pneg %p78
      $region30: #{wavelet2_forward.6} parent=27 // pred_check_branch
        %363 = sbr.rel (%p361) target = $region32
      $region31: #{wavelet2_forward.6} parent=27 // pred_region
        %s364 = smul.u32 16, %s13
      $region32: #{wavelet2_forward.6} parent=27 // pred_fallthru
        _
    $region28: #{wavelet2_forward.6} parent=5 // pred_fallthru
      _
    %p365 = scmp.le.s32.totalorder 2, %s8
    // Predicated region
    $region33: #{wavelet2_forward.6} parent=5 // pred_check
      %p366 = pneg %p365
    $region34: #{wavelet2_forward.6} parent=5 // pred_check_branch
      %368 = sbr.rel (%p366) target = $region36
    $region35: #{wavelet2_forward.6} parent=5 // pred_region
      %s369 = ssub.s32 %s8, 2
      // Predicated region
      $region37: #{wavelet2_forward.6} parent=35 // pred_check
        %p370 = pneg %p84
      $region38: #{wavelet2_forward.6} parent=35 // pred_check_branch
        %372 = sbr.rel (%p370) target = $region40
      $region39: #{wavelet2_forward.6} parent=35 // pred_region
        %s373 = smul.u32 16, %s14
        %p374 = scmp.lt.s32.totalorder %s373, 47
        %s375 = scalar_select %p374, %s373, 47
        %s376 = smul.addr %s375, 4
        %s377 = scalar_lea.vmem %s2, %s376
      $region40: #{wavelet2_forward.6} parent=35 // pred_fallthru
        _
    $region36: #{wavelet2_forward.6} parent=5 // pred_fallthru
      _
  $region6: #{wavelet2_forward.6} parent=0 // loop_footer
    %s12 = sadd.s32 1, %s8
  $region7: #{wavelet2_forward.6} parent=0 // loop_footer_branch
    %7 = sbr.rel target = $region3
  $region8: #{wavelet2_forward.6} parent=0 // loop_exit
    _

// kernel: wavelet2_forward.8
$region0: #{wavelet2_forward.8}
  #allocation0 [shape = 'u32[]', space=smem, size = 0x4, offset = 0x4, fixed_abs, tag = 'smem constant byte address 0x4 - core index']
  #allocation1 [shape = 'u32[72,128]{1,0:T(1,128)}', space=vmem, size = 0x9000, scoped, tag = 'internal scratch']
  #allocation2 [shape = 'f32[128,128]{1,0:T(8,128)}', space=vmem, size = 0x10000, scoped, tag = 'scratch operand']
  %s0 = inlined_call_operand.vmem [shape: bf16[384,384], index: 0, kind: input, shape index: {}]
  %s1 = inlined_call_operand.vmem [shape: bf16[384,128], index: 1, kind: input, shape index: {}]
  %s2 = inlined_call_operand.vmem [shape: bf16[384,128], index: 2, kind: output, shape index: {}]
  %s3 = sld [smem:[#allocation0]]
  $region90: #{wavelet2_forward.8} parent=0
    _
  %s5 = ssub.s32 1, %s3
  %s6 = scalar_select 0, %s5, %s3
  $region1: #{wavelet2_forward.8} parent=0
    #allocation3 [shape = 'u8[65536]{0}', space=vmem, size = 0x10000, scoped, tag = 'input window, operand 0']
    loop: start=0, step=1, limit=11
    $region2: #{wavelet2_forward.8} parent=1 // loop_pre_header
      _
    $region3: #{wavelet2_forward.8} parent=1 // loop_header
      %s8 = sphi 0, %s12
      %p9 = scmp.ge.s32.totalorder %s8, 11
      %s15 = sphi 0, %s27
      %s16 = sphi 0, %s23
      %s17 = sphi 0, %s15
      %s18 = sphi 0, %s16
      %s19 = sphi 0, %s17
      %s20 = sphi 0, %s18
      %s32 = sphi 0, %s34
      %s35 = sphi 0, %s32
      %s36 = sphi 0, %s35
      %s52 = sphi 0, %s36
      %s58 = sphi 0, %s60
      %s61 = sphi 0, %s58
      %s62 = sphi 0, %s61
      %s78 = sphi 0, %s62
      %s84 = sphi 0, %s86
      %s87 = sphi 0, %s84
      %s88 = sphi 0, %s87
      %s104 = sphi 0, %s88
    $region4: #{wavelet2_forward.8} parent=1 // loop_header_branch
      %11 = sbr.rel (%p9) target = $region8
    $region5: #{wavelet2_forward.8} parent=1 // loop_body
      %s13 = ssub.s32 %s8, 1
      %s14 = ssub.s32 %s8, 2
      %s21 = sadd.s32 1, %s16
      %p22 = scmp.ge.s32.totalorder %s21, 3
      %s23 = scalar_select %p22, 0, %s21
      %s24 = sadd.s32 1, %s15
      %s25 = scalar_select %p22, %s24, %s15
      %p26 = scmp.ge.s32.totalorder %s25, 3
      %s27 = scalar_select %p26, 0, %s25
      %s28 = ssub.s32 %s15, %s27
      %s29 = ssub.s32 %s16, %s23
      %s30 = sor.u32 %s28, %s29
      %p31 = scmp.eq.s32.totalorder %s30, 0
      %s33 = sadd.s32 %s32, 1
      %s34 = scalar_select %p31, %s32, %s33
      %p37 = pneg %p31
      %p38 = scmp.eq.s32.totalorder %s8, 8
      %p39 = por %p37, %p38
      %p40 = scmp.ne.s32.totalorder %s32, %s35
      %p41 = scmp.eq.s32.totalorder %s8, 0
      %p42 = por %p40, %p41
      %p43 = scmp.ne.s32.totalorder %s32, %s35
      %p44 = scmp.eq.s32.totalorder %s13, 8
      %p45 = por %p43, %p44
      %p46 = scmp.ne.s32.totalorder %s35, %s36
      %p47 = scmp.eq.s32.totalorder %s13, 0
      %p48 = por %p46, %p47
      %p49 = scmp.ne.s32.totalorder %s35, %s36
      %p50 = scmp.eq.s32.totalorder %s14, 8
      %p51 = por %p49, %p50
      %p53 = scmp.ne.s32.totalorder %s36, %s52
      %p54 = scmp.eq.s32.totalorder %s14, 0
      %p55 = por %p53, %p54
      %s56 = ssub.s32 %s16, %s23
      %p57 = scmp.eq.s32.totalorder %s56, 0
      %s59 = sadd.s32 %s58, 1
      %s60 = scalar_select %p57, %s58, %s59
      %p63 = pneg %p57
      %p64 = scmp.eq.s32.totalorder %s8, 8
      %p65 = por %p63, %p64
      %p66 = scmp.ne.s32.totalorder %s58, %s61
      %p67 = scmp.eq.s32.totalorder %s8, 0
      %p68 = por %p66, %p67
      %p69 = scmp.ne.s32.totalorder %s58, %s61
      %p70 = scmp.eq.s32.totalorder %s13, 8
      %p71 = por %p69, %p70
      %p72 = scmp.ne.s32.totalorder %s61, %s62
      %p73 = scmp.eq.s32.totalorder %s13, 0
      %p74 = por %p72, %p73
      %p75 = scmp.ne.s32.totalorder %s61, %s62
      %p76 = scmp.eq.s32.totalorder %s14, 8
      %p77 = por %p75, %p76
      %p79 = scmp.ne.s32.totalorder %s62, %s78
      %p80 = scmp.eq.s32.totalorder %s14, 0
      %p81 = por %p79, %p80
      %s82 = ssub.s32 %s15, %s27
      %p83 = scmp.eq.s32.totalorder %s82, 0
      %s85 = sadd.s32 %s84, 1
      %s86 = scalar_select %p83, %s84, %s85
      %p89 = pneg %p83
      %p90 = scmp.eq.s32.totalorder %s8, 8
      %p91 = por %p89, %p90
      %p92 = scmp.ne.s32.totalorder %s84, %s87
      %p93 = scmp.eq.s32.totalorder %s8, 0
      %p94 = por %p92, %p93
      %p95 = scmp.ne.s32.totalorder %s84, %s87
      %p96 = scmp.eq.s32.totalorder %s13, 8
      %p97 = por %p95, %p96
      %p98 = scmp.ne.s32.totalorder %s87, %s88
      %p99 = scmp.eq.s32.totalorder %s13, 0
      %p100 = por %p98, %p99
      %p101 = scmp.ne.s32.totalorder %s87, %s88
      %p102 = scmp.eq.s32.totalorder %s14, 8
      %p103 = por %p101, %p102
      %p105 = scmp.ne.s32.totalorder %s88, %s104
      %p106 = scmp.eq.s32.totalorder %s14, 0
      %p107 = por %p105, %p106
      %p108 = scmp.le.s32.totalorder 1, %s8
      %p109 = scmp.lt.s32.totalorder %s8, 10
      %p110 = pnand %p108, %p109
      %p111 = pneg %p110
      // Predicated region
      $region9: #{wavelet2_forward.8} parent=5 // pred_check
        _
      $region10: #{wavelet2_forward.8} parent=5 // pred_check_branch
        %113 = sbr.rel (%p110) target = $region12
      $region11: #{wavelet2_forward.8} parent=5 // pred_region
        %s114 = ssub.s32 %s8, 1
      $region12: #{wavelet2_forward.8} parent=5 // pred_fallthru
        _
      %p115 = scmp.lt.s32.totalorder %s8, 9
      // Predicated region
      $region13: #{wavelet2_forward.8} parent=5 // pred_check
        %p116 = pneg %p115
      $region14: #{wavelet2_forward.8} parent=5 // pred_check_branch
        %118 = sbr.rel (%p116) target = $region16
      $region15: #{wavelet2_forward.8} parent=5 // pred_region
        // Predicated region
        $region17: #{wavelet2_forward.8} parent=15 // pred_check
          %p119 = pneg %p42
        $region18: #{wavelet2_forward.8} parent=15 // pred_check_branch
          %121 = sbr.rel (%p119) target = $region20
        $region19: #{wavelet2_forward.8} parent=15 // pred_region
          %s122 = sand.u32 %s32, 1
          %s123 = sand.u32 %s32, 1
          %s124 = smul.addr %s123, 64
          %s125 = scalar_lea.vmem [#allocation3], %s124
          %s126 = smul.u32 16, %s15
          %s127 = smul.addr %s126, 3
          %s128 = sadd.s32 %s16, %s127
          %s129 = smul.addr %s128, 4
          %s130 = scalar_lea.vmem %s0, %s129
          // Predicated region
          $region21: #{wavelet2_forward.8} parent=19 // pred_check
            _
          $region22: #{wavelet2_forward.8} parent=19 // pred_check_branch
            %132 = sbr.rel (0) target = $region24
          $region23: #{wavelet2_forward.8} parent=19 // pred_region
            // Predicated region
            $region25: #{wavelet2_forward.8} parent=23 // pred_check
              _
            $region26: #{wavelet2_forward.8} parent=23 // pred_check_branch
              %134 = sbr.rel target = $region28
            $region27: #{wavelet2_forward.8} parent=23 // pred_region
              // Predicated region
              $region40: #{wavelet2_forward.8} parent=27 // pred_check
                _
              $region41: #{wavelet2_forward.8} parent=27 // pred_check_branch
                %180 = sbr.rel (0) target = $region43
              $region42: #{wavelet2_forward.8} parent=27 // pred_region
                loop: start=0, step=1, limit=1
                $region44: #{wavelet2_forward.8} parent=42 // loop_pre_header
                  _
                $region45: #{wavelet2_forward.8} parent=42 // loop_header
                  %s182 = sphi 0, %s186
                  %p183 = scmp.ge.s32.totalorder %s182, 1
                  %s187 = sphi %s130, %s130
                  %s188 = sphi %s125, %s125
                $region46: #{wavelet2_forward.8} parent=42 // loop_header_branch
                  %185 = sbr.rel (%p183) target = $region50
                $region47: #{wavelet2_forward.8} parent=42 // loop_body
                  _
                $region48: #{wavelet2_forward.8} parent=42 // loop_footer
                  %s186 = sadd.s32 1, %s182
                $region49: #{wavelet2_forward.8} parent=42 // loop_footer_branch
                  %181 = sbr.rel target = $region45
                $region50: #{wavelet2_forward.8} parent=42 // loop_exit
                  _
                %s190 = ssub.s32 16, 1
                loop: start=0, step=1, limit=1
                $region51: #{wavelet2_forward.8} parent=42 // loop_pre_header
                  _
                $region52: #{wavelet2_forward.8} parent=42 // loop_header
                  %s192 = sphi 0, %s196
                  %p193 = scmp.ge.s32.totalorder %s192, 1
                  %s197 = sphi %s130, %s130
                  %s198 = sphi %s125, %s125
                $region53: #{wavelet2_forward.8} parent=42 // loop_header_branch
                  %195 = sbr.rel (%p193) target = $region57
                $region54: #{wavelet2_forward.8} parent=42 // loop_body
                  %v199 = vld [vmem:[%s197] sm:%s190]
                  %200 = vst [vmem:[%s198] sm:%s190] %v199
                  %v201 = vld [vmem:[%s197 + $0xc] sm:%s190]
                  %202 = vst [vmem:[%s198 + $0x4] sm:%s190] %v201
                  %v203 = vld [vmem:[%s197 + $0x18] sm:%s190]
                  %204 = vst [vmem:[%s198 + $0x8] sm:%s190] %v203
                  %v205 = vld [vmem:[%s197 + $0x24] sm:%s190]
                  %206 = vst [vmem:[%s198 + $0xc] sm:%s190] %v205
                  %v207 = vld [vmem:[%s197 + $0x30] sm:%s190]
                  %208 = vst [vmem:[%s198 + $0x10] sm:%s190] %v207
                  %v209 = vld [vmem:[%s197 + $0x3c] sm:%s190]
                  %210 = vst [vmem:[%s198 + $0x14] sm:%s190] %v209
                  %v211 = vld [vmem:[%s197 + $0x48] sm:%s190]
                  %212 = vst [vmem:[%s198 + $0x18] sm:%s190] %v211
                  %v213 = vld [vmem:[%s197 + $0x54] sm:%s190]
                  %214 = vst [vmem:[%s198 + $0x1c] sm:%s190] %v213
                  %v215 = vld [vmem:[%s197 + $0x60] sm:%s190]
                  %216 = vst [vmem:[%s198 + $0x20] sm:%s190] %v215
                  %v217 = vld [vmem:[%s197 + $0x6c] sm:%s190]
                  %218 = vst [vmem:[%s198 + $0x24] sm:%s190] %v217
                  %v219 = vld [vmem:[%s197 + $0x78] sm:%s190]
                  %220 = vst [vmem:[%s198 + $0x28] sm:%s190] %v219
                  %v221 = vld [vmem:[%s197 + $0x84] sm:%s190]
                  %222 = vst [vmem:[%s198 + $0x2c] sm:%s190] %v221
                  %v223 = vld [vmem:[%s197 + $0x90] sm:%s190]
                  %224 = vst [vmem:[%s198 + $0x30] sm:%s190] %v223
                  %v225 = vld [vmem:[%s197 + $0x9c] sm:%s190]
                  %226 = vst [vmem:[%s198 + $0x34] sm:%s190] %v225
                  %v227 = vld [vmem:[%s197 + $0xa8] sm:%s190]
                  %228 = vst [vmem:[%s198 + $0x38] sm:%s190] %v227
                  %v229 = vld [vmem:[%s197 + $0xb4] sm:%s190]
                  %230 = vst [vmem:[%s198 + $0x3c] sm:%s190] %v229
                $region55: #{wavelet2_forward.8} parent=42 // loop_footer
                  %s196 = sadd.s32 1, %s192
                $region56: #{wavelet2_forward.8} parent=42 // loop_footer_branch
                  %191 = sbr.rel target = $region52
                $region57: #{wavelet2_forward.8} parent=42 // loop_exit
                  _
              $region43: #{wavelet2_forward.8} parent=27 // pred_fallthru
                _
            $region28: #{wavelet2_forward.8} parent=23 // pred_fallthru
              _
            // Predicated region
            $region29: #{wavelet2_forward.8} parent=23 // pred_check
              _
            $region30: #{wavelet2_forward.8} parent=23 // pred_check_branch
              %136 = sbr.rel (0) target = $region32
            $region31: #{wavelet2_forward.8} parent=23 // pred_region
              %s138 = ssub.s32 16, 1
              loop: start=0, step=1, limit=1
              $region33: #{wavelet2_forward.8} parent=31 // loop_pre_header
                _
              $region34: #{wavelet2_forward.8} parent=31 // loop_header
                %s140 = sphi 0, %s144
                %p141 = scmp.ge.s32.totalorder %s140, 1
                %s145 = sphi %s130, %s130
                %s146 = sphi %s125, %s125
              $region35: #{wavelet2_forward.8} parent=31 // loop_header_branch
                %143 = sbr.rel (%p141) target = $region39
              $region36: #{wavelet2_forward.8} parent=31 // loop_body
                %v147 = vld [vmem:[%s145] sm:%s138]
                %148 = vst [vmem:[%s146] sm:%s138] %v147
                %v149 = vld [vmem:[%s145 + $0xc] sm:%s138]
                %150 = vst [vmem:[%s146 + $0x4] sm:%s138] %v149
                %v151 = vld [vmem:[%s145 + $0x18] sm:%s138]
                %152 = vst [vmem:[%s146 + $0x8] sm:%s138] %v151
                %v153 = vld [vmem:[%s145 + $0x24] sm:%s138]
                %154 = vst [vmem:[%s146 + $0xc] sm:%s138] %v153
                %v155 = vld [vmem:[%s145 + $0x30] sm:%s138]
                %156 = vst [vmem:[%s146 + $0x10] sm:%s138] %v155
                %v157 = vld [vmem:[%s145 + $0x3c] sm:%s138]
                %158 = vst [vmem:[%s146 + $0x14] sm:%s138] %v157
                %v159 = vld [vmem:[%s145 + $0x48] sm:%s138]
                %160 = vst [vmem:[%s146 + $0x18] sm:%s138] %v159
                %v161 = vld [vmem:[%s145 + $0x54] sm:%s138]
                %162 = vst [vmem:[%s146 + $0x1c] sm:%s138] %v161
                %v163 = vld [vmem:[%s145 + $0x60] sm:%s138]
                %164 = vst [vmem:[%s146 + $0x20] sm:%s138] %v163
                %v165 = vld [vmem:[%s145 + $0x6c] sm:%s138]
                %166 = vst [vmem:[%s146 + $0x24] sm:%s138] %v165
                %v167 = vld [vmem:[%s145 + $0x78] sm:%s138]
                %168 = vst [vmem:[%s146 + $0x28] sm:%s138] %v167
                %v169 = vld [vmem:[%s145 + $0x84] sm:%s138]
                %170 = vst [vmem:[%s146 + $0x2c] sm:%s138] %v169
                %v171 = vld [vmem:[%s145 + $0x90] sm:%s138]
                %172 = vst [vmem:[%s146 + $0x30] sm:%s138] %v171
                %v173 = vld [vmem:[%s145 + $0x9c] sm:%s138]
                %174 = vst [vmem:[%s146 + $0x34] sm:%s138] %v173
                %v175 = vld [vmem:[%s145 + $0xa8] sm:%s138]
                %176 = vst [vmem:[%s146 + $0x38] sm:%s138] %v175
                %v177 = vld [vmem:[%s145 + $0xb4] sm:%s138]
                %178 = vst [vmem:[%s146 + $0x3c] sm:%s138] %v177
              $region37: #{wavelet2_forward.8} parent=31 // loop_footer
                %s144 = sadd.s32 1, %s140
              $region38: #{wavelet2_forward.8} parent=31 // loop_footer_branch
                %139 = sbr.rel target = $region34
              $region39: #{wavelet2_forward.8} parent=31 // loop_exit
                _
            $region32: #{wavelet2_forward.8} parent=23 // pred_fallthru
              _
          $region24: #{wavelet2_forward.8} parent=19 // pred_fallthru
            _
          %231 = vnop
        $region20: #{wavelet2_forward.8} parent=15 // pred_fallthru
          _
        // Predicated region
        $region58: #{wavelet2_forward.8} parent=15 // pred_check
          %p232 = pneg %p68
        $region59: #{wavelet2_forward.8} parent=15 // pred_check_branch
          %234 = sbr.rel (%p232) target = $region61
        $region60: #{wavelet2_forward.8} parent=15 // pred_region
          %s235 = smul.u32 16, %s16
          %p236 = scmp.lt.s32.totalorder %s235, 47
          %s237 = scalar_select %p236, %s235, 47
          %s238 = smul.addr %s237, 4
          %s239 = scalar_lea.vmem %s1, %s238
          %s240 = smul.u32 16, %s16
        $region61: #{wavelet2_forward.8} parent=15 // pred_fallthru
          _
      $region16: #{wavelet2_forward.8} parent=5 // pred_fallthru
        _
      %p241 = scmp.le.s32.totalorder 1, %s8
      %p242 = scmp.lt.s32.totalorder %s8, 10
      %p243 = pnand %p241, %p242
      %p244 = pneg %p243
      // Predicated region
      $region62: #{wavelet2_forward.8} parent=5 // pred_check
        _
      $region63: #{wavelet2_forward.8} parent=5 // pred_check_branch
        %246 = sbr.rel (%p243) target = $region65
      $region64: #{wavelet2_forward.8} parent=5 // pred_region
        %s247 = ssub.s32 %s8, 1
        %s248 = sand.u32 %s35, 1
        %s249 = sand.u32 %s35, 1
        %s250 = smul.addr %s249, 64
        %s251 = scalar_lea.vmem [#allocation3], %s250
        // Predicated region
        $region66: #{wavelet2_forward.8} parent=64 // pred_check
          %p252 = pneg %p48
        $region67: #{wavelet2_forward.8} parent=64 // pred_check_branch
          %254 = sbr.rel (%p252) target = $region69
        $region68: #{wavelet2_forward.8} parent=64 // pred_region
          _
        $region69: #{wavelet2_forward.8} parent=64 // pred_fallthru
          _
        %s255 = sand.u32 %s35, 1
        %s256 = sand.u32 %s35, 1
        %s257 = smul.addr %s256, 64
        %s258 = scalar_lea.vmem [#allocation3], %s257
        %p259 = pneg %p48
        %p260 = pneg %p45
        %s261 = smul.u32 16, %s18
        %p262 = scmp.lt.s32.totalorder %s261, 47
        %s263 = scalar_select %p262, %s261, 47
        %s264 = smul.addr %s263, 4
        %s265 = scalar_lea.vmem %s1, %s264
        %p266 = pneg %p74
        %p267 = pneg %p71
        %p268 = pneg %p100
        %p269 = pneg %p97
        %s270 = smul.u32 16, %s17
        %p271 = scmp.lt.s32.totalorder %s270, 47
        %s272 = scalar_select %p271, %s270, 47
        %s273 = smul.addr %s272, 4
        %s274 = scalar_lea.vmem %s2, %s273
        %s275 = smul.u32 16, %s17
        %s276 = smul.u32 16, %s18
        %p277 = scmp.lt.s32.totalorder %s276, 47
        %s278 = scalar_select %p277, %s276, 47
        %s279 = smul.addr %s278, 4
        %s280 = scalar_lea.vmem %s1, %s279
        %s281 = smul.u32 16, %s18
        %s282 = smul.u32 16, %s17
        %p283 = scmp.lt.s32.totalorder %s282, 47
        %s284 = scalar_select %p283, %s282, 47
        %s285 = smul.addr %s284, 4
        %s286 = scalar_lea.vmem %s2, %s285
        %s287 = smul.u32 16, %s17
        %p288 = scmp.eq.s32.totalorder %s18, 0
        // Predicated region
        $region70: #{wavelet2_forward.8} parent=64 // pred_check
          %p289 = pneg %p288
        $region71: #{wavelet2_forward.8} parent=64 // pred_check_branch
          %291 = sbr.rel (%p289) target = $region73
        $region72: #{wavelet2_forward.8} parent=64 // pred_region
          %292 = vst [vmem:[#allocation2] sm:$0xff] 0.0
          %293 = vst [vmem:[#allocation2 + $0x8] sm:$0xff] 0.0
          %294 = vst [vmem:[#allocation2 + $0x10] sm:$0xff] 0.0
          %295 = vst [vmem:[#allocation2 + $0x18] sm:$0xff] 0.0
          %296 = vst [vmem:[#allocation2 + $0x20] sm:$0xff] 0.0
          %297 = vst [vmem:[#allocation2 + $0x28] sm:$0xff] 0.0
          %298 = vst [vmem:[#allocation2 + $0x30] sm:$0xff] 0.0
          %299 = vst [vmem:[#allocation2 + $0x38] sm:$0xff] 0.0
          %300 = vst [vmem:[#allocation2 + $0x40] sm:$0xff] 0.0
          %301 = vst [vmem:[#allocation2 + $0x48] sm:$0xff] 0.0
          %302 = vst [vmem:[#allocation2 + $0x50] sm:$0xff] 0.0
          %303 = vst [vmem:[#allocation2 + $0x58] sm:$0xff] 0.0
          %304 = vst [vmem:[#allocation2 + $0x60] sm:$0xff] 0.0
          %305 = vst [vmem:[#allocation2 + $0x68] sm:$0xff] 0.0
          %306 = vst [vmem:[#allocation2 + $0x70] sm:$0xff] 0.0
          %307 = vst [vmem:[#allocation2 + $0x78] sm:$0xff] 0.0
        $region73: #{wavelet2_forward.8} parent=64 // pred_fallthru
          _
        %v308 = vld [vmem:[#allocation2] sm:$0xff]
        %v309 = vld [vmem:[#allocation2 + $0x8] sm:$0xff]
        %v310 = vld [vmem:[#allocation2 + $0x10] sm:$0xff]
        %v311 = vld [vmem:[#allocation2 + $0x18] sm:$0xff]
        %v312 = vld [vmem:[#allocation2 + $0x20] sm:$0xff]
        %v313 = vld [vmem:[#allocation2 + $0x28] sm:$0xff]
        %v314 = vld [vmem:[#allocation2 + $0x30] sm:$0xff]
        %v315 = vld [vmem:[#allocation2 + $0x38] sm:$0xff]
        %v316 = vld [vmem:[#allocation2 + $0x40] sm:$0xff]
        %v317 = vld [vmem:[#allocation2 + $0x48] sm:$0xff]
        %v318 = vld [vmem:[#allocation2 + $0x50] sm:$0xff]
        %v319 = vld [vmem:[#allocation2 + $0x58] sm:$0xff]
        %v320 = vld [vmem:[#allocation2 + $0x60] sm:$0xff]
        %v321 = vld [vmem:[#allocation2 + $0x68] sm:$0xff]
        %v322 = vld [vmem:[#allocation2 + $0x70] sm:$0xff]
        %v323 = vld [vmem:[#allocation2 + $0x78] sm:$0xff]
        %v324 = vld [vmem:[%s251] sm:$0xf]
        %v325 = vld [vmem:[%s251 + $0x4] sm:$0xf]
        %v326 = vld [vmem:[%s251 + $0x8] sm:$0xf]
        %v327 = vld [vmem:[%s251 + $0xc] sm:$0xf]
        %v328 = vld [vmem:[%s251 + $0x10] sm:$0xf]
        %v329 = vld [vmem:[%s251 + $0x14] sm:$0xf]
        %v330 = vld [vmem:[%s251 + $0x18] sm:$0xf]
        %v331 = vld [vmem:[%s251 + $0x1c] sm:$0xf]
        %v332 = vld [vmem:[%s251 + $0x20] sm:$0xf]
        %v333 = vld [vmem:[%s251 + $0x24] sm:$0xf]
        %v334 = vld [vmem:[%s251 + $0x28] sm:$0xf]
        %v335 = vld [vmem:[%s251 + $0x2c] sm:$0xf]
        %v336 = vld [vmem:[%s251 + $0x30] sm:$0xf]
        %v337 = vld [vmem:[%s251 + $0x34] sm:$0xf]
        %v338 = vld [vmem:[%s251 + $0x38] sm:$0xf]
        %v339 = vld [vmem:[%s251 + $0x3c] sm:$0xf]
        %v340 = vld [vmem:[%s280] sm:$0xf]
        %v341 = vld [vmem:[%s280 + $0x4] sm:$0xf]
        %v342 = vld [vmem:[%s280 + $0x8] sm:$0xf]
        %v343 = vld [vmem:[%s280 + $0xc] sm:$0xf]
        %v344 = vld [vmem:[%s280 + $0x10] sm:$0xf]
        %v345 = vld [vmem:[%s280 + $0x14] sm:$0xf]
        %v346 = vld [vmem:[%s280 + $0x18] sm:$0xf]
        %v347 = vld [vmem:[%s280 + $0x1c] sm:$0xf]
        %v348 = vld [vmem:[%s280 + $0x20] sm:$0xf]
        %v349 = vld [vmem:[%s280 + $0x24] sm:$0xf]
        %v350 = vld [vmem:[%s280 + $0x28] sm:$0xf]
        %v351 = vld [vmem:[%s280 + $0x2c] sm:$0xf]
        %v352 = vld [vmem:[%s280 + $0x30] sm:$0xf]
        %v353 = vld [vmem:[%s280 + $0x34] sm:$0xf]
        %v354 = vld [vmem:[%s280 + $0x38] sm:$0xf]
        %v355 = vld [vmem:[%s280 + $0x3c] sm:$0xf]
        %v372 = vunpack.c.l.b16 %v324
        %v373 = vunpack.c.l.b16 %v325
        %v374 = vunpack.c.l.b16 %v326
        %v375 = vunpack.c.l.b16 %v327
        %v376 = vunpack.c.l.b16 %v328
        %v377 = vunpack.c.l.b16 %v329
        %v378 = vunpack.c.l.b16 %v330
        %v379 = vunpack.c.l.b16 %v331
        %v380 = vunpack.c.l.b16 %v332
        %v381 = vunpack.c.l.b16 %v333
        %v382 = vunpack.c.l.b16 %v334
        %v383 = vunpack.c.l.b16 %v335
        %v384 = vunpack.c.l.b16 %v336
        %v385 = vunpack.c.l.b16 %v337
        %v386 = vunpack.c.l.b16 %v338
        %v387 = vunpack.c.l.b16 %v339
        %v388 = vpack.c.b16 %v373, %v372
        %v389 = vpack.c.b16 %v375, %v374
        %v390 = vpack.c.b16 %v377, %v376
        %v391 = vpack.c.b16 %v379, %v378
        %v392 = vpack.c.b16 %v381, %v380
        %v393 = vpack.c.b16 %v383, %v382
        %v394 = vpack.c.b16 %v385, %v384
        %v395 = vpack.c.b16 %v387, %v386
        %v420 = vunpack.c.l.b16 %v340
        %v421 = vunpack.c.l.b16 %v341
        %v422 = vunpack.c.l.b16 %v342
        %v423 = vunpack.c.l.b16 %v343
        %v424 = vunpack.c.l.b16 %v344
        %v425 = vunpack.c.l.b16 %v345
        %v426 = vunpack.c.l.b16 %v346
        %v427 = vunpack.c.l.b16 %v347
        %v428 = vunpack.c.l.b16 %v348
        %v429 = vunpack.c.l.b16 %v349
        %v430 = vunpack.c.l.b16 %v350
        %v431 = vunpack.c.l.b16 %v351
        %v432 = vunpack.c.l.b16 %v352
        %v433 = vunpack.c.l.b16 %v353
        %v434 = vunpack.c.l.b16 %v354
        %v435 = vunpack.c.l.b16 %v355
        %v436 = vpack.c.b16 %v421, %v420
        %v437 = vpack.c.b16 %v423, %v422
        %v438 = vpack.c.b16 %v425, %v424
        %v439 = vpack.c.b16 %v427, %v426
        %v440 = vpack.c.b16 %v429, %v428
        %v441 = vpack.c.b16 %v431, %v430
        %v442 = vpack.c.b16 %v433, %v432
        %v443 = vpack.c.b16 %v435, %v434
        %452 = vmatpush.bf16.msra.mxu0 %v443
        %453 = vmatpush.bf16.msra.mxu0 %v442
        %454 = vmatpush.bf16.msra.mxu0 %v441
        %455 = vmatpush.bf16.msra.mxu0 %v440
        %456 = vmatpush.bf16.msra.mxu0 %v439
        %457 = vmatpush.bf16.msra.mxu0 %v438
        %458 = vmatpush.bf16.msra.mxu0 %v437
        %459 = vmatpush.bf16.msra.mxu0 %v436
        %460 = vmatmul.bf16.gmra.mxu0 %v388
        %v461 = vpop.f32.mrf.mxu0
        %v462 = vadd.f32 0.0, %v461
        %v463 = vpop.f32.mrf.mxu0
        %v464 = vadd.f32 0.0, %v463
        %465 = vmatmul.bf16.gmra.mxu0 %v389
        %v466 = vpop.f32.mrf.mxu0
        %v467 = vadd.f32 0.0, %v466
        %v468 = vpop.f32.mrf.mxu0
        %v469 = vadd.f32 0.0, %v468
        %470 = vmatmul.bf16.gmra.mxu0 %v390
        %v471 = vpop.f32.mrf.mxu0
        %v472 = vadd.f32 0.0, %v471
        %v473 = vpop.f32.mrf.mxu0
        %v474 = vadd.f32 0.0, %v473
        %475 = vmatmul.bf16.gmra.mxu0 %v391
        %v476 = vpop.f32.mrf.mxu0
        %v477 = vadd.f32 0.0, %v476
        %v478 = vpop.f32.mrf.mxu0
        %v479 = vadd.f32 0.0, %v478
        %480 = vmatmul.bf16.gmra.mxu0 %v392
        %v481 = vpop.f32.mrf.mxu0
        %v482 = vadd.f32 0.0, %v481
        %v483 = vpop.f32.mrf.mxu0
        %v484 = vadd.f32 0.0, %v483
        %485 = vmatmul.bf16.gmra.mxu0 %v393
        %v486 = vpop.f32.mrf.mxu0
        %v487 = vadd.f32 0.0, %v486
        %v488 = vpop.f32.mrf.mxu0
        %v489 = vadd.f32 0.0, %v488
        %490 = vmatmul.bf16.gmra.mxu0 %v394
        %v491 = vpop.f32.mrf.mxu0
        %v492 = vadd.f32 0.0, %v491
        %v493 = vpop.f32.mrf.mxu0
        %v494 = vadd.f32 0.0, %v493
        %495 = vmatmul.bf16.gmra.mxu0 %v395
        %v496 = vpop.f32.mrf.mxu0
        %v497 = vadd.f32 0.0, %v496
        %v498 = vpop.f32.mrf.mxu0
        %v499 = vadd.f32 0.0, %v498
        %500 = vdwg.mxu0
        %v501 = vadd.f32 %v308, %v462
        %v502 = vadd.f32 %v309, %v464
        %v503 = vadd.f32 %v310, %v467
        %v504 = vadd.f32 %v311, %v469
        %v505 = vadd.f32 %v312, %v472
        %v506 = vadd.f32 %v313, %v474
        %v507 = vadd.f32 %v314, %v477
        %v508 = vadd.f32 %v315, %v479
        %v509 = vadd.f32 %v316, %v482
        %v510 = vadd.f32 %v317, %v484
        %v511 = vadd.f32 %v318, %v487
        %v512 = vadd.f32 %v319, %v489
        %v513 = vadd.f32 %v320, %v492
        %v514 = vadd.f32 %v321, %v494
        %v515 = vadd.f32 %v322, %v497
        %v516 = vadd.f32 %v323, %v499
        %517 = vst [vmem:[#allocation2] sm:$0xff] %v501
        %518 = vst [vmem:[#allocation2 + $0x8] sm:$0xff] %v502
        %519 = vst [vmem:[#allocation2 + $0x10] sm:$0xff] %v503
        %520 = vst [vmem:[#allocation2 + $0x18] sm:$0xff] %v504
        %521 = vst [vmem:[#allocation2 + $0x20] sm:$0xff] %v505
        %522 = vst [vmem:[#allocation2 + $0x28] sm:$0xff] %v506
        %523 = vst [vmem:[#allocation2 + $0x30] sm:$0xff] %v507
        %524 = vst [vmem:[#allocation2 + $0x38] sm:$0xff] %v508
        %525 = vst [vmem:[#allocation2 + $0x40] sm:$0xff] %v509
        %526 = vst [vmem:[#allocation2 + $0x48] sm:$0xff] %v510
        %527 = vst [vmem:[#allocation2 + $0x50] sm:$0xff] %v511
        %528 = vst [vmem:[#allocation2 + $0x58] sm:$0xff] %v512
        %529 = vst [vmem:[#allocation2 + $0x60] sm:$0xff] %v513
        %530 = vst [vmem:[#allocation2 + $0x68] sm:$0xff] %v514
        %531 = vst [vmem:[#allocation2 + $0x70] sm:$0xff] %v515
        %532 = vst [vmem:[#allocation2 + $0x78] sm:$0xff] %v516
        %p533 = scmp.eq.s32.totalorder %s18, 2
        // Predicated region
        $region74: #{wavelet2_forward.8} parent=64 // pred_check
          %p534 = pneg %p533
        $region75: #{wavelet2_forward.8} parent=64 // pred_check_branch
          %536 = sbr.rel (%p534) target = $region77
        $region76: #{wavelet2_forward.8} parent=64 // pred_region
          %v537 = vld [vmem:[#allocation2] sm:$0xff]
          %v538 = vld [vmem:[#allocation2 + $0x8] sm:$0xff]
          %v539 = vld [vmem:[#allocation2 + $0x10] sm:$0xff]
          %v540 = vld [vmem:[#allocation2 + $0x18] sm:$0xff]
          %v541 = vld [vmem:[#allocation2 + $0x20] sm:$0xff]
          %v542 = vld [vmem:[#allocation2 + $0x28] sm:$0xff]
          %v543 = vld [vmem:[#allocation2 + $0x30] sm:$0xff]
          %v544 = vld [vmem:[#allocation2 + $0x38] sm:$0xff]
          %v545 = vld [vmem:[#allocation2 + $0x40] sm:$0xff]
          %v546 = vld [vmem:[#allocation2 + $0x48] sm:$0xff]
          %v547 = vld [vmem:[#allocation2 + $0x50] sm:$0xff]
          %v548 = vld [vmem:[#allocation2 + $0x58] sm:$0xff]
          %v549 = vld [vmem:[#allocation2 + $0x60] sm:$0xff]
          %v550 = vld [vmem:[#allocation2 + $0x68] sm:$0xff]
          %v551 = vld [vmem:[#allocation2 + $0x70] sm:$0xff]
          %v552 = vld [vmem:[#allocation2 + $0x78] sm:$0xff]
          %v553 = vmax.f32 %v537, 0.0
          %v554 = vmax.f32 %v538, 0.0
          %v555 = vmax.f32 %v539, 0.0
          %v556 = vmax.f32 %v540, 0.0
          %v557 = vmax.f32 %v541, 0.0
          %v558 = vmax.f32 %v542, 0.0
          %v559 = vmax.f32 %v543, 0.0
          %v560 = vmax.f32 %v544, 0.0
          %v561 = vmax.f32 %v545, 0.0
          %v562 = vmax.f32 %v546, 0.0
          %v563 = vmax.f32 %v547, 0.0
          %v564 = vmax.f32 %v548, 0.0
          %v565 = vmax.f32 %v549, 0.0
          %v566 = vmax.f32 %v550, 0.0
          %v567 = vmax.f32 %v551, 0.0
          %v568 = vmax.f32 %v552, 0.0
          %v569 = vpack.c.bf16 %v553, %v553
          %v570 = vpack.c.bf16 %v554, %v554
          %v571 = vpack.c.bf16 %v555, %v555
          %v572 = vpack.c.bf16 %v556, %v556
          %v573 = vpack.c.bf16 %v557, %v557
          %v574 = vpack.c.bf16 %v558, %v558
          %v575 = vpack.c.bf16 %v559, %v559
          %v576 = vpack.c.bf16 %v560, %v560
          %v577 = vpack.c.bf16 %v561, %v561
          %v578 = vpack.c.bf16 %v562, %v562
          %v579 = vpack.c.bf16 %v563, %v563
          %v580 = vpack.c.bf16 %v564, %v564
          %v581 = vpack.c.bf16 %v565, %v565
          %v582 = vpack.c.bf16 %v566, %v566
          %v583 = vpack.c.bf16 %v567, %v567
          %v584 = vpack.c.bf16 %v568, %v568
          %585 = vst [vmem:[%s286] sm:$0xf] %v569
          %586 = vst [vmem:[%s286 + $0x4] sm:$0xf] %v570
          %587 = vst [vmem:[%s286 + $0x8] sm:$0xf] %v571
          %588 = vst [vmem:[%s286 + $0xc] sm:$0xf] %v572
          %589 = vst [vmem:[%s286 + $0x10] sm:$0xf] %v573
          %590 = vst [vmem:[%s286 + $0x14] sm:$0xf] %v574
          %591 = vst [vmem:[%s286 + $0x18] sm:$0xf] %v575
          %592 = vst [vmem:[%s286 + $0x1c] sm:$0xf] %v576
          %593 = vst [vmem:[%s286 + $0x20] sm:$0xf] %v577
          %594 = vst [vmem:[%s286 + $0x24] sm:$0xf] %v578
          %595 = vst [vmem:[%s286 + $0x28] sm:$0xf] %v579
          %596 = vst [vmem:[%s286 + $0x2c] sm:$0xf] %v580
          %597 = vst [vmem:[%s286 + $0x30] sm:$0xf] %v581
          %598 = vst [vmem:[%s286 + $0x34] sm:$0xf] %v582
          %599 = vst [vmem:[%s286 + $0x38] sm:$0xf] %v583
          %600 = vst [vmem:[%s286 + $0x3c] sm:$0xf] %v584
        $region77: #{wavelet2_forward.8} parent=64 // pred_fallthru
          _
        %s601 = smul.u32 16, %s17
        %p602 = scmp.lt.s32.totalorder %s601, 47
        %s603 = scalar_select %p602, %s601, 47
        %s604 = smul.addr %s603, 4
        %s605 = scalar_lea.vmem %s2, %s604
        // Predicated region
        $region78: #{wavelet2_forward.8} parent=64 // pred_check
          %p606 = pneg %p97
        $region79: #{wavelet2_forward.8} parent=64 // pred_check_branch
          %608 = sbr.rel (%p606) target = $region81
        $region80: #{wavelet2_forward.8} parent=64 // pred_region
          %s609 = smul.u32 16, %s17
        $region81: #{wavelet2_forward.8} parent=64 // pred_fallthru
          _
      $region65: #{wavelet2_forward.8} parent=5 // pred_fallthru
        _
      %p610 = scmp.le.s32.totalorder 2, %s8
      // Predicated region
      $region82: #{wavelet2_forward.8} parent=5 // pred_check
        %p611 = pneg %p610
      $region83: #{wavelet2_forward.8} parent=5 // pred_check_branch
        %613 = sbr.rel (%p611) target = $region85
      $region84: #{wavelet2_forward.8} parent=5 // pred_region
        %s614 = ssub.s32 %s8, 2
        // Predicated region
        $region86: #{wavelet2_forward.8} parent=84 // pred_check
          %p615 = pneg %p103
        $region87: #{wavelet2_forward.8} parent=84 // pred_check_branch
          %617 = sbr.rel (%p615) target = $region89
        $region88: #{wavelet2_forward.8} parent=84 // pred_region
          %s618 = smul.u32 16, %s19
          %p619 = scmp.lt.s32.totalorder %s618, 47
          %s620 = scalar_select %p619, %s618, 47
          %s621 = smul.addr %s620, 4
          %s622 = scalar_lea.vmem %s2, %s621
        $region89: #{wavelet2_forward.8} parent=84 // pred_fallthru
          _
      $region85: #{wavelet2_forward.8} parent=5 // pred_fallthru
        _
    $region6: #{wavelet2_forward.8} parent=1 // loop_footer
      %s12 = sadd.s32 1, %s8
    $region7: #{wavelet2_forward.8} parent=1 // loop_footer_branch
      %7 = sbr.rel target = $region3
    $region8: #{wavelet2_forward.8} parent=1 // loop_exit
      _

// kernel: wavelet2_forward.7
$region0: #{wavelet2_forward.7}
  #allocation0 [shape = 'u32[]', space=smem, size = 0x4, offset = 0x4, fixed_abs, tag = 'smem constant byte address 0x4 - core index']
  #allocation1 [shape = 'u32[72,128]{1,0:T(1,128)}', space=vmem, size = 0x9000, scoped, tag = 'internal scratch']
  #allocation2 [shape = 'f32[128,128]{1,0:T(8,128)}', space=vmem, size = 0x10000, scoped, tag = 'scratch operand']
  %s0 = inlined_call_operand.vmem [shape: bf16[384,384], index: 0, kind: input, shape index: {}]
  %s1 = inlined_call_operand.vmem [shape: bf16[384,128], index: 1, kind: input, shape index: {}]
  %s2 = inlined_call_operand.vmem [shape: f32[384,1], index: 2, kind: input, shape index: {}]
  %s3 = inlined_call_operand.vmem [shape: bf16[384,128], index: 3, kind: output, shape index: {}]
  %s4 = sld [smem:[#allocation0]]
  $region94: #{wavelet2_forward.7} parent=0
    _
  %s6 = ssub.s32 1, %s4
  %s7 = scalar_select 0, %s6, %s4
  $region1: #{wavelet2_forward.7} parent=0
    #allocation3 [shape = 'u8[65536]{0}', space=vmem, size = 0x10000, scoped, tag = 'input window, operand 0']
    loop: start=0, step=1, limit=11
    $region2: #{wavelet2_forward.7} parent=1 // loop_pre_header
      _
    $region3: #{wavelet2_forward.7} parent=1 // loop_header
      %s9 = sphi 0, %s13
      %p10 = scmp.ge.s32.totalorder %s9, 11
      %s16 = sphi 0, %s28
      %s17 = sphi 0, %s24
      %s18 = sphi 0, %s16
      %s19 = sphi 0, %s17
      %s20 = sphi 0, %s18
      %s21 = sphi 0, %s19
      %s33 = sphi 0, %s35
      %s36 = sphi 0, %s33
      %s37 = sphi 0, %s36
      %s53 = sphi 0, %s37
      %s59 = sphi 0, %s61
      %s62 = sphi 0, %s59
      %s63 = sphi 0, %s62
      %s79 = sphi 0, %s63
      %s85 = sphi 0, %s87
      %s88 = sphi 0, %s85
      %s89 = sphi 0, %s88
      %s105 = sphi 0, %s89
      %s111 = sphi 0, %s113
      %s114 = sphi 0, %s111
      %s115 = sphi 0, %s114
      %s131 = sphi 0, %s115
    $region4: #{wavelet2_forward.7} parent=1 // loop_header_branch
      %12 = sbr.rel (%p10) target = $region8
    $region5: #{wavelet2_forward.7} parent=1 // loop_body
      %s14 = ssub.s32 %s9, 1
      %s15 = ssub.s32 %s9, 2
      %s22 = sadd.s32 1, %s17
      %p23 = scmp.ge.s32.totalorder %s22, 3
      %s24 = scalar_select %p23, 0, %s22
      %s25 = sadd.s32 1, %s16
      %s26 = scalar_select %p23, %s25, %s16
      %p27 = scmp.ge.s32.totalorder %s26, 3
      %s28 = scalar_select %p27, 0, %s26
      %s29 = ssub.s32 %s16, %s28
      %s30 = ssub.s32 %s17, %s24
      %s31 = sor.u32 %s29, %s30
      %p32 = scmp.eq.s32.totalorder %s31, 0
      %s34 = sadd.s32 %s33, 1
      %s35 = scalar_select %p32, %s33, %s34
      %p38 = pneg %p32
      %p39 = scmp.eq.s32.totalorder %s9, 8
      %p40 = por %p38, %p39
      %p41 = scmp.ne.s32.totalorder %s33, %s36
      %p42 = scmp.eq.s32.totalorder %s9, 0
      %p43 = por %p41, %p42
      %p44 = scmp.ne.s32.totalorder %s33, %s36
      %p45 = scmp.eq.s32.totalorder %s14, 8
      %p46 = por %p44, %p45
      %p47 = scmp.ne.s32.totalorder %s36, %s37
      %p48 = scmp.eq.s32.totalorder %s14, 0
      %p49 = por %p47, %p48
      %p50 = scmp.ne.s32.totalorder %s36, %s37
      %p51 = scmp.eq.s32.totalorder %s15, 8
      %p52 = por %p50, %p51
      %p54 = scmp.ne.s32.totalorder %s37, %s53
      %p55 = scmp.eq.s32.totalorder %s15, 0
      %p56 = por %p54, %p55
      %s57 = ssub.s32 %s17, %s24
      %p58 = scmp.eq.s32.totalorder %s57, 0
      %s60 = sadd.s32 %s59, 1
      %s61 = scalar_select %p58, %s59, %s60
      %p64 = pneg %p58
      %p65 = scmp.eq.s32.totalorder %s9, 8
      %p66 = por %p64, %p65
      %p67 = scmp.ne.s32.totalorder %s59, %s62
      %p68 = scmp.eq.s32.totalorder %s9, 0
      %p69 = por %p67, %p68
      %p70 = scmp.ne.s32.totalorder %s59, %s62
      %p71 = scmp.eq.s32.totalorder %s14, 8
      %p72 = por %p70, %p71
      %p73 = scmp.ne.s32.totalorder %s62, %s63
      %p74 = scmp.eq.s32.totalorder %s14, 0
      %p75 = por %p73, %p74
      %p76 = scmp.ne.s32.totalorder %s62, %s63
      %p77 = scmp.eq.s32.totalorder %s15, 8
      %p78 = por %p76, %p77
      %p80 = scmp.ne.s32.totalorder %s63, %s79
      %p81 = scmp.eq.s32.totalorder %s15, 0
      %p82 = por %p80, %p81
      %s83 = ssub.s32 %s16, %s28
      %p84 = scmp.eq.s32.totalorder %s83, 0
      %s86 = sadd.s32 %s85, 1
      %s87 = scalar_select %p84, %s85, %s86
      %p90 = pneg %p84
      %p91 = scmp.eq.s32.totalorder %s9, 8
      %p92 = por %p90, %p91
      %p93 = scmp.ne.s32.totalorder %s85, %s88
      %p94 = scmp.eq.s32.totalorder %s9, 0
      %p95 = por %p93, %p94
      %p96 = scmp.ne.s32.totalorder %s85, %s88
      %p97 = scmp.eq.s32.totalorder %s14, 8
      %p98 = por %p96, %p97
      %p99 = scmp.ne.s32.totalorder %s88, %s89
      %p100 = scmp.eq.s32.totalorder %s14, 0
      %p101 = por %p99, %p100
      %p102 = scmp.ne.s32.totalorder %s88, %s89
      %p103 = scmp.eq.s32.totalorder %s15, 8
      %p104 = por %p102, %p103
      %p106 = scmp.ne.s32.totalorder %s89, %s105
      %p107 = scmp.eq.s32.totalorder %s15, 0
      %p108 = por %p106, %p107
      %s109 = ssub.s32 %s16, %s28
      %p110 = scmp.eq.s32.totalorder %s109, 0
      %s112 = sadd.s32 %s111, 1
      %s113 = scalar_select %p110, %s111, %s112
      %p116 = pneg %p110
      %p117 = scmp.eq.s32.totalorder %s9, 8
      %p118 = por %p116, %p117
      %p119 = scmp.ne.s32.totalorder %s111, %s114
      %p120 = scmp.eq.s32.totalorder %s9, 0
      %p121 = por %p119, %p120
      %p122 = scmp.ne.s32.totalorder %s111, %s114
      %p123 = scmp.eq.s32.totalorder %s14, 8
      %p124 = por %p122, %p123
      %p125 = scmp.ne.s32.totalorder %s114, %s115
      %p126 = scmp.eq.s32.totalorder %s14, 0
      %p127 = por %p125, %p126
      %p128 = scmp.ne.s32.totalorder %s114, %s115
      %p129 = scmp.eq.s32.totalorder %s15, 8
      %p130 = por %p128, %p129
      %p132 = scmp.ne.s32.totalorder %s115, %s131
      %p133 = scmp.eq.s32.totalorder %s15, 0
      %p134 = por %p132, %p133
      %p135 = scmp.le.s32.totalorder 1, %s9
      %p136 = scmp.lt.s32.totalorder %s9, 10
      %p137 = pnand %p135, %p136
      %p138 = pneg %p137
      // Predicated region
      $region9: #{wavelet2_forward.7} parent=5 // pred_check
        _
      $region10: #{wavelet2_forward.7} parent=5 // pred_check_branch
        %140 = sbr.rel (%p137) target = $region12
      $region11: #{wavelet2_forward.7} parent=5 // pred_region
        %s141 = ssub.s32 %s9, 1
      $region12: #{wavelet2_forward.7} parent=5 // pred_fallthru
        _
      %p142 = scmp.lt.s32.totalorder %s9, 9
      // Predicated region
      $region13: #{wavelet2_forward.7} parent=5 // pred_check
        %p143 = pneg %p142
      $region14: #{wavelet2_forward.7} parent=5 // pred_check_branch
        %145 = sbr.rel (%p143) target = $region16
      $region15: #{wavelet2_forward.7} parent=5 // pred_region
        // Predicated region
        $region17: #{wavelet2_forward.7} parent=15 // pred_check
          %p146 = pneg %p43
        $region18: #{wavelet2_forward.7} parent=15 // pred_check_branch
          %148 = sbr.rel (%p146) target = $region20
        $region19: #{wavelet2_forward.7} parent=15 // pred_region
          %s149 = sand.u32 %s33, 1
          %s150 = sand.u32 %s33, 1
          %s151 = smul.addr %s150, 64
          %s152 = scalar_lea.vmem [#allocation3], %s151
          %s153 = smul.u32 16, %s16
          %s154 = smul.addr %s153, 3
          %s155 = sadd.s32 %s17, %s154
          %s156 = smul.addr %s155, 4
          %s157 = scalar_lea.vmem %s0, %s156
          // Predicated region
          $region21: #{wavelet2_forward.7} parent=19 // pred_check
            _
          $region22: #{wavelet2_forward.7} parent=19 // pred_check_branch
            %159 = sbr.rel (0) target = $region24
          $region23: #{wavelet2_forward.7} parent=19 // pred_region
            // Predicated region
            $region25: #{wavelet2_forward.7} parent=23 // pred_check
              _
            $region26: #{wavelet2_forward.7} parent=23 // pred_check_branch
              %161 = sbr.rel target = $region28
            $region27: #{wavelet2_forward.7} parent=23 // pred_region
              // Predicated region
              $region40: #{wavelet2_forward.7} parent=27 // pred_check
                _
              $region41: #{wavelet2_forward.7} parent=27 // pred_check_branch
                %207 = sbr.rel (0) target = $region43
              $region42: #{wavelet2_forward.7} parent=27 // pred_region
                loop: start=0, step=1, limit=1
                $region44: #{wavelet2_forward.7} parent=42 // loop_pre_header
                  _
                $region45: #{wavelet2_forward.7} parent=42 // loop_header
                  %s209 = sphi 0, %s213
                  %p210 = scmp.ge.s32.totalorder %s209, 1
                  %s214 = sphi %s157, %s157
                  %s215 = sphi %s152, %s152
                $region46: #{wavelet2_forward.7} parent=42 // loop_header_branch
                  %212 = sbr.rel (%p210) target = $region50
                $region47: #{wavelet2_forward.7} parent=42 // loop_body
                  _
                $region48: #{wavelet2_forward.7} parent=42 // loop_footer
                  %s213 = sadd.s32 1, %s209
                $region49: #{wavelet2_forward.7} parent=42 // loop_footer_branch
                  %208 = sbr.rel target = $region45
                $region50: #{wavelet2_forward.7} parent=42 // loop_exit
                  _
                %s217 = ssub.s32 16, 1
                loop: start=0, step=1, limit=1
                $region51: #{wavelet2_forward.7} parent=42 // loop_pre_header
                  _
                $region52: #{wavelet2_forward.7} parent=42 // loop_header
                  %s219 = sphi 0, %s223
                  %p220 = scmp.ge.s32.totalorder %s219, 1
                  %s224 = sphi %s157, %s157
                  %s225 = sphi %s152, %s152
                $region53: #{wavelet2_forward.7} parent=42 // loop_header_branch
                  %222 = sbr.rel (%p220) target = $region57
                $region54: #{wavelet2_forward.7} parent=42 // loop_body
                  %v226 = vld [vmem:[%s224] sm:%s217]
                  %227 = vst [vmem:[%s225] sm:%s217] %v226
                  %v228 = vld [vmem:[%s224 + $0xc] sm:%s217]
                  %229 = vst [vmem:[%s225 + $0x4] sm:%s217] %v228
                  %v230 = vld [vmem:[%s224 + $0x18] sm:%s217]
                  %231 = vst [vmem:[%s225 + $0x8] sm:%s217] %v230
                  %v232 = vld [vmem:[%s224 + $0x24] sm:%s217]
                  %233 = vst [vmem:[%s225 + $0xc] sm:%s217] %v232
                  %v234 = vld [vmem:[%s224 + $0x30] sm:%s217]
                  %235 = vst [vmem:[%s225 + $0x10] sm:%s217] %v234
                  %v236 = vld [vmem:[%s224 + $0x3c] sm:%s217]
                  %237 = vst [vmem:[%s225 + $0x14] sm:%s217] %v236
                  %v238 = vld [vmem:[%s224 + $0x48] sm:%s217]
                  %239 = vst [vmem:[%s225 + $0x18] sm:%s217] %v238
                  %v240 = vld [vmem:[%s224 + $0x54] sm:%s217]
                  %241 = vst [vmem:[%s225 + $0x1c] sm:%s217] %v240
                  %v242 = vld [vmem:[%s224 + $0x60] sm:%s217]
                  %243 = vst [vmem:[%s225 + $0x20] sm:%s217] %v242
                  %v244 = vld [vmem:[%s224 + $0x6c] sm:%s217]
                  %245 = vst [vmem:[%s225 + $0x24] sm:%s217] %v244
                  %v246 = vld [vmem:[%s224 + $0x78] sm:%s217]
                  %247 = vst [vmem:[%s225 + $0x28] sm:%s217] %v246
                  %v248 = vld [vmem:[%s224 + $0x84] sm:%s217]
                  %249 = vst [vmem:[%s225 + $0x2c] sm:%s217] %v248
                  %v250 = vld [vmem:[%s224 + $0x90] sm:%s217]
                  %251 = vst [vmem:[%s225 + $0x30] sm:%s217] %v250
                  %v252 = vld [vmem:[%s224 + $0x9c] sm:%s217]
                  %253 = vst [vmem:[%s225 + $0x34] sm:%s217] %v252
                  %v254 = vld [vmem:[%s224 + $0xa8] sm:%s217]
                  %255 = vst [vmem:[%s225 + $0x38] sm:%s217] %v254
                  %v256 = vld [vmem:[%s224 + $0xb4] sm:%s217]
                  %257 = vst [vmem:[%s225 + $0x3c] sm:%s217] %v256
                $region55: #{wavelet2_forward.7} parent=42 // loop_footer
                  %s223 = sadd.s32 1, %s219
                $region56: #{wavelet2_forward.7} parent=42 // loop_footer_branch
                  %218 = sbr.rel target = $region52
                $region57: #{wavelet2_forward.7} parent=42 // loop_exit
                  _
              $region43: #{wavelet2_forward.7} parent=27 // pred_fallthru
                _
            $region28: #{wavelet2_forward.7} parent=23 // pred_fallthru
              _
            // Predicated region
            $region29: #{wavelet2_forward.7} parent=23 // pred_check
              _
            $region30: #{wavelet2_forward.7} parent=23 // pred_check_branch
              %163 = sbr.rel (0) target = $region32
            $region31: #{wavelet2_forward.7} parent=23 // pred_region
              %s165 = ssub.s32 16, 1
              loop: start=0, step=1, limit=1
              $region33: #{wavelet2_forward.7} parent=31 // loop_pre_header
                _
              $region34: #{wavelet2_forward.7} parent=31 // loop_header
                %s167 = sphi 0, %s171
                %p168 = scmp.ge.s32.totalorder %s167, 1
                %s172 = sphi %s157, %s157
                %s173 = sphi %s152, %s152
              $region35: #{wavelet2_forward.7} parent=31 // loop_header_branch
                %170 = sbr.rel (%p168) target = $region39
              $region36: #{wavelet2_forward.7} parent=31 // loop_body
                %v174 = vld [vmem:[%s172] sm:%s165]
                %175 = vst [vmem:[%s173] sm:%s165] %v174
                %v176 = vld [vmem:[%s172 + $0xc] sm:%s165]
                %177 = vst [vmem:[%s173 + $0x4] sm:%s165] %v176
                %v178 = vld [vmem:[%s172 + $0x18] sm:%s165]
                %179 = vst [vmem:[%s173 + $0x8] sm:%s165] %v178
                %v180 = vld [vmem:[%s172 + $0x24] sm:%s165]
                %181 = vst [vmem:[%s173 + $0xc] sm:%s165] %v180
                %v182 = vld [vmem:[%s172 + $0x30] sm:%s165]
                %183 = vst [vmem:[%s173 + $0x10] sm:%s165] %v182
                %v184 = vld [vmem:[%s172 + $0x3c] sm:%s165]
                %185 = vst [vmem:[%s173 + $0x14] sm:%s165] %v184
                %v186 = vld [vmem:[%s172 + $0x48] sm:%s165]
                %187 = vst [vmem:[%s173 + $0x18] sm:%s165] %v186
                %v188 = vld [vmem:[%s172 + $0x54] sm:%s165]
                %189 = vst [vmem:[%s173 + $0x1c] sm:%s165] %v188
                %v190 = vld [vmem:[%s172 + $0x60] sm:%s165]
                %191 = vst [vmem:[%s173 + $0x20] sm:%s165] %v190
                %v192 = vld [vmem:[%s172 + $0x6c] sm:%s165]
                %193 = vst [vmem:[%s173 + $0x24] sm:%s165] %v192
                %v194 = vld [vmem:[%s172 + $0x78] sm:%s165]
                %195 = vst [vmem:[%s173 + $0x28] sm:%s165] %v194
                %v196 = vld [vmem:[%s172 + $0x84] sm:%s165]
                %197 = vst [vmem:[%s173 + $0x2c] sm:%s165] %v196
                %v198 = vld [vmem:[%s172 + $0x90] sm:%s165]
                %199 = vst [vmem:[%s173 + $0x30] sm:%s165] %v198
                %v200 = vld [vmem:[%s172 + $0x9c] sm:%s165]
                %201 = vst [vmem:[%s173 + $0x34] sm:%s165] %v200
                %v202 = vld [vmem:[%s172 + $0xa8] sm:%s165]
                %203 = vst [vmem:[%s173 + $0x38] sm:%s165] %v202
                %v204 = vld [vmem:[%s172 + $0xb4] sm:%s165]
                %205 = vst [vmem:[%s173 + $0x3c] sm:%s165] %v204
              $region37: #{wavelet2_forward.7} parent=31 // loop_footer
                %s171 = sadd.s32 1, %s167
              $region38: #{wavelet2_forward.7} parent=31 // loop_footer_branch
                %166 = sbr.rel target = $region34
              $region39: #{wavelet2_forward.7} parent=31 // loop_exit
                _
            $region32: #{wavelet2_forward.7} parent=23 // pred_fallthru
              _
          $region24: #{wavelet2_forward.7} parent=19 // pred_fallthru
            _
          %258 = vnop
        $region20: #{wavelet2_forward.7} parent=15 // pred_fallthru
          _
        // Predicated region
        $region58: #{wavelet2_forward.7} parent=15 // pred_check
          %p259 = pneg %p69
        $region59: #{wavelet2_forward.7} parent=15 // pred_check_branch
          %261 = sbr.rel (%p259) target = $region61
        $region60: #{wavelet2_forward.7} parent=15 // pred_region
          %s262 = smul.u32 16, %s17
          %p263 = scmp.lt.s32.totalorder %s262, 47
          %s264 = scalar_select %p263, %s262, 47
          %s265 = smul.addr %s264, 4
          %s266 = scalar_lea.vmem %s1, %s265
          %s267 = smul.u32 16, %s17
        $region61: #{wavelet2_forward.7} parent=15 // pred_fallthru
          _
        // Predicated region
        $region62: #{wavelet2_forward.7} parent=15 // pred_check
          %p268 = pneg %p95
        $region63: #{wavelet2_forward.7} parent=15 // pred_check_branch
          %270 = sbr.rel (%p268) target = $region65
        $region64: #{wavelet2_forward.7} parent=15 // pred_region
          %s271 = smul.u32 16, %s16
          %p272 = scmp.lt.s32.totalorder %s271, 47
          %s273 = scalar_select %p272, %s271, 47
          %s274 = smul.addr %s273, 8
          %s275 = scalar_lea.vmem %s2, %s274
          %s276 = smul.u32 16, %s16
        $region65: #{wavelet2_forward.7} parent=15 // pred_fallthru
          _
      $region16: #{wavelet2_forward.7} parent=5 // pred_fallthru
        _
      %p277 = scmp.le.s32.totalorder 1, %s9
      %p278 = scmp.lt.s32.totalorder %s9, 10
      %p279 = pnand %p277, %p278
      %p280 = pneg %p279
      // Predicated region
      $region66: #{wavelet2_forward.7} parent=5 // pred_check
        _
      $region67: #{wavelet2_forward.7} parent=5 // pred_check_branch
        %282 = sbr.rel (%p279) target = $region69
      $region68: #{wavelet2_forward.7} parent=5 // pred_region
        %s283 = ssub.s32 %s9, 1
        %s284 = sand.u32 %s36, 1
        %s285 = sand.u32 %s36, 1
        %s286 = smul.addr %s285, 64
        %s287 = scalar_lea.vmem [#allocation3], %s286
        // Predicated region
        $region70: #{wavelet2_forward.7} parent=68 // pred_check
          %p288 = pneg %p49
        $region71: #{wavelet2_forward.7} parent=68 // pred_check_branch
          %290 = sbr.rel (%p288) target = $region73
        $region72: #{wavelet2_forward.7} parent=68 // pred_region
          _
        $region73: #{wavelet2_forward.7} parent=68 // pred_fallthru
          _
        %s291 = sand.u32 %s36, 1
        %s292 = sand.u32 %s36, 1
        %s293 = smul.addr %s292, 64
        %s294 = scalar_lea.vmem [#allocation3], %s293
        %p295 = pneg %p49
        %p296 = pneg %p46
        %s297 = smul.u32 16, %s19
        %p298 = scmp.lt.s32.totalorder %s297, 47
        %s299 = scalar_select %p298, %s297, 47
        %s300 = smul.addr %s299, 4
        %s301 = scalar_lea.vmem %s1, %s300
        %p302 = pneg %p75
        %p303 = pneg %p72
        %s304 = smul.u32 16, %s18
        %p305 = scmp.lt.s32.totalorder %s304, 47
        %s306 = scalar_select %p305, %s304, 47
        %s307 = smul.addr %s306, 8
        %s308 = scalar_lea.vmem %s2, %s307
        %p309 = pneg %p101
        %p310 = pneg %p98
        %p311 = pneg %p127
        %p312 = pneg %p124
        %s313 = smul.u32 16, %s18
        %p314 = scmp.lt.s32.totalorder %s313, 47
        %s315 = scalar_select %p314, %s313, 47
        %s316 = smul.addr %s315, 4
        %s317 = scalar_lea.vmem %s3, %s316
        %s318 = smul.u32 16, %s18
        %s319 = smul.u32 16, %s19
        %p320 = scmp.lt.s32.totalorder %s319, 47
        %s321 = scalar_select %p320, %s319, 47
        %s322 = smul.addr %s321, 4
        %s323 = scalar_lea.vmem %s1, %s322
        %s324 = smul.u32 16, %s19
        %s325 = smul.u32 16, %s18
        %p326 = scmp.lt.s32.totalorder %s325, 47
        %s327 = scalar_select %p326, %s325, 47
        %s328 = smul.addr %s327, 8
        %s329 = scalar_lea.vmem %s2, %s328
        %s330 = smul.u32 16, %s18
        %s331 = smul.u32 16, %s18
        %p332 = scmp.lt.s32.totalorder %s331, 47
        %s333 = scalar_select %p332, %s331, 47
        %s334 = smul.addr %s333, 4
        %s335 = scalar_lea.vmem %s3, %s334
        %s336 = smul.u32 16, %s18
        %p337 = scmp.eq.s32.totalorder %s19, 0
        // Predicated region
        $region74: #{wavelet2_forward.7} parent=68 // pred_check
          %p338 = pneg %p337
        $region75: #{wavelet2_forward.7} parent=68 // pred_check_branch
          %340 = sbr.rel (%p338) target = $region77
        $region76: #{wavelet2_forward.7} parent=68 // pred_region
          %341 = vst [vmem:[#allocation2] sm:$0xff] 0.0
          %342 = vst [vmem:[#allocation2 + $0x8] sm:$0xff] 0.0
          %343 = vst [vmem:[#allocation2 + $0x10] sm:$0xff] 0.0
          %344 = vst [vmem:[#allocation2 + $0x18] sm:$0xff] 0.0
          %345 = vst [vmem:[#allocation2 + $0x20] sm:$0xff] 0.0
          %346 = vst [vmem:[#allocation2 + $0x28] sm:$0xff] 0.0
          %347 = vst [vmem:[#allocation2 + $0x30] sm:$0xff] 0.0
          %348 = vst [vmem:[#allocation2 + $0x38] sm:$0xff] 0.0
          %349 = vst [vmem:[#allocation2 + $0x40] sm:$0xff] 0.0
          %350 = vst [vmem:[#allocation2 + $0x48] sm:$0xff] 0.0
          %351 = vst [vmem:[#allocation2 + $0x50] sm:$0xff] 0.0
          %352 = vst [vmem:[#allocation2 + $0x58] sm:$0xff] 0.0
          %353 = vst [vmem:[#allocation2 + $0x60] sm:$0xff] 0.0
          %354 = vst [vmem:[#allocation2 + $0x68] sm:$0xff] 0.0
          %355 = vst [vmem:[#allocation2 + $0x70] sm:$0xff] 0.0
          %356 = vst [vmem:[#allocation2 + $0x78] sm:$0xff] 0.0
        $region77: #{wavelet2_forward.7} parent=68 // pred_fallthru
          _
        %v357 = vld [vmem:[#allocation2] sm:$0xff]
        %v358 = vld [vmem:[#allocation2 + $0x8] sm:$0xff]
        %v359 = vld [vmem:[#allocation2 + $0x10] sm:$0xff]
        %v360 = vld [vmem:[#allocation2 + $0x18] sm:$0xff]
        %v361 = vld [vmem:[#allocation2 + $0x20] sm:$0xff]
        %v362 = vld [vmem:[#allocation2 + $0x28] sm:$0xff]
        %v363 = vld [vmem:[#allocation2 + $0x30] sm:$0xff]
        %v364 = vld [vmem:[#allocation2 + $0x38] sm:$0xff]
        %v365 = vld [vmem:[#allocation2 + $0x40] sm:$0xff]
        %v366 = vld [vmem:[#allocation2 + $0x48] sm:$0xff]
        %v367 = vld [vmem:[#allocation2 + $0x50] sm:$0xff]
        %v368 = vld [vmem:[#allocation2 + $0x58] sm:$0xff]
        %v369 = vld [vmem:[#allocation2 + $0x60] sm:$0xff]
        %v370 = vld [vmem:[#allocation2 + $0x68] sm:$0xff]
        %v371 = vld [vmem:[#allocation2 + $0x70] sm:$0xff]
        %v372 = vld [vmem:[#allocation2 + $0x78] sm:$0xff]
        %v373 = vld [vmem:[%s287] sm:$0xf]
        %v374 = vld [vmem:[%s287 + $0x4] sm:$0xf]
        %v375 = vld [vmem:[%s287 + $0x8] sm:$0xf]
        %v376 = vld [vmem:[%s287 + $0xc] sm:$0xf]
        %v377 = vld [vmem:[%s287 + $0x10] sm:$0xf]
        %v378 = vld [vmem:[%s287 + $0x14] sm:$0xf]
        %v379 = vld [vmem:[%s287 + $0x18] sm:$0xf]
        %v380 = vld [vmem:[%s287 + $0x1c] sm:$0xf]
        %v381 = vld [vmem:[%s287 + $0x20] sm:$0xf]
        %v382 = vld [vmem:[%s287 + $0x24] sm:$0xf]
        %v383 = vld [vmem:[%s287 + $0x28] sm:$0xf]
        %v384 = vld [vmem:[%s287 + $0x2c] sm:$0xf]
        %v385 = vld [vmem:[%s287 + $0x30] sm:$0xf]
        %v386 = vld [vmem:[%s287 + $0x34] sm:$0xf]
        %v387 = vld [vmem:[%s287 + $0x38] sm:$0xf]
        %v388 = vld [vmem:[%s287 + $0x3c] sm:$0xf]
        %v389 = vld [vmem:[%s323] sm:$0xf]
        %v390 = vld [vmem:[%s323 + $0x4] sm:$0xf]
        %v391 = vld [vmem:[%s323 + $0x8] sm:$0xf]
        %v392 = vld [vmem:[%s323 + $0xc] sm:$0xf]
        %v393 = vld [vmem:[%s323 + $0x10] sm:$0xf]
        %v394 = vld [vmem:[%s323 + $0x14] sm:$0xf]
        %v395 = vld [vmem:[%s323 + $0x18] sm:$0xf]
        %v396 = vld [vmem:[%s323 + $0x1c] sm:$0xf]
        %v397 = vld [vmem:[%s323 + $0x20] sm:$0xf]
        %v398 = vld [vmem:[%s323 + $0x24] sm:$0xf]
        %v399 = vld [vmem:[%s323 + $0x28] sm:$0xf]
        %v400 = vld [vmem:[%s323 + $0x2c] sm:$0xf]
        %v401 = vld [vmem:[%s323 + $0x30] sm:$0xf]
        %v402 = vld [vmem:[%s323 + $0x34] sm:$0xf]
        %v403 = vld [vmem:[%s323 + $0x38] sm:$0xf]
        %v404 = vld [vmem:[%s323 + $0x3c] sm:$0xf]
        %v421 = vunpack.c.l.b16 %v373
        %v422 = vunpack.c.l.b16 %v374
        %v423 = vunpack.c.l.b16 %v375
        %v424 = vunpack.c.l.b16 %v376
        %v425 = vunpack.c.l.b16 %v377
        %v426 = vunpack.c.l.b16 %v378
        %v427 = vunpack.c.l.b16 %v379
        %v428 = vunpack.c.l.b16 %v380
        %v429 = vunpack.c.l.b16 %v381
        %v430 = vunpack.c.l.b16 %v382
        %v431 = vunpack.c.l.b16 %v383
        %v432 = vunpack.c.l.b16 %v384
        %v433 = vunpack.c.l.b16 %v385
        %v434 = vunpack.c.l.b16 %v386
        %v435 = vunpack.c.l.b16 %v387
        %v436 = vunpack.c.l.b16 %v388
        %v437 = vpack.c.b16 %v422, %v421
        %v438 = vpack.c.b16 %v424, %v423
        %v439 = vpack.c.b16 %v426, %v425
        %v440 = vpack.c.b16 %v428, %v427
        %v441 = vpack.c.b16 %v430, %v429
        %v442 = vpack.c.b16 %v432, %v431
        %v443 = vpack.c.b16 %v434, %v433
        %v444 = vpack.c.b16 %v436, %v435
        %v469 = vunpack.c.l.b16 %v389
        %v470 = vunpack.c.l.b16 %v390
        %v471 = vunpack.c.l.b16 %v391
        %v472 = vunpack.c.l.b16 %v392
        %v473 = vunpack.c.l.b16 %v393
        %v474 = vunpack.c.l.b16 %v394
        %v475 = vunpack.c.l.b16 %v395
        %v476 = vunpack.c.l.b16 %v396
        %v477 = vunpack.c.l.b16 %v397
        %v478 = vunpack.c.l.b16 %v398
        %v479 = vunpack.c.l.b16 %v399
        %v480 = vunpack.c.l.b16 %v400
        %v481 = vunpack.c.l.b16 %v401
        %v482 = vunpack.c.l.b16 %v402
        %v483 = vunpack.c.l.b16 %v403
        %v484 = vunpack.c.l.b16 %v404
        %v485 = vpack.c.b16 %v470, %v469
        %v486 = vpack.c.b16 %v472, %v471
        %v487 = vpack.c.b16 %v474, %v473
        %v488 = vpack.c.b16 %v476, %v475
        %v489 = vpack.c.b16 %v478, %v477
        %v490 = vpack.c.b16 %v480, %v479
        %v491 = vpack.c.b16 %v482, %v481
        %v492 = vpack.c.b16 %v484, %v483
        %501 = vmatpush.bf16.msra.mxu0 %v492
        %502 = vmatpush.bf16.msra.mxu0 %v491
        %503 = vmatpush.bf16.msra.mxu0 %v490
        %504 = vmatpush.bf16.msra.mxu0 %v489
        %505 = vmatpush.bf16.msra.mxu0 %v488
        %506 = vmatpush.bf16.msra.mxu0 %v487
        %507 = vmatpush.bf16.msra.mxu0 %v486
        %508 = vmatpush.bf16.msra.mxu0 %v485
        %509 = vmatmul.bf16.gmra.mxu0 %v437
        %v510 = vpop.f32.mrf.mxu0
        %v511 = vadd.f32 0.0, %v510
        %v512 = vpop.f32.mrf.mxu0
        %v513 = vadd.f32 0.0, %v512
        %514 = vmatmul.bf16.gmra.mxu0 %v438
        %v515 = vpop.f32.mrf.mxu0
        %v516 = vadd.f32 0.0, %v515
        %v517 = vpop.f32.mrf.mxu0
        %v518 = vadd.f32 0.0, %v517
        %519 = vmatmul.bf16.gmra.mxu0 %v439
        %v520 = vpop.f32.mrf.mxu0
        %v521 = vadd.f32 0.0, %v520
        %v522 = vpop.f32.mrf.mxu0
        %v523 = vadd.f32 0.0, %v522
        %524 = vmatmul.bf16.gmra.mxu0 %v440
        %v525 = vpop.f32.mrf.mxu0
        %v526 = vadd.f32 0.0, %v525
        %v527 = vpop.f32.mrf.mxu0
        %v528 = vadd.f32 0.0, %v527
        %529 = vmatmul.bf16.gmra.mxu0 %v441
        %v530 = vpop.f32.mrf.mxu0
        %v531 = vadd.f32 0.0, %v530
        %v532 = vpop.f32.mrf.mxu0
        %v533 = vadd.f32 0.0, %v532
        %534 = vmatmul.bf16.gmra.mxu0 %v442
        %v535 = vpop.f32.mrf.mxu0
        %v536 = vadd.f32 0.0, %v535
        %v537 = vpop.f32.mrf.mxu0
        %v538 = vadd.f32 0.0, %v537
        %539 = vmatmul.bf16.gmra.mxu0 %v443
        %v540 = vpop.f32.mrf.mxu0
        %v541 = vadd.f32 0.0, %v540
        %v542 = vpop.f32.mrf.mxu0
        %v543 = vadd.f32 0.0, %v542
        %544 = vmatmul.bf16.gmra.mxu0 %v444
        %v545 = vpop.f32.mrf.mxu0
        %v546 = vadd.f32 0.0, %v545
        %v547 = vpop.f32.mrf.mxu0
        %v548 = vadd.f32 0.0, %v547
        %549 = vdwg.mxu0
        %v550 = vadd.f32 %v357, %v511
        %v551 = vadd.f32 %v358, %v513
        %v552 = vadd.f32 %v359, %v516
        %v553 = vadd.f32 %v360, %v518
        %v554 = vadd.f32 %v361, %v521
        %v555 = vadd.f32 %v362, %v523
        %v556 = vadd.f32 %v363, %v526
        %v557 = vadd.f32 %v364, %v528
        %v558 = vadd.f32 %v365, %v531
        %v559 = vadd.f32 %v366, %v533
        %v560 = vadd.f32 %v367, %v536
        %v561 = vadd.f32 %v368, %v538
        %v562 = vadd.f32 %v369, %v541
        %v563 = vadd.f32 %v370, %v543
        %v564 = vadd.f32 %v371, %v546
        %v565 = vadd.f32 %v372, %v548
        %566 = vst [vmem:[#allocation2] sm:$0xff] %v550
        %567 = vst [vmem:[#allocation2 + $0x8] sm:$0xff] %v551
        %568 = vst [vmem:[#allocation2 + $0x10] sm:$0xff] %v552
        %569 = vst [vmem:[#allocation2 + $0x18] sm:$0xff] %v553
        %570 = vst [vmem:[#allocation2 + $0x20] sm:$0xff] %v554
        %571 = vst [vmem:[#allocation2 + $0x28] sm:$0xff] %v555
        %572 = vst [vmem:[#allocation2 + $0x30] sm:$0xff] %v556
        %573 = vst [vmem:[#allocation2 + $0x38] sm:$0xff] %v557
        %574 = vst [vmem:[#allocation2 + $0x40] sm:$0xff] %v558
        %575 = vst [vmem:[#allocation2 + $0x48] sm:$0xff] %v559
        %576 = vst [vmem:[#allocation2 + $0x50] sm:$0xff] %v560
        %577 = vst [vmem:[#allocation2 + $0x58] sm:$0xff] %v561
        %578 = vst [vmem:[#allocation2 + $0x60] sm:$0xff] %v562
        %579 = vst [vmem:[#allocation2 + $0x68] sm:$0xff] %v563
        %580 = vst [vmem:[#allocation2 + $0x70] sm:$0xff] %v564
        %581 = vst [vmem:[#allocation2 + $0x78] sm:$0xff] %v565
        %p582 = scmp.eq.s32.totalorder %s19, 2
        // Predicated region
        $region78: #{wavelet2_forward.7} parent=68 // pred_check
          %p583 = pneg %p582
        $region79: #{wavelet2_forward.7} parent=68 // pred_check_branch
          %585 = sbr.rel (%p583) target = $region81
        $region80: #{wavelet2_forward.7} parent=68 // pred_region
          %v586 = vld [vmem:[#allocation2] sm:$0xff]
          %v587 = vld [vmem:[#allocation2 + $0x8] sm:$0xff]
          %v588 = vld [vmem:[#allocation2 + $0x10] sm:$0xff]
          %v589 = vld [vmem:[#allocation2 + $0x18] sm:$0xff]
          %v590 = vld [vmem:[#allocation2 + $0x20] sm:$0xff]
          %v591 = vld [vmem:[#allocation2 + $0x28] sm:$0xff]
          %v592 = vld [vmem:[#allocation2 + $0x30] sm:$0xff]
          %v593 = vld [vmem:[#allocation2 + $0x38] sm:$0xff]
          %v594 = vld [vmem:[#allocation2 + $0x40] sm:$0xff]
          %v595 = vld [vmem:[#allocation2 + $0x48] sm:$0xff]
          %v596 = vld [vmem:[#allocation2 + $0x50] sm:$0xff]
          %v597 = vld [vmem:[#allocation2 + $0x58] sm:$0xff]
          %v598 = vld [vmem:[#allocation2 + $0x60] sm:$0xff]
          %v599 = vld [vmem:[#allocation2 + $0x68] sm:$0xff]
          %v600 = vld [vmem:[#allocation2 + $0x70] sm:$0xff]
          %v601 = vld [vmem:[#allocation2 + $0x78] sm:$0xff]
          %v602 = vld [vmem:[%s329] sm:$0xff]
          %v603 = vld [vmem:[%s329 + $0x8] sm:$0xff]
          %v604 = vld [vmem:[%s329 + $0x10] sm:$0xff]
          %v605 = vld [vmem:[%s329 + $0x18] sm:$0xff]
          %v606 = vld [vmem:[%s329 + $0x20] sm:$0xff]
          %v607 = vld [vmem:[%s329 + $0x28] sm:$0xff]
          %v608 = vld [vmem:[%s329 + $0x30] sm:$0xff]
          %v609 = vld [vmem:[%s329 + $0x38] sm:$0xff]
          %v610 = vld [vmem:[%s329 + $0x40] sm:$0xff]
          %v611 = vld [vmem:[%s329 + $0x48] sm:$0xff]
          %v612 = vld [vmem:[%s329 + $0x50] sm:$0xff]
          %v613 = vld [vmem:[%s329 + $0x58] sm:$0xff]
          %v614 = vld [vmem:[%s329 + $0x60] sm:$0xff]
          %v615 = vld [vmem:[%s329 + $0x68] sm:$0xff]
          %v616 = vld [vmem:[%s329 + $0x70] sm:$0xff]
          %v617 = vld [vmem:[%s329 + $0x78] sm:$0xff]
          %619 = vset.pattern.permute.xlu0 0
          %620 = vperm.xlu0 %619, %v602
          %v621 = vpop.permute.xlu0 %620
          %624 = vset.pattern.permute.xlu0 0
          %625 = vperm.xlu0 %624, %v603
          %v626 = vpop.permute.xlu0 %625
          %629 = vset.pattern.permute.xlu0 0
          %630 = vperm.xlu0 %629, %v604
          %v631 = vpop.permute.xlu0 %630
          %634 = vset.pattern.permute.xlu0 0
          %635 = vperm.xlu0 %634, %v605
          %v636 = vpop.permute.xlu0 %635
          %639 = vset.pattern.permute.xlu0 0
          %640 = vperm.xlu0 %639, %v606
          %v641 = vpop.permute.xlu0 %640
          %644 = vset.pattern.permute.xlu0 0
          %645 = vperm.xlu0 %644, %v607
          %v646 = vpop.permute.xlu0 %645
          %649 = vset.pattern.permute.xlu0 0
          %650 = vperm.xlu0 %649, %v608
          %v651 = vpop.permute.xlu0 %650
          %654 = vset.pattern.permute.xlu0 0
          %655 = vperm.xlu0 %654, %v609
          %v656 = vpop.permute.xlu0 %655
          %659 = vset.pattern.permute.xlu0 0
          %660 = vperm.xlu0 %659, %v610
          %v661 = vpop.permute.xlu0 %660
          %664 = vset.pattern.permute.xlu0 0
          %665 = vperm.xlu0 %664, %v611
          %v666 = vpop.permute.xlu0 %665
          %669 = vset.pattern.permute.xlu0 0
          %670 = vperm.xlu0 %669, %v612
          %v671 = vpop.permute.xlu0 %670
          %674 = vset.pattern.permute.xlu0 0
          %675 = vperm.xlu0 %674, %v613
          %v676 = vpop.permute.xlu0 %675
          %679 = vset.pattern.permute.xlu0 0
          %680 = vperm.xlu0 %679, %v614
          %v681 = vpop.permute.xlu0 %680
          %684 = vset.pattern.permute.xlu0 0
          %685 = vperm.xlu0 %684, %v615
          %v686 = vpop.permute.xlu0 %685
          %689 = vset.pattern.permute.xlu0 0
          %690 = vperm.xlu0 %689, %v616
          %v691 = vpop.permute.xlu0 %690
          %694 = vset.pattern.permute.xlu0 0
          %695 = vperm.xlu0 %694, %v617
          %v696 = vpop.permute.xlu0 %695
          %v698 = vmul.f32 %v586, %v621
          %v699 = vmul.f32 %v587, %v626
          %v700 = vmul.f32 %v588, %v631
          %v701 = vmul.f32 %v589, %v636
          %v702 = vmul.f32 %v590, %v641
          %v703 = vmul.f32 %v591, %v646
          %v704 = vmul.f32 %v592, %v651
          %v705 = vmul.f32 %v593, %v656
          %v706 = vmul.f32 %v594, %v661
          %v707 = vmul.f32 %v595, %v666
          %v708 = vmul.f32 %v596, %v671
          %v709 = vmul.f32 %v597, %v676
          %v710 = vmul.f32 %v598, %v681
          %v711 = vmul.f32 %v599, %v686
          %v712 = vmul.f32 %v600, %v691
          %v713 = vmul.f32 %v601, %v696
          %v714 = vpack.c.bf16 %v698, %v698
          %v715 = vpack.c.bf16 %v699, %v699
          %v716 = vpack.c.bf16 %v700, %v700
          %v717 = vpack.c.bf16 %v701, %v701
          %v718 = vpack.c.bf16 %v702, %v702
          %v719 = vpack.c.bf16 %v703, %v703
          %v720 = vpack.c.bf16 %v704, %v704
          %v721 = vpack.c.bf16 %v705, %v705
          %v722 = vpack.c.bf16 %v706, %v706
          %v723 = vpack.c.bf16 %v707, %v707
          %v724 = vpack.c.bf16 %v708, %v708
          %v725 = vpack.c.bf16 %v709, %v709
          %v726 = vpack.c.bf16 %v710, %v710
          %v727 = vpack.c.bf16 %v711, %v711
          %v728 = vpack.c.bf16 %v712, %v712
          %v729 = vpack.c.bf16 %v713, %v713
          %730 = vst [vmem:[%s335] sm:$0xf] %v714
          %731 = vst [vmem:[%s335 + $0x4] sm:$0xf] %v715
          %732 = vst [vmem:[%s335 + $0x8] sm:$0xf] %v716
          %733 = vst [vmem:[%s335 + $0xc] sm:$0xf] %v717
          %734 = vst [vmem:[%s335 + $0x10] sm:$0xf] %v718
          %735 = vst [vmem:[%s335 + $0x14] sm:$0xf] %v719
          %736 = vst [vmem:[%s335 + $0x18] sm:$0xf] %v720
          %737 = vst [vmem:[%s335 + $0x1c] sm:$0xf] %v721
          %738 = vst [vmem:[%s335 + $0x20] sm:$0xf] %v722
          %739 = vst [vmem:[%s335 + $0x24] sm:$0xf] %v723
          %740 = vst [vmem:[%s335 + $0x28] sm:$0xf] %v724
          %741 = vst [vmem:[%s335 + $0x2c] sm:$0xf] %v725
          %742 = vst [vmem:[%s335 + $0x30] sm:$0xf] %v726
          %743 = vst [vmem:[%s335 + $0x34] sm:$0xf] %v727
          %744 = vst [vmem:[%s335 + $0x38] sm:$0xf] %v728
          %745 = vst [vmem:[%s335 + $0x3c] sm:$0xf] %v729
        $region81: #{wavelet2_forward.7} parent=68 // pred_fallthru
          _
        %s746 = smul.u32 16, %s18
        %p747 = scmp.lt.s32.totalorder %s746, 47
        %s748 = scalar_select %p747, %s746, 47
        %s749 = smul.addr %s748, 4
        %s750 = scalar_lea.vmem %s3, %s749
        // Predicated region
        $region82: #{wavelet2_forward.7} parent=68 // pred_check
          %p751 = pneg %p124
        $region83: #{wavelet2_forward.7} parent=68 // pred_check_branch
          %753 = sbr.rel (%p751) target = $region85
        $region84: #{wavelet2_forward.7} parent=68 // pred_region
          %s754 = smul.u32 16, %s18
        $region85: #{wavelet2_forward.7} parent=68 // pred_fallthru
          _
      $region69: #{wavelet2_forward.7} parent=5 // pred_fallthru
        _
      %p755 = scmp.le.s32.totalorder 2, %s9
      // Predicated region
      $region86: #{wavelet2_forward.7} parent=5 // pred_check
        %p756 = pneg %p755
      $region87: #{wavelet2_forward.7} parent=5 // pred_check_branch
        %758 = sbr.rel (%p756) target = $region89
      $region88: #{wavelet2_forward.7} parent=5 // pred_region
        %s759 = ssub.s32 %s9, 2
        // Predicated region
        $region90: #{wavelet2_forward.7} parent=88 // pred_check
          %p760 = pneg %p130
        $region91: #{wavelet2_forward.7} parent=88 // pred_check_branch
          %762 = sbr.rel (%p760) target = $region93
        $region92: #{wavelet2_forward.7} parent=88 // pred_region
          %s763 = smul.u32 16, %s20
          %p764 = scmp.lt.s32.totalorder %s763, 47
          %s765 = scalar_select %p764, %s763, 47
          %s766 = smul.addr %s765, 4
          %s767 = scalar_lea.vmem %s3, %s766
        $region93: #{wavelet2_forward.7} parent=88 // pred_fallthru
          _
      $region89: #{wavelet2_forward.7} parent=5 // pred_fallthru
        _
    $region6: #{wavelet2_forward.7} parent=1 // loop_footer
      %s13 = sadd.s32 1, %s9
    $region7: #{wavelet2_forward.7} parent=1 // loop_footer_branch
      %8 = sbr.rel target = $region3
    $region8: #{wavelet2_forward.7} parent=1 // loop_exit
      _

// kernel: wavelet2_forward.11
$region0: #{wavelet2_forward.11}
  #allocation0 [shape = 'u32[]', space=smem, size = 0x4, offset = 0x4, fixed_abs, tag = 'smem constant byte address 0x4 - core index']
  #allocation1 [shape = 'u32[72,128]{1,0:T(1,128)}', space=vmem, size = 0x9000, scoped, tag = 'internal scratch']
  #allocation2 [shape = 'f32[128,128]{1,0:T(8,128)}', space=vmem, size = 0x10000, scoped, tag = 'scratch operand']
  %s0 = inlined_call_operand.vmem [shape: bf16[384,384], index: 0, kind: input, shape index: {}]
  %s1 = inlined_call_operand.vmem [shape: bf16[384,128], index: 1, kind: input, shape index: {}]
  %s2 = inlined_call_operand.vmem [shape: f32[384,128], index: 2, kind: output, shape index: {}]
  %s3 = sld [smem:[#allocation0]]
  $region90: #{wavelet2_forward.11} parent=0
    _
  %s5 = ssub.s32 1, %s3
  %s6 = scalar_select 0, %s5, %s3
  $region1: #{wavelet2_forward.11} parent=0
    #allocation3 [shape = 'u8[65536]{0}', space=vmem, size = 0x10000, scoped, tag = 'input window, operand 0']
    loop: start=0, step=1, limit=11
    $region2: #{wavelet2_forward.11} parent=1 // loop_pre_header
      _
    $region3: #{wavelet2_forward.11} parent=1 // loop_header
      %s8 = sphi 0, %s12
      %p9 = scmp.ge.s32.totalorder %s8, 11
      %s15 = sphi 0, %s27
      %s16 = sphi 0, %s23
      %s17 = sphi 0, %s15
      %s18 = sphi 0, %s16
      %s19 = sphi 0, %s17
      %s20 = sphi 0, %s18
      %s32 = sphi 0, %s34
      %s35 = sphi 0, %s32
      %s36 = sphi 0, %s35
      %s52 = sphi 0, %s36
      %s58 = sphi 0, %s60
      %s61 = sphi 0, %s58
      %s62 = sphi 0, %s61
      %s78 = sphi 0, %s62
      %s84 = sphi 0, %s86
      %s87 = sphi 0, %s84
      %s88 = sphi 0, %s87
      %s104 = sphi 0, %s88
    $region4: #{wavelet2_forward.11} parent=1 // loop_header_branch
      %11 = sbr.rel (%p9) target = $region8
    $region5: #{wavelet2_forward.11} parent=1 // loop_body
      %s13 = ssub.s32 %s8, 1
      %s14 = ssub.s32 %s8, 2
      %s21 = sadd.s32 1, %s16
      %p22 = scmp.ge.s32.totalorder %s21, 3
      %s23 = scalar_select %p22, 0, %s21
      %s24 = sadd.s32 1, %s15
      %s25 = scalar_select %p22, %s24, %s15
      %p26 = scmp.ge.s32.totalorder %s25, 3
      %s27 = scalar_select %p26, 0, %s25
      %s28 = ssub.s32 %s15, %s27
      %s29 = ssub.s32 %s16, %s23
      %s30 = sor.u32 %s28, %s29
      %p31 = scmp.eq.s32.totalorder %s30, 0
      %s33 = sadd.s32 %s32, 1
      %s34 = scalar_select %p31, %s32, %s33
      %p37 = pneg %p31
      %p38 = scmp.eq.s32.totalorder %s8, 8
      %p39 = por %p37, %p38
      %p40 = scmp.ne.s32.totalorder %s32, %s35
      %p41 = scmp.eq.s32.totalorder %s8, 0
      %p42 = por %p40, %p41
      %p43 = scmp.ne.s32.totalorder %s32, %s35
      %p44 = scmp.eq.s32.totalorder %s13, 8
      %p45 = por %p43, %p44
      %p46 = scmp.ne.s32.totalorder %s35, %s36
      %p47 = scmp.eq.s32.totalorder %s13, 0
      %p48 = por %p46, %p47
      %p49 = scmp.ne.s32.totalorder %s35, %s36
      %p50 = scmp.eq.s32.totalorder %s14, 8
      %p51 = por %p49, %p50
      %p53 = scmp.ne.s32.totalorder %s36, %s52
      %p54 = scmp.eq.s32.totalorder %s14, 0
      %p55 = por %p53, %p54
      %s56 = ssub.s32 %s16, %s23
      %p57 = scmp.eq.s32.totalorder %s56, 0
      %s59 = sadd.s32 %s58, 1
      %s60 = scalar_select %p57, %s58, %s59
      %p63 = pneg %p57
      %p64 = scmp.eq.s32.totalorder %s8, 8
      %p65 = por %p63, %p64
      %p66 = scmp.ne.s32.totalorder %s58, %s61
      %p67 = scmp.eq.s32.totalorder %s8, 0
      %p68 = por %p66, %p67
      %p69 = scmp.ne.s32.totalorder %s58, %s61
      %p70 = scmp.eq.s32.totalorder %s13, 8
      %p71 = por %p69, %p70
      %p72 = scmp.ne.s32.totalorder %s61, %s62
      %p73 = scmp.eq.s32.totalorder %s13, 0
      %p74 = por %p72, %p73
      %p75 = scmp.ne.s32.totalorder %s61, %s62
      %p76 = scmp.eq.s32.totalorder %s14, 8
      %p77 = por %p75, %p76
      %p79 = scmp.ne.s32.totalorder %s62, %s78
      %p80 = scmp.eq.s32.totalorder %s14, 0
      %p81 = por %p79, %p80
      %s82 = ssub.s32 %s15, %s27
      %p83 = scmp.eq.s32.totalorder %s82, 0
      %s85 = sadd.s32 %s84, 1
      %s86 = scalar_select %p83, %s84, %s85
      %p89 = pneg %p83
      %p90 = scmp.eq.s32.totalorder %s8, 8
      %p91 = por %p89, %p90
      %p92 = scmp.ne.s32.totalorder %s84, %s87
      %p93 = scmp.eq.s32.totalorder %s8, 0
      %p94 = por %p92, %p93
      %p95 = scmp.ne.s32.totalorder %s84, %s87
      %p96 = scmp.eq.s32.totalorder %s13, 8
      %p97 = por %p95, %p96
      %p98 = scmp.ne.s32.totalorder %s87, %s88
      %p99 = scmp.eq.s32.totalorder %s13, 0
      %p100 = por %p98, %p99
      %p101 = scmp.ne.s32.totalorder %s87, %s88
      %p102 = scmp.eq.s32.totalorder %s14, 8
      %p103 = por %p101, %p102
      %p105 = scmp.ne.s32.totalorder %s88, %s104
      %p106 = scmp.eq.s32.totalorder %s14, 0
      %p107 = por %p105, %p106
      %p108 = scmp.le.s32.totalorder 1, %s8
      %p109 = scmp.lt.s32.totalorder %s8, 10
      %p110 = pnand %p108, %p109
      %p111 = pneg %p110
      // Predicated region
      $region9: #{wavelet2_forward.11} parent=5 // pred_check
        _
      $region10: #{wavelet2_forward.11} parent=5 // pred_check_branch
        %113 = sbr.rel (%p110) target = $region12
      $region11: #{wavelet2_forward.11} parent=5 // pred_region
        %s114 = ssub.s32 %s8, 1
      $region12: #{wavelet2_forward.11} parent=5 // pred_fallthru
        _
      %p115 = scmp.lt.s32.totalorder %s8, 9
      // Predicated region
      $region13: #{wavelet2_forward.11} parent=5 // pred_check
        %p116 = pneg %p115
      $region14: #{wavelet2_forward.11} parent=5 // pred_check_branch
        %118 = sbr.rel (%p116) target = $region16
      $region15: #{wavelet2_forward.11} parent=5 // pred_region
        // Predicated region
        $region17: #{wavelet2_forward.11} parent=15 // pred_check
          %p119 = pneg %p42
        $region18: #{wavelet2_forward.11} parent=15 // pred_check_branch
          %121 = sbr.rel (%p119) target = $region20
        $region19: #{wavelet2_forward.11} parent=15 // pred_region
          %s122 = sand.u32 %s32, 1
          %s123 = sand.u32 %s32, 1
          %s124 = smul.addr %s123, 64
          %s125 = scalar_lea.vmem [#allocation3], %s124
          %s126 = smul.u32 16, %s15
          %s127 = smul.addr %s126, 3
          %s128 = sadd.s32 %s16, %s127
          %s129 = smul.addr %s128, 4
          %s130 = scalar_lea.vmem %s0, %s129
          // Predicated region
          $region21: #{wavelet2_forward.11} parent=19 // pred_check
            _
          $region22: #{wavelet2_forward.11} parent=19 // pred_check_branch
            %132 = sbr.rel (0) target = $region24
          $region23: #{wavelet2_forward.11} parent=19 // pred_region
            // Predicated region
            $region25: #{wavelet2_forward.11} parent=23 // pred_check
              _
            $region26: #{wavelet2_forward.11} parent=23 // pred_check_branch
              %134 = sbr.rel target = $region28
            $region27: #{wavelet2_forward.11} parent=23 // pred_region
              // Predicated region
              $region40: #{wavelet2_forward.11} parent=27 // pred_check
                _
              $region41: #{wavelet2_forward.11} parent=27 // pred_check_branch
                %180 = sbr.rel (0) target = $region43
              $region42: #{wavelet2_forward.11} parent=27 // pred_region
                loop: start=0, step=1, limit=1
                $region44: #{wavelet2_forward.11} parent=42 // loop_pre_header
                  _
                $region45: #{wavelet2_forward.11} parent=42 // loop_header
                  %s182 = sphi 0, %s186
                  %p183 = scmp.ge.s32.totalorder %s182, 1
                  %s187 = sphi %s130, %s130
                  %s188 = sphi %s125, %s125
                $region46: #{wavelet2_forward.11} parent=42 // loop_header_branch
                  %185 = sbr.rel (%p183) target = $region50
                $region47: #{wavelet2_forward.11} parent=42 // loop_body
                  _
                $region48: #{wavelet2_forward.11} parent=42 // loop_footer
                  %s186 = sadd.s32 1, %s182
                $region49: #{wavelet2_forward.11} parent=42 // loop_footer_branch
                  %181 = sbr.rel target = $region45
                $region50: #{wavelet2_forward.11} parent=42 // loop_exit
                  _
                %s190 = ssub.s32 16, 1
                loop: start=0, step=1, limit=1
                $region51: #{wavelet2_forward.11} parent=42 // loop_pre_header
                  _
                $region52: #{wavelet2_forward.11} parent=42 // loop_header
                  %s192 = sphi 0, %s196
                  %p193 = scmp.ge.s32.totalorder %s192, 1
                  %s197 = sphi %s130, %s130
                  %s198 = sphi %s125, %s125
                $region53: #{wavelet2_forward.11} parent=42 // loop_header_branch
                  %195 = sbr.rel (%p193) target = $region57
                $region54: #{wavelet2_forward.11} parent=42 // loop_body
                  %v199 = vld [vmem:[%s197] sm:%s190]
                  %200 = vst [vmem:[%s198] sm:%s190] %v199
                  %v201 = vld [vmem:[%s197 + $0xc] sm:%s190]
                  %202 = vst [vmem:[%s198 + $0x4] sm:%s190] %v201
                  %v203 = vld [vmem:[%s197 + $0x18] sm:%s190]
                  %204 = vst [vmem:[%s198 + $0x8] sm:%s190] %v203
                  %v205 = vld [vmem:[%s197 + $0x24] sm:%s190]
                  %206 = vst [vmem:[%s198 + $0xc] sm:%s190] %v205
                  %v207 = vld [vmem:[%s197 + $0x30] sm:%s190]
                  %208 = vst [vmem:[%s198 + $0x10] sm:%s190] %v207
                  %v209 = vld [vmem:[%s197 + $0x3c] sm:%s190]
                  %210 = vst [vmem:[%s198 + $0x14] sm:%s190] %v209
                  %v211 = vld [vmem:[%s197 + $0x48] sm:%s190]
                  %212 = vst [vmem:[%s198 + $0x18] sm:%s190] %v211
                  %v213 = vld [vmem:[%s197 + $0x54] sm:%s190]
                  %214 = vst [vmem:[%s198 + $0x1c] sm:%s190] %v213
                  %v215 = vld [vmem:[%s197 + $0x60] sm:%s190]
                  %216 = vst [vmem:[%s198 + $0x20] sm:%s190] %v215
                  %v217 = vld [vmem:[%s197 + $0x6c] sm:%s190]
                  %218 = vst [vmem:[%s198 + $0x24] sm:%s190] %v217
                  %v219 = vld [vmem:[%s197 + $0x78] sm:%s190]
                  %220 = vst [vmem:[%s198 + $0x28] sm:%s190] %v219
                  %v221 = vld [vmem:[%s197 + $0x84] sm:%s190]
                  %222 = vst [vmem:[%s198 + $0x2c] sm:%s190] %v221
                  %v223 = vld [vmem:[%s197 + $0x90] sm:%s190]
                  %224 = vst [vmem:[%s198 + $0x30] sm:%s190] %v223
                  %v225 = vld [vmem:[%s197 + $0x9c] sm:%s190]
                  %226 = vst [vmem:[%s198 + $0x34] sm:%s190] %v225
                  %v227 = vld [vmem:[%s197 + $0xa8] sm:%s190]
                  %228 = vst [vmem:[%s198 + $0x38] sm:%s190] %v227
                  %v229 = vld [vmem:[%s197 + $0xb4] sm:%s190]
                  %230 = vst [vmem:[%s198 + $0x3c] sm:%s190] %v229
                $region55: #{wavelet2_forward.11} parent=42 // loop_footer
                  %s196 = sadd.s32 1, %s192
                $region56: #{wavelet2_forward.11} parent=42 // loop_footer_branch
                  %191 = sbr.rel target = $region52
                $region57: #{wavelet2_forward.11} parent=42 // loop_exit
                  _
              $region43: #{wavelet2_forward.11} parent=27 // pred_fallthru
                _
            $region28: #{wavelet2_forward.11} parent=23 // pred_fallthru
              _
            // Predicated region
            $region29: #{wavelet2_forward.11} parent=23 // pred_check
              _
            $region30: #{wavelet2_forward.11} parent=23 // pred_check_branch
              %136 = sbr.rel (0) target = $region32
            $region31: #{wavelet2_forward.11} parent=23 // pred_region
              %s138 = ssub.s32 16, 1
              loop: start=0, step=1, limit=1
              $region33: #{wavelet2_forward.11} parent=31 // loop_pre_header
                _
              $region34: #{wavelet2_forward.11} parent=31 // loop_header
                %s140 = sphi 0, %s144
                %p141 = scmp.ge.s32.totalorder %s140, 1
                %s145 = sphi %s130, %s130
                %s146 = sphi %s125, %s125
              $region35: #{wavelet2_forward.11} parent=31 // loop_header_branch
                %143 = sbr.rel (%p141) target = $region39
              $region36: #{wavelet2_forward.11} parent=31 // loop_body
                %v147 = vld [vmem:[%s145] sm:%s138]
                %148 = vst [vmem:[%s146] sm:%s138] %v147
                %v149 = vld [vmem:[%s145 + $0xc] sm:%s138]
                %150 = vst [vmem:[%s146 + $0x4] sm:%s138] %v149
                %v151 = vld [vmem:[%s145 + $0x18] sm:%s138]
                %152 = vst [vmem:[%s146 + $0x8] sm:%s138] %v151
                %v153 = vld [vmem:[%s145 + $0x24] sm:%s138]
                %154 = vst [vmem:[%s146 + $0xc] sm:%s138] %v153
                %v155 = vld [vmem:[%s145 + $0x30] sm:%s138]
                %156 = vst [vmem:[%s146 + $0x10] sm:%s138] %v155
                %v157 = vld [vmem:[%s145 + $0x3c] sm:%s138]
                %158 = vst [vmem:[%s146 + $0x14] sm:%s138] %v157
                %v159 = vld [vmem:[%s145 + $0x48] sm:%s138]
                %160 = vst [vmem:[%s146 + $0x18] sm:%s138] %v159
                %v161 = vld [vmem:[%s145 + $0x54] sm:%s138]
                %162 = vst [vmem:[%s146 + $0x1c] sm:%s138] %v161
                %v163 = vld [vmem:[%s145 + $0x60] sm:%s138]
                %164 = vst [vmem:[%s146 + $0x20] sm:%s138] %v163
                %v165 = vld [vmem:[%s145 + $0x6c] sm:%s138]
                %166 = vst [vmem:[%s146 + $0x24] sm:%s138] %v165
                %v167 = vld [vmem:[%s145 + $0x78] sm:%s138]
                %168 = vst [vmem:[%s146 + $0x28] sm:%s138] %v167
                %v169 = vld [vmem:[%s145 + $0x84] sm:%s138]
                %170 = vst [vmem:[%s146 + $0x2c] sm:%s138] %v169
                %v171 = vld [vmem:[%s145 + $0x90] sm:%s138]
                %172 = vst [vmem:[%s146 + $0x30] sm:%s138] %v171
                %v173 = vld [vmem:[%s145 + $0x9c] sm:%s138]
                %174 = vst [vmem:[%s146 + $0x34] sm:%s138] %v173
                %v175 = vld [vmem:[%s145 + $0xa8] sm:%s138]
                %176 = vst [vmem:[%s146 + $0x38] sm:%s138] %v175
                %v177 = vld [vmem:[%s145 + $0xb4] sm:%s138]
                %178 = vst [vmem:[%s146 + $0x3c] sm:%s138] %v177
              $region37: #{wavelet2_forward.11} parent=31 // loop_footer
                %s144 = sadd.s32 1, %s140
              $region38: #{wavelet2_forward.11} parent=31 // loop_footer_branch
                %139 = sbr.rel target = $region34
              $region39: #{wavelet2_forward.11} parent=31 // loop_exit
                _
            $region32: #{wavelet2_forward.11} parent=23 // pred_fallthru
              _
          $region24: #{wavelet2_forward.11} parent=19 // pred_fallthru
            _
          %231 = vnop
        $region20: #{wavelet2_forward.11} parent=15 // pred_fallthru
          _
        // Predicated region
        $region58: #{wavelet2_forward.11} parent=15 // pred_check
          %p232 = pneg %p68
        $region59: #{wavelet2_forward.11} parent=15 // pred_check_branch
          %234 = sbr.rel (%p232) target = $region61
        $region60: #{wavelet2_forward.11} parent=15 // pred_region
          %s235 = smul.u32 16, %s16
          %p236 = scmp.lt.s32.totalorder %s235, 47
          %s237 = scalar_select %p236, %s235, 47
          %s238 = smul.addr %s237, 4
          %s239 = scalar_lea.vmem %s1, %s238
          %s240 = smul.u32 16, %s16
        $region61: #{wavelet2_forward.11} parent=15 // pred_fallthru
          _
      $region16: #{wavelet2_forward.11} parent=5 // pred_fallthru
        _
      %p241 = scmp.le.s32.totalorder 1, %s8
      %p242 = scmp.lt.s32.totalorder %s8, 10
      %p243 = pnand %p241, %p242
      %p244 = pneg %p243
      // Predicated region
      $region62: #{wavelet2_forward.11} parent=5 // pred_check
        _
      $region63: #{wavelet2_forward.11} parent=5 // pred_check_branch
        %246 = sbr.rel (%p243) target = $region65
      $region64: #{wavelet2_forward.11} parent=5 // pred_region
        %s247 = ssub.s32 %s8, 1
        %s248 = sand.u32 %s35, 1
        %s249 = sand.u32 %s35, 1
        %s250 = smul.addr %s249, 64
        %s251 = scalar_lea.vmem [#allocation3], %s250
        // Predicated region
        $region66: #{wavelet2_forward.11} parent=64 // pred_check
          %p252 = pneg %p48
        $region67: #{wavelet2_forward.11} parent=64 // pred_check_branch
          %254 = sbr.rel (%p252) target = $region69
        $region68: #{wavelet2_forward.11} parent=64 // pred_region
          _
        $region69: #{wavelet2_forward.11} parent=64 // pred_fallthru
          _
        %s255 = sand.u32 %s35, 1
        %s256 = sand.u32 %s35, 1
        %s257 = smul.addr %s256, 64
        %s258 = scalar_lea.vmem [#allocation3], %s257
        %p259 = pneg %p48
        %p260 = pneg %p45
        %s261 = smul.u32 16, %s18
        %p262 = scmp.lt.s32.totalorder %s261, 47
        %s263 = scalar_select %p262, %s261, 47
        %s264 = smul.addr %s263, 4
        %s265 = scalar_lea.vmem %s1, %s264
        %p266 = pneg %p74
        %p267 = pneg %p71
        %p268 = pneg %p100
        %p269 = pneg %p97
        %s270 = smul.u32 16, %s17
        %p271 = scmp.lt.s32.totalorder %s270, 47
        %s272 = scalar_select %p271, %s270, 47
        %s273 = smul.addr %s272, 8
        %s274 = scalar_lea.vmem %s2, %s273
        %s275 = smul.u32 16, %s17
        %s276 = smul.u32 16, %s18
        %p277 = scmp.lt.s32.totalorder %s276, 47
        %s278 = scalar_select %p277, %s276, 47
        %s279 = smul.addr %s278, 4
        %s280 = scalar_lea.vmem %s1, %s279
        %s281 = smul.u32 16, %s18
        %s282 = smul.u32 16, %s17
        %p283 = scmp.lt.s32.totalorder %s282, 47
        %s284 = scalar_select %p283, %s282, 47
        %s285 = smul.addr %s284, 8
        %s286 = scalar_lea.vmem %s2, %s285
        %s287 = smul.u32 16, %s17
        %p288 = scmp.eq.s32.totalorder %s18, 0
        // Predicated region
        $region70: #{wavelet2_forward.11} parent=64 // pred_check
          %p289 = pneg %p288
        $region71: #{wavelet2_forward.11} parent=64 // pred_check_branch
          %291 = sbr.rel (%p289) target = $region73
        $region72: #{wavelet2_forward.11} parent=64 // pred_region
          %292 = vst [vmem:[#allocation2] sm:$0xff] 0.0
          %293 = vst [vmem:[#allocation2 + $0x8] sm:$0xff] 0.0
          %294 = vst [vmem:[#allocation2 + $0x10] sm:$0xff] 0.0
          %295 = vst [vmem:[#allocation2 + $0x18] sm:$0xff] 0.0
          %296 = vst [vmem:[#allocation2 + $0x20] sm:$0xff] 0.0
          %297 = vst [vmem:[#allocation2 + $0x28] sm:$0xff] 0.0
          %298 = vst [vmem:[#allocation2 + $0x30] sm:$0xff] 0.0
          %299 = vst [vmem:[#allocation2 + $0x38] sm:$0xff] 0.0
          %300 = vst [vmem:[#allocation2 + $0x40] sm:$0xff] 0.0
          %301 = vst [vmem:[#allocation2 + $0x48] sm:$0xff] 0.0
          %302 = vst [vmem:[#allocation2 + $0x50] sm:$0xff] 0.0
          %303 = vst [vmem:[#allocation2 + $0x58] sm:$0xff] 0.0
          %304 = vst [vmem:[#allocation2 + $0x60] sm:$0xff] 0.0
          %305 = vst [vmem:[#allocation2 + $0x68] sm:$0xff] 0.0
          %306 = vst [vmem:[#allocation2 + $0x70] sm:$0xff] 0.0
          %307 = vst [vmem:[#allocation2 + $0x78] sm:$0xff] 0.0
        $region73: #{wavelet2_forward.11} parent=64 // pred_fallthru
          _
        %v308 = vld [vmem:[#allocation2] sm:$0xff]
        %v309 = vld [vmem:[#allocation2 + $0x8] sm:$0xff]
        %v310 = vld [vmem:[#allocation2 + $0x10] sm:$0xff]
        %v311 = vld [vmem:[#allocation2 + $0x18] sm:$0xff]
        %v312 = vld [vmem:[#allocation2 + $0x20] sm:$0xff]
        %v313 = vld [vmem:[#allocation2 + $0x28] sm:$0xff]
        %v314 = vld [vmem:[#allocation2 + $0x30] sm:$0xff]
        %v315 = vld [vmem:[#allocation2 + $0x38] sm:$0xff]
        %v316 = vld [vmem:[#allocation2 + $0x40] sm:$0xff]
        %v317 = vld [vmem:[#allocation2 + $0x48] sm:$0xff]
        %v318 = vld [vmem:[#allocation2 + $0x50] sm:$0xff]
        %v319 = vld [vmem:[#allocation2 + $0x58] sm:$0xff]
        %v320 = vld [vmem:[#allocation2 + $0x60] sm:$0xff]
        %v321 = vld [vmem:[#allocation2 + $0x68] sm:$0xff]
        %v322 = vld [vmem:[#allocation2 + $0x70] sm:$0xff]
        %v323 = vld [vmem:[#allocation2 + $0x78] sm:$0xff]
        %v324 = vld [vmem:[%s251] sm:$0xf]
        %v325 = vld [vmem:[%s251 + $0x4] sm:$0xf]
        %v326 = vld [vmem:[%s251 + $0x8] sm:$0xf]
        %v327 = vld [vmem:[%s251 + $0xc] sm:$0xf]
        %v328 = vld [vmem:[%s251 + $0x10] sm:$0xf]
        %v329 = vld [vmem:[%s251 + $0x14] sm:$0xf]
        %v330 = vld [vmem:[%s251 + $0x18] sm:$0xf]
        %v331 = vld [vmem:[%s251 + $0x1c] sm:$0xf]
        %v332 = vld [vmem:[%s251 + $0x20] sm:$0xf]
        %v333 = vld [vmem:[%s251 + $0x24] sm:$0xf]
        %v334 = vld [vmem:[%s251 + $0x28] sm:$0xf]
        %v335 = vld [vmem:[%s251 + $0x2c] sm:$0xf]
        %v336 = vld [vmem:[%s251 + $0x30] sm:$0xf]
        %v337 = vld [vmem:[%s251 + $0x34] sm:$0xf]
        %v338 = vld [vmem:[%s251 + $0x38] sm:$0xf]
        %v339 = vld [vmem:[%s251 + $0x3c] sm:$0xf]
        %v340 = vld [vmem:[%s280] sm:$0xf]
        %v341 = vld [vmem:[%s280 + $0x4] sm:$0xf]
        %v342 = vld [vmem:[%s280 + $0x8] sm:$0xf]
        %v343 = vld [vmem:[%s280 + $0xc] sm:$0xf]
        %v344 = vld [vmem:[%s280 + $0x10] sm:$0xf]
        %v345 = vld [vmem:[%s280 + $0x14] sm:$0xf]
        %v346 = vld [vmem:[%s280 + $0x18] sm:$0xf]
        %v347 = vld [vmem:[%s280 + $0x1c] sm:$0xf]
        %v348 = vld [vmem:[%s280 + $0x20] sm:$0xf]
        %v349 = vld [vmem:[%s280 + $0x24] sm:$0xf]
        %v350 = vld [vmem:[%s280 + $0x28] sm:$0xf]
        %v351 = vld [vmem:[%s280 + $0x2c] sm:$0xf]
        %v352 = vld [vmem:[%s280 + $0x30] sm:$0xf]
        %v353 = vld [vmem:[%s280 + $0x34] sm:$0xf]
        %v354 = vld [vmem:[%s280 + $0x38] sm:$0xf]
        %v355 = vld [vmem:[%s280 + $0x3c] sm:$0xf]
        %v372 = vunpack.c.l.b16 %v324
        %v373 = vunpack.c.l.b16 %v325
        %v374 = vunpack.c.l.b16 %v326
        %v375 = vunpack.c.l.b16 %v327
        %v376 = vunpack.c.l.b16 %v328
        %v377 = vunpack.c.l.b16 %v329
        %v378 = vunpack.c.l.b16 %v330
        %v379 = vunpack.c.l.b16 %v331
        %v380 = vunpack.c.l.b16 %v332
        %v381 = vunpack.c.l.b16 %v333
        %v382 = vunpack.c.l.b16 %v334
        %v383 = vunpack.c.l.b16 %v335
        %v384 = vunpack.c.l.b16 %v336
        %v385 = vunpack.c.l.b16 %v337
        %v386 = vunpack.c.l.b16 %v338
        %v387 = vunpack.c.l.b16 %v339
        %v388 = vpack.c.b16 %v373, %v372
        %v389 = vpack.c.b16 %v375, %v374
        %v390 = vpack.c.b16 %v377, %v376
        %v391 = vpack.c.b16 %v379, %v378
        %v392 = vpack.c.b16 %v381, %v380
        %v393 = vpack.c.b16 %v383, %v382
        %v394 = vpack.c.b16 %v385, %v384
        %v395 = vpack.c.b16 %v387, %v386
        %v420 = vunpack.c.l.b16 %v340
        %v421 = vunpack.c.l.b16 %v341
        %v422 = vunpack.c.l.b16 %v342
        %v423 = vunpack.c.l.b16 %v343
        %v424 = vunpack.c.l.b16 %v344
        %v425 = vunpack.c.l.b16 %v345
        %v426 = vunpack.c.l.b16 %v346
        %v427 = vunpack.c.l.b16 %v347
        %v428 = vunpack.c.l.b16 %v348
        %v429 = vunpack.c.l.b16 %v349
        %v430 = vunpack.c.l.b16 %v350
        %v431 = vunpack.c.l.b16 %v351
        %v432 = vunpack.c.l.b16 %v352
        %v433 = vunpack.c.l.b16 %v353
        %v434 = vunpack.c.l.b16 %v354
        %v435 = vunpack.c.l.b16 %v355
        %v436 = vpack.c.b16 %v421, %v420
        %v437 = vpack.c.b16 %v423, %v422
        %v438 = vpack.c.b16 %v425, %v424
        %v439 = vpack.c.b16 %v427, %v426
        %v440 = vpack.c.b16 %v429, %v428
        %v441 = vpack.c.b16 %v431, %v430
        %v442 = vpack.c.b16 %v433, %v432
        %v443 = vpack.c.b16 %v435, %v434
        %452 = vmatpush.bf16.msra.mxu0 %v443
        %453 = vmatpush.bf16.msra.mxu0 %v442
        %454 = vmatpush.bf16.msra.mxu0 %v441
        %455 = vmatpush.bf16.msra.mxu0 %v440
        %456 = vmatpush.bf16.msra.mxu0 %v439
        %457 = vmatpush.bf16.msra.mxu0 %v438
        %458 = vmatpush.bf16.msra.mxu0 %v437
        %459 = vmatpush.bf16.msra.mxu0 %v436
        %460 = vmatmul.bf16.gmra.mxu0 %v388
        %v461 = vpop.f32.mrf.mxu0
        %v462 = vadd.f32 0.0, %v461
        %v463 = vpop.f32.mrf.mxu0
        %v464 = vadd.f32 0.0, %v463
        %465 = vmatmul.bf16.gmra.mxu0 %v389
        %v466 = vpop.f32.mrf.mxu0
        %v467 = vadd.f32 0.0, %v466
        %v468 = vpop.f32.mrf.mxu0
        %v469 = vadd.f32 0.0, %v468
        %470 = vmatmul.bf16.gmra.mxu0 %v390
        %v471 = vpop.f32.mrf.mxu0
        %v472 = vadd.f32 0.0, %v471
        %v473 = vpop.f32.mrf.mxu0
        %v474 = vadd.f32 0.0, %v473
        %475 = vmatmul.bf16.gmra.mxu0 %v391
        %v476 = vpop.f32.mrf.mxu0
        %v477 = vadd.f32 0.0, %v476
        %v478 = vpop.f32.mrf.mxu0
        %v479 = vadd.f32 0.0, %v478
        %480 = vmatmul.bf16.gmra.mxu0 %v392
        %v481 = vpop.f32.mrf.mxu0
        %v482 = vadd.f32 0.0, %v481
        %v483 = vpop.f32.mrf.mxu0
        %v484 = vadd.f32 0.0, %v483
        %485 = vmatmul.bf16.gmra.mxu0 %v393
        %v486 = vpop.f32.mrf.mxu0
        %v487 = vadd.f32 0.0, %v486
        %v488 = vpop.f32.mrf.mxu0
        %v489 = vadd.f32 0.0, %v488
        %490 = vmatmul.bf16.gmra.mxu0 %v394
        %v491 = vpop.f32.mrf.mxu0
        %v492 = vadd.f32 0.0, %v491
        %v493 = vpop.f32.mrf.mxu0
        %v494 = vadd.f32 0.0, %v493
        %495 = vmatmul.bf16.gmra.mxu0 %v395
        %v496 = vpop.f32.mrf.mxu0
        %v497 = vadd.f32 0.0, %v496
        %v498 = vpop.f32.mrf.mxu0
        %v499 = vadd.f32 0.0, %v498
        %500 = vdwg.mxu0
        %v501 = vadd.f32 %v308, %v462
        %v502 = vadd.f32 %v309, %v464
        %v503 = vadd.f32 %v310, %v467
        %v504 = vadd.f32 %v311, %v469
        %v505 = vadd.f32 %v312, %v472
        %v506 = vadd.f32 %v313, %v474
        %v507 = vadd.f32 %v314, %v477
        %v508 = vadd.f32 %v315, %v479
        %v509 = vadd.f32 %v316, %v482
        %v510 = vadd.f32 %v317, %v484
        %v511 = vadd.f32 %v318, %v487
        %v512 = vadd.f32 %v319, %v489
        %v513 = vadd.f32 %v320, %v492
        %v514 = vadd.f32 %v321, %v494
        %v515 = vadd.f32 %v322, %v497
        %v516 = vadd.f32 %v323, %v499
        %517 = vst [vmem:[#allocation2] sm:$0xff] %v501
        %518 = vst [vmem:[#allocation2 + $0x8] sm:$0xff] %v502
        %519 = vst [vmem:[#allocation2 + $0x10] sm:$0xff] %v503
        %520 = vst [vmem:[#allocation2 + $0x18] sm:$0xff] %v504
        %521 = vst [vmem:[#allocation2 + $0x20] sm:$0xff] %v505
        %522 = vst [vmem:[#allocation2 + $0x28] sm:$0xff] %v506
        %523 = vst [vmem:[#allocation2 + $0x30] sm:$0xff] %v507
        %524 = vst [vmem:[#allocation2 + $0x38] sm:$0xff] %v508
        %525 = vst [vmem:[#allocation2 + $0x40] sm:$0xff] %v509
        %526 = vst [vmem:[#allocation2 + $0x48] sm:$0xff] %v510
        %527 = vst [vmem:[#allocation2 + $0x50] sm:$0xff] %v511
        %528 = vst [vmem:[#allocation2 + $0x58] sm:$0xff] %v512
        %529 = vst [vmem:[#allocation2 + $0x60] sm:$0xff] %v513
        %530 = vst [vmem:[#allocation2 + $0x68] sm:$0xff] %v514
        %531 = vst [vmem:[#allocation2 + $0x70] sm:$0xff] %v515
        %532 = vst [vmem:[#allocation2 + $0x78] sm:$0xff] %v516
        %p533 = scmp.eq.s32.totalorder %s18, 2
        // Predicated region
        $region74: #{wavelet2_forward.11} parent=64 // pred_check
          %p534 = pneg %p533
        $region75: #{wavelet2_forward.11} parent=64 // pred_check_branch
          %536 = sbr.rel (%p534) target = $region77
        $region76: #{wavelet2_forward.11} parent=64 // pred_region
          %v537 = vld [vmem:[#allocation2] sm:$0xff]
          %v538 = vld [vmem:[#allocation2 + $0x8] sm:$0xff]
          %v539 = vld [vmem:[#allocation2 + $0x10] sm:$0xff]
          %v540 = vld [vmem:[#allocation2 + $0x18] sm:$0xff]
          %v541 = vld [vmem:[#allocation2 + $0x20] sm:$0xff]
          %v542 = vld [vmem:[#allocation2 + $0x28] sm:$0xff]
          %v543 = vld [vmem:[#allocation2 + $0x30] sm:$0xff]
          %v544 = vld [vmem:[#allocation2 + $0x38] sm:$0xff]
          %v545 = vld [vmem:[#allocation2 + $0x40] sm:$0xff]
          %v546 = vld [vmem:[#allocation2 + $0x48] sm:$0xff]
          %v547 = vld [vmem:[#allocation2 + $0x50] sm:$0xff]
          %v548 = vld [vmem:[#allocation2 + $0x58] sm:$0xff]
          %v549 = vld [vmem:[#allocation2 + $0x60] sm:$0xff]
          %v550 = vld [vmem:[#allocation2 + $0x68] sm:$0xff]
          %v551 = vld [vmem:[#allocation2 + $0x70] sm:$0xff]
          %v552 = vld [vmem:[#allocation2 + $0x78] sm:$0xff]
          %v553 = vmax.f32 %v537, 0.0
          %v554 = vmax.f32 %v538, 0.0
          %v555 = vmax.f32 %v539, 0.0
          %v556 = vmax.f32 %v540, 0.0
          %v557 = vmax.f32 %v541, 0.0
          %v558 = vmax.f32 %v542, 0.0
          %v559 = vmax.f32 %v543, 0.0
          %v560 = vmax.f32 %v544, 0.0
          %v561 = vmax.f32 %v545, 0.0
          %v562 = vmax.f32 %v546, 0.0
          %v563 = vmax.f32 %v547, 0.0
          %v564 = vmax.f32 %v548, 0.0
          %v565 = vmax.f32 %v549, 0.0
          %v566 = vmax.f32 %v550, 0.0
          %v567 = vmax.f32 %v551, 0.0
          %v568 = vmax.f32 %v552, 0.0
          %v569 = vlaneseq
          %v570 = vand.u32 %v569, 127
          %vm571 = vcmp.lt.s32.totalorder %v570, 7
          %v572 = vsel %vm571, %v553, -inf
          %v573 = vsel %vm571, %v554, -inf
          %v574 = vsel %vm571, %v555, -inf
          %v575 = vsel %vm571, %v556, -inf
          %v576 = vsel %vm571, %v557, -inf
          %v577 = vsel %vm571, %v558, -inf
          %v578 = vsel %vm571, %v559, -inf
          %v579 = vsel %vm571, %v560, -inf
          %v580 = vsel %vm571, %v561, -inf
          %v581 = vsel %vm571, %v562, -inf
          %v582 = vsel %vm571, %v563, -inf
          %v583 = vsel %vm571, %v564, -inf
          %v584 = vsel %vm571, %v565, -inf
          %v585 = vsel %vm571, %v566, -inf
          %v586 = vsel %vm571, %v567, -inf
          %v587 = vsel %vm571, %v568, -inf
          %588 = vmax.xlane.f32.xlu0 %v572
          %v589 = vpop.xlane.xlu0 %588
          %590 = vmax.xlane.f32.xlu0 %v573
          %v591 = vpop.xlane.xlu0 %590
          %592 = vmax.xlane.f32.xlu0 %v574
          %v593 = vpop.xlane.xlu0 %592
          %594 = vmax.xlane.f32.xlu0 %v575
          %v595 = vpop.xlane.xlu0 %594
          %596 = vmax.xlane.f32.xlu0 %v576
          %v597 = vpop.xlane.xlu0 %596
          %598 = vmax.xlane.f32.xlu0 %v577
          %v599 = vpop.xlane.xlu0 %598
          %600 = vmax.xlane.f32.xlu0 %v578
          %v601 = vpop.xlane.xlu0 %600
          %602 = vmax.xlane.f32.xlu0 %v579
          %v603 = vpop.xlane.xlu0 %602
          %604 = vmax.xlane.f32.xlu0 %v580
          %v605 = vpop.xlane.xlu0 %604
          %606 = vmax.xlane.f32.xlu0 %v581
          %v607 = vpop.xlane.xlu0 %606
          %608 = vmax.xlane.f32.xlu0 %v582
          %v609 = vpop.xlane.xlu0 %608
          %610 = vmax.xlane.f32.xlu0 %v583
          %v611 = vpop.xlane.xlu0 %610
          %612 = vmax.xlane.f32.xlu0 %v584
          %v613 = vpop.xlane.xlu0 %612
          %614 = vmax.xlane.f32.xlu0 %v585
          %v615 = vpop.xlane.xlu0 %614
          %616 = vmax.xlane.f32.xlu0 %v586
          %v617 = vpop.xlane.xlu0 %616
          %618 = vmax.xlane.f32.xlu0 %v587
          %v619 = vpop.xlane.xlu0 %618
          %v620 = vsub.f32 %v572, %v589
          %v621 = vsub.f32 %v573, %v591
          %v622 = vsub.f32 %v574, %v593
          %v623 = vsub.f32 %v575, %v595
          %v624 = vsub.f32 %v576, %v597
          %v625 = vsub.f32 %v577, %v599
          %v626 = vsub.f32 %v578, %v601
          %v627 = vsub.f32 %v579, %v603
          %v628 = vsub.f32 %v580, %v605
          %v629 = vsub.f32 %v581, %v607
          %v630 = vsub.f32 %v582, %v609
          %v631 = vsub.f32 %v583, %v611
          %v632 = vsub.f32 %v584, %v613
          %v633 = vsub.f32 %v585, %v615
          %v634 = vsub.f32 %v586, %v617
          %v635 = vsub.f32 %v587, %v619
          %v636 = vmul.f32 %v620, 1.442695
          %v637 = vpow.pop %v636
          %v638 = vmul.f32 %v621, 1.442695
          %v639 = vpow.pop %v638
          %v640 = vmul.f32 %v622, 1.442695
          %v641 = vpow.pop %v640
          %v642 = vmul.f32 %v623, 1.442695
          %v643 = vpow.pop %v642
          %v644 = vmul.f32 %v624, 1.442695
          %v645 = vpow.pop %v644
          %v646 = vmul.f32 %v625, 1.442695
          %v647 = vpow.pop %v646
          %v648 = vmul.f32 %v626, 1.442695
          %v649 = vpow.pop %v648
          %v650 = vmul.f32 %v627, 1.442695
          %v651 = vpow.pop %v650
          %v652 = vmul.f32 %v628, 1.442695
          %v653 = vpow.pop %v652
          %v654 = vmul.f32 %v629, 1.442695
          %v655 = vpow.pop %v654
          %v656 = vmul.f32 %v630, 1.442695
          %v657 = vpow.pop %v656
          %v658 = vmul.f32 %v631, 1.442695
          %v659 = vpow.pop %v658
          %v660 = vmul.f32 %v632, 1.442695
          %v661 = vpow.pop %v660
          %v662 = vmul.f32 %v633, 1.442695
          %v663 = vpow.pop %v662
          %v664 = vmul.f32 %v634, 1.442695
          %v665 = vpow.pop %v664
          %v666 = vmul.f32 %v635, 1.442695
          %v667 = vpow.pop %v666
          %668 = vadd.xlane.f32.xlu0 %v637
          %v669 = vpop.xlane.xlu0 %668
          %670 = vadd.xlane.f32.xlu0 %v639
          %v671 = vpop.xlane.xlu0 %670
          %672 = vadd.xlane.f32.xlu0 %v641
          %v673 = vpop.xlane.xlu0 %672
          %674 = vadd.xlane.f32.xlu0 %v643
          %v675 = vpop.xlane.xlu0 %674
          %676 = vadd.xlane.f32.xlu0 %v645
          %v677 = vpop.xlane.xlu0 %676
          %678 = vadd.xlane.f32.xlu0 %v647
          %v679 = vpop.xlane.xlu0 %678
          %680 = vadd.xlane.f32.xlu0 %v649
          %v681 = vpop.xlane.xlu0 %680
          %682 = vadd.xlane.f32.xlu0 %v651
          %v683 = vpop.xlane.xlu0 %682
          %684 = vadd.xlane.f32.xlu0 %v653
          %v685 = vpop.xlane.xlu0 %684
          %686 = vadd.xlane.f32.xlu0 %v655
          %v687 = vpop.xlane.xlu0 %686
          %688 = vadd.xlane.f32.xlu0 %v657
          %v689 = vpop.xlane.xlu0 %688
          %690 = vadd.xlane.f32.xlu0 %v659
          %v691 = vpop.xlane.xlu0 %690
          %692 = vadd.xlane.f32.xlu0 %v661
          %v693 = vpop.xlane.xlu0 %692
          %694 = vadd.xlane.f32.xlu0 %v663
          %v695 = vpop.xlane.xlu0 %694
          %696 = vadd.xlane.f32.xlu0 %v665
          %v697 = vpop.xlane.xlu0 %696
          %698 = vadd.xlane.f32.xlu0 %v667
          %v699 = vpop.xlane.xlu0 %698
          %v700 = vlog2.pop %v669
          %v701 = vmul.f32 %v700, 0.6931472
          %v702 = vlog2.pop %v671
          %v703 = vmul.f32 %v702, 0.6931472
          %v704 = vlog2.pop %v673
          %v705 = vmul.f32 %v704, 0.6931472
          %v706 = vlog2.pop %v675
          %v707 = vmul.f32 %v706, 0.6931472
          %v708 = vlog2.pop %v677
          %v709 = vmul.f32 %v708, 0.6931472
          %v710 = vlog2.pop %v679
          %v711 = vmul.f32 %v710, 0.6931472
          %v712 = vlog2.pop %v681
          %v713 = vmul.f32 %v712, 0.6931472
          %v714 = vlog2.pop %v683
          %v715 = vmul.f32 %v714, 0.6931472
          %v716 = vlog2.pop %v685
          %v717 = vmul.f32 %v716, 0.6931472
          %v718 = vlog2.pop %v687
          %v719 = vmul.f32 %v718, 0.6931472
          %v720 = vlog2.pop %v689
          %v721 = vmul.f32 %v720, 0.6931472
          %v722 = vlog2.pop %v691
          %v723 = vmul.f32 %v722, 0.6931472
          %v724 = vlog2.pop %v693
          %v725 = vmul.f32 %v724, 0.6931472
          %v726 = vlog2.pop %v695
          %v727 = vmul.f32 %v726, 0.6931472
          %v728 = vlog2.pop %v697
          %v729 = vmul.f32 %v728, 0.6931472
          %v730 = vlog2.pop %v699
          %v731 = vmul.f32 %v730, 0.6931472
          %v732 = vsub.f32 %v620, %v701
          %v733 = vsub.f32 %v621, %v703
          %v734 = vsub.f32 %v622, %v705
          %v735 = vsub.f32 %v623, %v707
          %v736 = vsub.f32 %v624, %v709
          %v737 = vsub.f32 %v625, %v711
          %v738 = vsub.f32 %v626, %v713
          %v739 = vsub.f32 %v627, %v715
          %v740 = vsub.f32 %v628, %v717
          %v741 = vsub.f32 %v629, %v719
          %v742 = vsub.f32 %v630, %v721
          %v743 = vsub.f32 %v631, %v723
          %v744 = vsub.f32 %v632, %v725
          %v745 = vsub.f32 %v633, %v727
          %v746 = vsub.f32 %v634, %v729
          %v747 = vsub.f32 %v635, %v731
          %v748 = vsel %vm571, %v732, 0.0
          %v749 = vsel %vm571, %v733, 0.0
          %v750 = vsel %vm571, %v734, 0.0
          %v751 = vsel %vm571, %v735, 0.0
          %v752 = vsel %vm571, %v736, 0.0
          %v753 = vsel %vm571, %v737, 0.0
          %v754 = vsel %vm571, %v738, 0.0
          %v755 = vsel %vm571, %v739, 0.0
          %v756 = vsel %vm571, %v740, 0.0
          %v757 = vsel %vm571, %v741, 0.0
          %v758 = vsel %vm571, %v742, 0.0
          %v759 = vsel %vm571, %v743, 0.0
          %v760 = vsel %vm571, %v744, 0.0
          %v761 = vsel %vm571, %v745, 0.0
          %v762 = vsel %vm571, %v746, 0.0
          %v763 = vsel %vm571, %v747, 0.0
          %764 = vst [vmem:[%s286] sm:$0xff] %v748
          %765 = vst [vmem:[%s286 + $0x8] sm:$0xff] %v749
          %766 = vst [vmem:[%s286 + $0x10] sm:$0xff] %v750
          %767 = vst [vmem:[%s286 + $0x18] sm:$0xff] %v751
          %768 = vst [vmem:[%s286 + $0x20] sm:$0xff] %v752
          %769 = vst [vmem:[%s286 + $0x28] sm:$0xff] %v753
          %770 = vst [vmem:[%s286 + $0x30] sm:$0xff] %v754
          %771 = vst [vmem:[%s286 + $0x38] sm:$0xff] %v755
          %772 = vst [vmem:[%s286 + $0x40] sm:$0xff] %v756
          %773 = vst [vmem:[%s286 + $0x48] sm:$0xff] %v757
          %774 = vst [vmem:[%s286 + $0x50] sm:$0xff] %v758
          %775 = vst [vmem:[%s286 + $0x58] sm:$0xff] %v759
          %776 = vst [vmem:[%s286 + $0x60] sm:$0xff] %v760
          %777 = vst [vmem:[%s286 + $0x68] sm:$0xff] %v761
          %778 = vst [vmem:[%s286 + $0x70] sm:$0xff] %v762
          %779 = vst [vmem:[%s286 + $0x78] sm:$0xff] %v763
        $region77: #{wavelet2_forward.11} parent=64 // pred_fallthru
          _
        %s780 = smul.u32 16, %s17
        %p781 = scmp.lt.s32.totalorder %s780, 47
        %s782 = scalar_select %p781, %s780, 47
        %s783 = smul.addr %s782, 8
        %s784 = scalar_lea.vmem %s2, %s783
        // Predicated region
        $region78: #{wavelet2_forward.11} parent=64 // pred_check
          %p785 = pneg %p97
        $region79: #{wavelet2_forward.11} parent=64 // pred_check_branch
          %787 = sbr.rel (%p785) target = $region81
        $region80: #{wavelet2_forward.11} parent=64 // pred_region
          %s788 = smul.u32 16, %s17
        $region81: #{wavelet2_forward.11} parent=64 // pred_fallthru
          _
      $region65: #{wavelet2_forward.11} parent=5 // pred_fallthru
        _
      %p789 = scmp.le.s32.totalorder 2, %s8
      // Predicated region
      $region82: #{wavelet2_forward.11} parent=5 // pred_check
        %p790 = pneg %p789
      $region83: #{wavelet2_forward.11} parent=5 // pred_check_branch
        %792 = sbr.rel (%p790) target = $region85
      $region84: #{wavelet2_forward.11} parent=5 // pred_region
        %s793 = ssub.s32 %s8, 2
        // Predicated region
        $region86: #{wavelet2_forward.11} parent=84 // pred_check
          %p794 = pneg %p103
        $region87: #{wavelet2_forward.11} parent=84 // pred_check_branch
          %796 = sbr.rel (%p794) target = $region89
        $region88: #{wavelet2_forward.11} parent=84 // pred_region
          %s797 = smul.u32 16, %s19
          %p798 = scmp.lt.s32.totalorder %s797, 47
          %s799 = scalar_select %p798, %s797, 47
          %s800 = smul.addr %s799, 8
          %s801 = scalar_lea.vmem %s2, %s800
        $region89: #{wavelet2_forward.11} parent=84 // pred_fallthru
          _
      $region85: #{wavelet2_forward.11} parent=5 // pred_fallthru
        _
    $region6: #{wavelet2_forward.11} parent=1 // loop_footer
      %s12 = sadd.s32 1, %s8
    $region7: #{wavelet2_forward.11} parent=1 // loop_footer_branch
      %7 = sbr.rel target = $region3
    $region8: #{wavelet2_forward.11} parent=1 // loop_exit
      _

// kernel: wavelet2_forward.10
$region0: #{wavelet2_forward.10}
  #allocation0 [shape = 'u32[]', space=smem, size = 0x4, offset = 0x4, fixed_abs, tag = 'smem constant byte address 0x4 - core index']
  #allocation1 [shape = 'u32[72,128]{1,0:T(1,128)}', space=vmem, size = 0x9000, scoped, tag = 'internal scratch']
  #allocation2 [shape = 'f32[128,128]{1,0:T(8,128)}', space=vmem, size = 0x10000, scoped, tag = 'scratch operand']
  %s0 = inlined_call_operand.vmem [shape: bf16[384,384], index: 0, kind: input, shape index: {}]
  %s1 = inlined_call_operand.vmem [shape: bf16[384,128], index: 1, kind: input, shape index: {}]
  %s2 = inlined_call_operand.vmem [shape: f32[384,1], index: 2, kind: input, shape index: {}]
  %s3 = inlined_call_operand.vmem [shape: bf16[384,128], index: 3, kind: output, shape index: {}]
  %s4 = sld [smem:[#allocation0]]
  $region94: #{wavelet2_forward.10} parent=0
    _
  %s6 = ssub.s32 1, %s4
  %s7 = scalar_select 0, %s6, %s4
  $region1: #{wavelet2_forward.10} parent=0
    #allocation3 [shape = 'u8[65536]{0}', space=vmem, size = 0x10000, scoped, tag = 'input window, operand 0']
    loop: start=0, step=1, limit=11
    $region2: #{wavelet2_forward.10} parent=1 // loop_pre_header
      _
    $region3: #{wavelet2_forward.10} parent=1 // loop_header
      %s9 = sphi 0, %s13
      %p10 = scmp.ge.s32.totalorder %s9, 11
      %s16 = sphi 0, %s28
      %s17 = sphi 0, %s24
      %s18 = sphi 0, %s16
      %s19 = sphi 0, %s17
      %s20 = sphi 0, %s18
      %s21 = sphi 0, %s19
      %s33 = sphi 0, %s35
      %s36 = sphi 0, %s33
      %s37 = sphi 0, %s36
      %s53 = sphi 0, %s37
      %s59 = sphi 0, %s61
      %s62 = sphi 0, %s59
      %s63 = sphi 0, %s62
      %s79 = sphi 0, %s63
      %s85 = sphi 0, %s87
      %s88 = sphi 0, %s85
      %s89 = sphi 0, %s88
      %s105 = sphi 0, %s89
      %s111 = sphi 0, %s113
      %s114 = sphi 0, %s111
      %s115 = sphi 0, %s114
      %s131 = sphi 0, %s115
    $region4: #{wavelet2_forward.10} parent=1 // loop_header_branch
      %12 = sbr.rel (%p10) target = $region8
    $region5: #{wavelet2_forward.10} parent=1 // loop_body
      %s14 = ssub.s32 %s9, 1
      %s15 = ssub.s32 %s9, 2
      %s22 = sadd.s32 1, %s17
      %p23 = scmp.ge.s32.totalorder %s22, 3
      %s24 = scalar_select %p23, 0, %s22
      %s25 = sadd.s32 1, %s16
      %s26 = scalar_select %p23, %s25, %s16
      %p27 = scmp.ge.s32.totalorder %s26, 3
      %s28 = scalar_select %p27, 0, %s26
      %s29 = ssub.s32 %s16, %s28
      %s30 = ssub.s32 %s17, %s24
      %s31 = sor.u32 %s29, %s30
      %p32 = scmp.eq.s32.totalorder %s31, 0
      %s34 = sadd.s32 %s33, 1
      %s35 = scalar_select %p32, %s33, %s34
      %p38 = pneg %p32
      %p39 = scmp.eq.s32.totalorder %s9, 8
      %p40 = por %p38, %p39
      %p41 = scmp.ne.s32.totalorder %s33, %s36
      %p42 = scmp.eq.s32.totalorder %s9, 0
      %p43 = por %p41, %p42
      %p44 = scmp.ne.s32.totalorder %s33, %s36
      %p45 = scmp.eq.s32.totalorder %s14, 8
      %p46 = por %p44, %p45
      %p47 = scmp.ne.s32.totalorder %s36, %s37
      %p48 = scmp.eq.s32.totalorder %s14, 0
      %p49 = por %p47, %p48
      %p50 = scmp.ne.s32.totalorder %s36, %s37
      %p51 = scmp.eq.s32.totalorder %s15, 8
      %p52 = por %p50, %p51
      %p54 = scmp.ne.s32.totalorder %s37, %s53
      %p55 = scmp.eq.s32.totalorder %s15, 0
      %p56 = por %p54, %p55
      %s57 = ssub.s32 %s17, %s24
      %p58 = scmp.eq.s32.totalorder %s57, 0
      %s60 = sadd.s32 %s59, 1
      %s61 = scalar_select %p58, %s59, %s60
      %p64 = pneg %p58
      %p65 = scmp.eq.s32.totalorder %s9, 8
      %p66 = por %p64, %p65
      %p67 = scmp.ne.s32.totalorder %s59, %s62
      %p68 = scmp.eq.s32.totalorder %s9, 0
      %p69 = por %p67, %p68
      %p70 = scmp.ne.s32.totalorder %s59, %s62
      %p71 = scmp.eq.s32.totalorder %s14, 8
      %p72 = por %p70, %p71
      %p73 = scmp.ne.s32.totalorder %s62, %s63
      %p74 = scmp.eq.s32.totalorder %s14, 0
      %p75 = por %p73, %p74
      %p76 = scmp.ne.s32.totalorder %s62, %s63
      %p77 = scmp.eq.s32.totalorder %s15, 8
      %p78 = por %p76, %p77
      %p80 = scmp.ne.s32.totalorder %s63, %s79
      %p81 = scmp.eq.s32.totalorder %s15, 0
      %p82 = por %p80, %p81
      %s83 = ssub.s32 %s16, %s28
      %p84 = scmp.eq.s32.totalorder %s83, 0
      %s86 = sadd.s32 %s85, 1
      %s87 = scalar_select %p84, %s85, %s86
      %p90 = pneg %p84
      %p91 = scmp.eq.s32.totalorder %s9, 8
      %p92 = por %p90, %p91
      %p93 = scmp.ne.s32.totalorder %s85, %s88
      %p94 = scmp.eq.s32.totalorder %s9, 0
      %p95 = por %p93, %p94
      %p96 = scmp.ne.s32.totalorder %s85, %s88
      %p97 = scmp.eq.s32.totalorder %s14, 8
      %p98 = por %p96, %p97
      %p99 = scmp.ne.s32.totalorder %s88, %s89
      %p100 = scmp.eq.s32.totalorder %s14, 0
      %p101 = por %p99, %p100
      %p102 = scmp.ne.s32.totalorder %s88, %s89
      %p103 = scmp.eq.s32.totalorder %s15, 8
      %p104 = por %p102, %p103
      %p106 = scmp.ne.s32.totalorder %s89, %s105
      %p107 = scmp.eq.s32.totalorder %s15, 0
      %p108 = por %p106, %p107
      %s109 = ssub.s32 %s16, %s28
      %p110 = scmp.eq.s32.totalorder %s109, 0
      %s112 = sadd.s32 %s111, 1
      %s113 = scalar_select %p110, %s111, %s112
      %p116 = pneg %p110
      %p117 = scmp.eq.s32.totalorder %s9, 8
      %p118 = por %p116, %p117
      %p119 = scmp.ne.s32.totalorder %s111, %s114
      %p120 = scmp.eq.s32.totalorder %s9, 0
      %p121 = por %p119, %p120
      %p122 = scmp.ne.s32.totalorder %s111, %s114
      %p123 = scmp.eq.s32.totalorder %s14, 8
      %p124 = por %p122, %p123
      %p125 = scmp.ne.s32.totalorder %s114, %s115
      %p126 = scmp.eq.s32.totalorder %s14, 0
      %p127 = por %p125, %p126
      %p128 = scmp.ne.s32.totalorder %s114, %s115
      %p129 = scmp.eq.s32.totalorder %s15, 8
      %p130 = por %p128, %p129
      %p132 = scmp.ne.s32.totalorder %s115, %s131
      %p133 = scmp.eq.s32.totalorder %s15, 0
      %p134 = por %p132, %p133
      %p135 = scmp.le.s32.totalorder 1, %s9
      %p136 = scmp.lt.s32.totalorder %s9, 10
      %p137 = pnand %p135, %p136
      %p138 = pneg %p137
      // Predicated region
      $region9: #{wavelet2_forward.10} parent=5 // pred_check
        _
      $region10: #{wavelet2_forward.10} parent=5 // pred_check_branch
        %140 = sbr.rel (%p137) target = $region12
      $region11: #{wavelet2_forward.10} parent=5 // pred_region
        %s141 = ssub.s32 %s9, 1
      $region12: #{wavelet2_forward.10} parent=5 // pred_fallthru
        _
      %p142 = scmp.lt.s32.totalorder %s9, 9
      // Predicated region
      $region13: #{wavelet2_forward.10} parent=5 // pred_check
        %p143 = pneg %p142
      $region14: #{wavelet2_forward.10} parent=5 // pred_check_branch
        %145 = sbr.rel (%p143) target = $region16
      $region15: #{wavelet2_forward.10} parent=5 // pred_region
        // Predicated region
        $region17: #{wavelet2_forward.10} parent=15 // pred_check
          %p146 = pneg %p43
        $region18: #{wavelet2_forward.10} parent=15 // pred_check_branch
          %148 = sbr.rel (%p146) target = $region20
        $region19: #{wavelet2_forward.10} parent=15 // pred_region
          %s149 = sand.u32 %s33, 1
          %s150 = sand.u32 %s33, 1
          %s151 = smul.addr %s150, 64
          %s152 = scalar_lea.vmem [#allocation3], %s151
          %s153 = smul.u32 16, %s16
          %s154 = smul.addr %s153, 3
          %s155 = sadd.s32 %s17, %s154
          %s156 = smul.addr %s155, 4
          %s157 = scalar_lea.vmem %s0, %s156
          // Predicated region
          $region21: #{wavelet2_forward.10} parent=19 // pred_check
            _
          $region22: #{wavelet2_forward.10} parent=19 // pred_check_branch
            %159 = sbr.rel (0) target = $region24
          $region23: #{wavelet2_forward.10} parent=19 // pred_region
            // Predicated region
            $region25: #{wavelet2_forward.10} parent=23 // pred_check
              _
            $region26: #{wavelet2_forward.10} parent=23 // pred_check_branch
              %161 = sbr.rel target = $region28
            $region27: #{wavelet2_forward.10} parent=23 // pred_region
              // Predicated region
              $region40: #{wavelet2_forward.10} parent=27 // pred_check
                _
              $region41: #{wavelet2_forward.10} parent=27 // pred_check_branch
                %207 = sbr.rel (0) target = $region43
              $region42: #{wavelet2_forward.10} parent=27 // pred_region
                loop: start=0, step=1, limit=1
                $region44: #{wavelet2_forward.10} parent=42 // loop_pre_header
                  _
                $region45: #{wavelet2_forward.10} parent=42 // loop_header
                  %s209 = sphi 0, %s213
                  %p210 = scmp.ge.s32.totalorder %s209, 1
                  %s214 = sphi %s157, %s157
                  %s215 = sphi %s152, %s152
                $region46: #{wavelet2_forward.10} parent=42 // loop_header_branch
                  %212 = sbr.rel (%p210) target = $region50
                $region47: #{wavelet2_forward.10} parent=42 // loop_body
                  _
                $region48: #{wavelet2_forward.10} parent=42 // loop_footer
                  %s213 = sadd.s32 1, %s209
                $region49: #{wavelet2_forward.10} parent=42 // loop_footer_branch
                  %208 = sbr.rel target = $region45
                $region50: #{wavelet2_forward.10} parent=42 // loop_exit
                  _
                %s217 = ssub.s32 16, 1
                loop: start=0, step=1, limit=1
                $region51: #{wavelet2_forward.10} parent=42 // loop_pre_header
                  _
                $region52: #{wavelet2_forward.10} parent=42 // loop_header
                  %s219 = sphi 0, %s223
                  %p220 = scmp.ge.s32.totalorder %s219, 1
                  %s224 = sphi %s157, %s157
                  %s225 = sphi %s152, %s152
                $region53: #{wavelet2_forward.10} parent=42 // loop_header_branch
                  %222 = sbr.rel (%p220) target = $region57
                $region54: #{wavelet2_forward.10} parent=42 // loop_body
                  %v226 = vld [vmem:[%s224] sm:%s217]
                  %227 = vst [vmem:[%s225] sm:%s217] %v226
                  %v228 = vld [vmem:[%s224 + $0xc] sm:%s217]
                  %229 = vst [vmem:[%s225 + $0x4] sm:%s217] %v228
                  %v230 = vld [vmem:[%s224 + $0x18] sm:%s217]
                  %231 = vst [vmem:[%s225 + $0x8] sm:%s217] %v230
                  %v232 = vld [vmem:[%s224 + $0x24] sm:%s217]
                  %233 = vst [vmem:[%s225 + $0xc] sm:%s217] %v232
                  %v234 = vld [vmem:[%s224 + $0x30] sm:%s217]
                  %235 = vst [vmem:[%s225 + $0x10] sm:%s217] %v234
                  %v236 = vld [vmem:[%s224 + $0x3c] sm:%s217]
                  %237 = vst [vmem:[%s225 + $0x14] sm:%s217] %v236
                  %v238 = vld [vmem:[%s224 + $0x48] sm:%s217]
                  %239 = vst [vmem:[%s225 + $0x18] sm:%s217] %v238
                  %v240 = vld [vmem:[%s224 + $0x54] sm:%s217]
                  %241 = vst [vmem:[%s225 + $0x1c] sm:%s217] %v240
                  %v242 = vld [vmem:[%s224 + $0x60] sm:%s217]
                  %243 = vst [vmem:[%s225 + $0x20] sm:%s217] %v242
                  %v244 = vld [vmem:[%s224 + $0x6c] sm:%s217]
                  %245 = vst [vmem:[%s225 + $0x24] sm:%s217] %v244
                  %v246 = vld [vmem:[%s224 + $0x78] sm:%s217]
                  %247 = vst [vmem:[%s225 + $0x28] sm:%s217] %v246
                  %v248 = vld [vmem:[%s224 + $0x84] sm:%s217]
                  %249 = vst [vmem:[%s225 + $0x2c] sm:%s217] %v248
                  %v250 = vld [vmem:[%s224 + $0x90] sm:%s217]
                  %251 = vst [vmem:[%s225 + $0x30] sm:%s217] %v250
                  %v252 = vld [vmem:[%s224 + $0x9c] sm:%s217]
                  %253 = vst [vmem:[%s225 + $0x34] sm:%s217] %v252
                  %v254 = vld [vmem:[%s224 + $0xa8] sm:%s217]
                  %255 = vst [vmem:[%s225 + $0x38] sm:%s217] %v254
                  %v256 = vld [vmem:[%s224 + $0xb4] sm:%s217]
                  %257 = vst [vmem:[%s225 + $0x3c] sm:%s217] %v256
                $region55: #{wavelet2_forward.10} parent=42 // loop_footer
                  %s223 = sadd.s32 1, %s219
                $region56: #{wavelet2_forward.10} parent=42 // loop_footer_branch
                  %218 = sbr.rel target = $region52
                $region57: #{wavelet2_forward.10} parent=42 // loop_exit
                  _
              $region43: #{wavelet2_forward.10} parent=27 // pred_fallthru
                _
            $region28: #{wavelet2_forward.10} parent=23 // pred_fallthru
              _
            // Predicated region
            $region29: #{wavelet2_forward.10} parent=23 // pred_check
              _
            $region30: #{wavelet2_forward.10} parent=23 // pred_check_branch
              %163 = sbr.rel (0) target = $region32
            $region31: #{wavelet2_forward.10} parent=23 // pred_region
              %s165 = ssub.s32 16, 1
              loop: start=0, step=1, limit=1
              $region33: #{wavelet2_forward.10} parent=31 // loop_pre_header
                _
              $region34: #{wavelet2_forward.10} parent=31 // loop_header
                %s167 = sphi 0, %s171
                %p168 = scmp.ge.s32.totalorder %s167, 1
                %s172 = sphi %s157, %s157
                %s173 = sphi %s152, %s152
              $region35: #{wavelet2_forward.10} parent=31 // loop_header_branch
                %170 = sbr.rel (%p168) target = $region39
              $region36: #{wavelet2_forward.10} parent=31 // loop_body
                %v174 = vld [vmem:[%s172] sm:%s165]
                %175 = vst [vmem:[%s173] sm:%s165] %v174
                %v176 = vld [vmem:[%s172 + $0xc] sm:%s165]
                %177 = vst [vmem:[%s173 + $0x4] sm:%s165] %v176
                %v178 = vld [vmem:[%s172 + $0x18] sm:%s165]
                %179 = vst [vmem:[%s173 + $0x8] sm:%s165] %v178
                %v180 = vld [vmem:[%s172 + $0x24] sm:%s165]
                %181 = vst [vmem:[%s173 + $0xc] sm:%s165] %v180
                %v182 = vld [vmem:[%s172 + $0x30] sm:%s165]
                %183 = vst [vmem:[%s173 + $0x10] sm:%s165] %v182
                %v184 = vld [vmem:[%s172 + $0x3c] sm:%s165]
                %185 = vst [vmem:[%s173 + $0x14] sm:%s165] %v184
                %v186 = vld [vmem:[%s172 + $0x48] sm:%s165]
                %187 = vst [vmem:[%s173 + $0x18] sm:%s165] %v186
                %v188 = vld [vmem:[%s172 + $0x54] sm:%s165]
                %189 = vst [vmem:[%s173 + $0x1c] sm:%s165] %v188
                %v190 = vld [vmem:[%s172 + $0x60] sm:%s165]
                %191 = vst [vmem:[%s173 + $0x20] sm:%s165] %v190
                %v192 = vld [vmem:[%s172 + $0x6c] sm:%s165]
                %193 = vst [vmem:[%s173 + $0x24] sm:%s165] %v192
                %v194 = vld [vmem:[%s172 + $0x78] sm:%s165]
                %195 = vst [vmem:[%s173 + $0x28] sm:%s165] %v194
                %v196 = vld [vmem:[%s172 + $0x84] sm:%s165]
                %197 = vst [vmem:[%s173 + $0x2c] sm:%s165] %v196
                %v198 = vld [vmem:[%s172 + $0x90] sm:%s165]
                %199 = vst [vmem:[%s173 + $0x30] sm:%s165] %v198
                %v200 = vld [vmem:[%s172 + $0x9c] sm:%s165]
                %201 = vst [vmem:[%s173 + $0x34] sm:%s165] %v200
                %v202 = vld [vmem:[%s172 + $0xa8] sm:%s165]
                %203 = vst [vmem:[%s173 + $0x38] sm:%s165] %v202
                %v204 = vld [vmem:[%s172 + $0xb4] sm:%s165]
                %205 = vst [vmem:[%s173 + $0x3c] sm:%s165] %v204
              $region37: #{wavelet2_forward.10} parent=31 // loop_footer
                %s171 = sadd.s32 1, %s167
              $region38: #{wavelet2_forward.10} parent=31 // loop_footer_branch
                %166 = sbr.rel target = $region34
              $region39: #{wavelet2_forward.10} parent=31 // loop_exit
                _
            $region32: #{wavelet2_forward.10} parent=23 // pred_fallthru
              _
          $region24: #{wavelet2_forward.10} parent=19 // pred_fallthru
            _
          %258 = vnop
        $region20: #{wavelet2_forward.10} parent=15 // pred_fallthru
          _
        // Predicated region
        $region58: #{wavelet2_forward.10} parent=15 // pred_check
          %p259 = pneg %p69
        $region59: #{wavelet2_forward.10} parent=15 // pred_check_branch
          %261 = sbr.rel (%p259) target = $region61
        $region60: #{wavelet2_forward.10} parent=15 // pred_region
          %s262 = smul.u32 16, %s17
          %p263 = scmp.lt.s32.totalorder %s262, 47
          %s264 = scalar_select %p263, %s262, 47
          %s265 = smul.addr %s264, 4
          %s266 = scalar_lea.vmem %s1, %s265
          %s267 = smul.u32 16, %s17
        $region61: #{wavelet2_forward.10} parent=15 // pred_fallthru
          _
        // Predicated region
        $region62: #{wavelet2_forward.10} parent=15 // pred_check
          %p268 = pneg %p95
        $region63: #{wavelet2_forward.10} parent=15 // pred_check_branch
          %270 = sbr.rel (%p268) target = $region65
        $region64: #{wavelet2_forward.10} parent=15 // pred_region
          %s271 = smul.u32 16, %s16
          %p272 = scmp.lt.s32.totalorder %s271, 47
          %s273 = scalar_select %p272, %s271, 47
          %s274 = smul.addr %s273, 8
          %s275 = scalar_lea.vmem %s2, %s274
          %s276 = smul.u32 16, %s16
        $region65: #{wavelet2_forward.10} parent=15 // pred_fallthru
          _
      $region16: #{wavelet2_forward.10} parent=5 // pred_fallthru
        _
      %p277 = scmp.le.s32.totalorder 1, %s9
      %p278 = scmp.lt.s32.totalorder %s9, 10
      %p279 = pnand %p277, %p278
      %p280 = pneg %p279
      // Predicated region
      $region66: #{wavelet2_forward.10} parent=5 // pred_check
        _
      $region67: #{wavelet2_forward.10} parent=5 // pred_check_branch
        %282 = sbr.rel (%p279) target = $region69
      $region68: #{wavelet2_forward.10} parent=5 // pred_region
        %s283 = ssub.s32 %s9, 1
        %s284 = sand.u32 %s36, 1
        %s285 = sand.u32 %s36, 1
        %s286 = smul.addr %s285, 64
        %s287 = scalar_lea.vmem [#allocation3], %s286
        // Predicated region
        $region70: #{wavelet2_forward.10} parent=68 // pred_check
          %p288 = pneg %p49
        $region71: #{wavelet2_forward.10} parent=68 // pred_check_branch
          %290 = sbr.rel (%p288) target = $region73
        $region72: #{wavelet2_forward.10} parent=68 // pred_region
          _
        $region73: #{wavelet2_forward.10} parent=68 // pred_fallthru
          _
        %s291 = sand.u32 %s36, 1
        %s292 = sand.u32 %s36, 1
        %s293 = smul.addr %s292, 64
        %s294 = scalar_lea.vmem [#allocation3], %s293
        %p295 = pneg %p49
        %p296 = pneg %p46
        %s297 = smul.u32 16, %s19
        %p298 = scmp.lt.s32.totalorder %s297, 47
        %s299 = scalar_select %p298, %s297, 47
        %s300 = smul.addr %s299, 4
        %s301 = scalar_lea.vmem %s1, %s300
        %p302 = pneg %p75
        %p303 = pneg %p72
        %s304 = smul.u32 16, %s18
        %p305 = scmp.lt.s32.totalorder %s304, 47
        %s306 = scalar_select %p305, %s304, 47
        %s307 = smul.addr %s306, 8
        %s308 = scalar_lea.vmem %s2, %s307
        %p309 = pneg %p101
        %p310 = pneg %p98
        %p311 = pneg %p127
        %p312 = pneg %p124
        %s313 = smul.u32 16, %s18
        %p314 = scmp.lt.s32.totalorder %s313, 47
        %s315 = scalar_select %p314, %s313, 47
        %s316 = smul.addr %s315, 4
        %s317 = scalar_lea.vmem %s3, %s316
        %s318 = smul.u32 16, %s18
        %s319 = smul.u32 16, %s19
        %p320 = scmp.lt.s32.totalorder %s319, 47
        %s321 = scalar_select %p320, %s319, 47
        %s322 = smul.addr %s321, 4
        %s323 = scalar_lea.vmem %s1, %s322
        %s324 = smul.u32 16, %s19
        %s325 = smul.u32 16, %s18
        %p326 = scmp.lt.s32.totalorder %s325, 47
        %s327 = scalar_select %p326, %s325, 47
        %s328 = smul.addr %s327, 8
        %s329 = scalar_lea.vmem %s2, %s328
        %s330 = smul.u32 16, %s18
        %s331 = smul.u32 16, %s18
        %p332 = scmp.lt.s32.totalorder %s331, 47
        %s333 = scalar_select %p332, %s331, 47
        %s334 = smul.addr %s333, 4
        %s335 = scalar_lea.vmem %s3, %s334
        %s336 = smul.u32 16, %s18
        %p337 = scmp.eq.s32.totalorder %s19, 0
        // Predicated region
        $region74: #{wavelet2_forward.10} parent=68 // pred_check
          %p338 = pneg %p337
        $region75: #{wavelet2_forward.10} parent=68 // pred_check_branch
          %340 = sbr.rel (%p338) target = $region77
        $region76: #{wavelet2_forward.10} parent=68 // pred_region
          %341 = vst [vmem:[#allocation2] sm:$0xff] 0.0
          %342 = vst [vmem:[#allocation2 + $0x8] sm:$0xff] 0.0
          %343 = vst [vmem:[#allocation2 + $0x10] sm:$0xff] 0.0
          %344 = vst [vmem:[#allocation2 + $0x18] sm:$0xff] 0.0
          %345 = vst [vmem:[#allocation2 + $0x20] sm:$0xff] 0.0
          %346 = vst [vmem:[#allocation2 + $0x28] sm:$0xff] 0.0
          %347 = vst [vmem:[#allocation2 + $0x30] sm:$0xff] 0.0
          %348 = vst [vmem:[#allocation2 + $0x38] sm:$0xff] 0.0
          %349 = vst [vmem:[#allocation2 + $0x40] sm:$0xff] 0.0
          %350 = vst [vmem:[#allocation2 + $0x48] sm:$0xff] 0.0
          %351 = vst [vmem:[#allocation2 + $0x50] sm:$0xff] 0.0
          %352 = vst [vmem:[#allocation2 + $0x58] sm:$0xff] 0.0
          %353 = vst [vmem:[#allocation2 + $0x60] sm:$0xff] 0.0
          %354 = vst [vmem:[#allocation2 + $0x68] sm:$0xff] 0.0
          %355 = vst [vmem:[#allocation2 + $0x70] sm:$0xff] 0.0
          %356 = vst [vmem:[#allocation2 + $0x78] sm:$0xff] 0.0
        $region77: #{wavelet2_forward.10} parent=68 // pred_fallthru
          _
        %v357 = vld [vmem:[#allocation2] sm:$0xff]
        %v358 = vld [vmem:[#allocation2 + $0x8] sm:$0xff]
        %v359 = vld [vmem:[#allocation2 + $0x10] sm:$0xff]
        %v360 = vld [vmem:[#allocation2 + $0x18] sm:$0xff]
        %v361 = vld [vmem:[#allocation2 + $0x20] sm:$0xff]
        %v362 = vld [vmem:[#allocation2 + $0x28] sm:$0xff]
        %v363 = vld [vmem:[#allocation2 + $0x30] sm:$0xff]
        %v364 = vld [vmem:[#allocation2 + $0x38] sm:$0xff]
        %v365 = vld [vmem:[#allocation2 + $0x40] sm:$0xff]
        %v366 = vld [vmem:[#allocation2 + $0x48] sm:$0xff]
        %v367 = vld [vmem:[#allocation2 + $0x50] sm:$0xff]
        %v368 = vld [vmem:[#allocation2 + $0x58] sm:$0xff]
        %v369 = vld [vmem:[#allocation2 + $0x60] sm:$0xff]
        %v370 = vld [vmem:[#allocation2 + $0x68] sm:$0xff]
        %v371 = vld [vmem:[#allocation2 + $0x70] sm:$0xff]
        %v372 = vld [vmem:[#allocation2 + $0x78] sm:$0xff]
        %v373 = vld [vmem:[%s287] sm:$0xf]
        %v374 = vld [vmem:[%s287 + $0x4] sm:$0xf]
        %v375 = vld [vmem:[%s287 + $0x8] sm:$0xf]
        %v376 = vld [vmem:[%s287 + $0xc] sm:$0xf]
        %v377 = vld [vmem:[%s287 + $0x10] sm:$0xf]
        %v378 = vld [vmem:[%s287 + $0x14] sm:$0xf]
        %v379 = vld [vmem:[%s287 + $0x18] sm:$0xf]
        %v380 = vld [vmem:[%s287 + $0x1c] sm:$0xf]
        %v381 = vld [vmem:[%s287 + $0x20] sm:$0xf]
        %v382 = vld [vmem:[%s287 + $0x24] sm:$0xf]
        %v383 = vld [vmem:[%s287 + $0x28] sm:$0xf]
        %v384 = vld [vmem:[%s287 + $0x2c] sm:$0xf]
        %v385 = vld [vmem:[%s287 + $0x30] sm:$0xf]
        %v386 = vld [vmem:[%s287 + $0x34] sm:$0xf]
        %v387 = vld [vmem:[%s287 + $0x38] sm:$0xf]
        %v388 = vld [vmem:[%s287 + $0x3c] sm:$0xf]
        %v389 = vld [vmem:[%s323] sm:$0xf]
        %v390 = vld [vmem:[%s323 + $0x4] sm:$0xf]
        %v391 = vld [vmem:[%s323 + $0x8] sm:$0xf]
        %v392 = vld [vmem:[%s323 + $0xc] sm:$0xf]
        %v393 = vld [vmem:[%s323 + $0x10] sm:$0xf]
        %v394 = vld [vmem:[%s323 + $0x14] sm:$0xf]
        %v395 = vld [vmem:[%s323 + $0x18] sm:$0xf]
        %v396 = vld [vmem:[%s323 + $0x1c] sm:$0xf]
        %v397 = vld [vmem:[%s323 + $0x20] sm:$0xf]
        %v398 = vld [vmem:[%s323 + $0x24] sm:$0xf]
        %v399 = vld [vmem:[%s323 + $0x28] sm:$0xf]
        %v400 = vld [vmem:[%s323 + $0x2c] sm:$0xf]
        %v401 = vld [vmem:[%s323 + $0x30] sm:$0xf]
        %v402 = vld [vmem:[%s323 + $0x34] sm:$0xf]
        %v403 = vld [vmem:[%s323 + $0x38] sm:$0xf]
        %v404 = vld [vmem:[%s323 + $0x3c] sm:$0xf]
        %v421 = vunpack.c.l.b16 %v373
        %v422 = vunpack.c.l.b16 %v374
        %v423 = vunpack.c.l.b16 %v375
        %v424 = vunpack.c.l.b16 %v376
        %v425 = vunpack.c.l.b16 %v377
        %v426 = vunpack.c.l.b16 %v378
        %v427 = vunpack.c.l.b16 %v379
        %v428 = vunpack.c.l.b16 %v380
        %v429 = vunpack.c.l.b16 %v381
        %v430 = vunpack.c.l.b16 %v382
        %v431 = vunpack.c.l.b16 %v383
        %v432 = vunpack.c.l.b16 %v384
        %v433 = vunpack.c.l.b16 %v385
        %v434 = vunpack.c.l.b16 %v386
        %v435 = vunpack.c.l.b16 %v387
        %v436 = vunpack.c.l.b16 %v388
        %v437 = vpack.c.b16 %v422, %v421
        %v438 = vpack.c.b16 %v424, %v423
        %v439 = vpack.c.b16 %v426, %v425
        %v440 = vpack.c.b16 %v428, %v427
        %v441 = vpack.c.b16 %v430, %v429
        %v442 = vpack.c.b16 %v432, %v431
        %v443 = vpack.c.b16 %v434, %v433
        %v444 = vpack.c.b16 %v436, %v435
        %v469 = vunpack.c.l.b16 %v389
        %v470 = vunpack.c.l.b16 %v390
        %v471 = vunpack.c.l.b16 %v391
        %v472 = vunpack.c.l.b16 %v392
        %v473 = vunpack.c.l.b16 %v393
        %v474 = vunpack.c.l.b16 %v394
        %v475 = vunpack.c.l.b16 %v395
        %v476 = vunpack.c.l.b16 %v396
        %v477 = vunpack.c.l.b16 %v397
        %v478 = vunpack.c.l.b16 %v398
        %v479 = vunpack.c.l.b16 %v399
        %v480 = vunpack.c.l.b16 %v400
        %v481 = vunpack.c.l.b16 %v401
        %v482 = vunpack.c.l.b16 %v402
        %v483 = vunpack.c.l.b16 %v403
        %v484 = vunpack.c.l.b16 %v404
        %v485 = vpack.c.b16 %v470, %v469
        %v486 = vpack.c.b16 %v472, %v471
        %v487 = vpack.c.b16 %v474, %v473
        %v488 = vpack.c.b16 %v476, %v475
        %v489 = vpack.c.b16 %v478, %v477
        %v490 = vpack.c.b16 %v480, %v479
        %v491 = vpack.c.b16 %v482, %v481
        %v492 = vpack.c.b16 %v484, %v483
        %501 = vmatpush.bf16.msra.mxu0 %v492
        %502 = vmatpush.bf16.msra.mxu0 %v491
        %503 = vmatpush.bf16.msra.mxu0 %v490
        %504 = vmatpush.bf16.msra.mxu0 %v489
        %505 = vmatpush.bf16.msra.mxu0 %v488
        %506 = vmatpush.bf16.msra.mxu0 %v487
        %507 = vmatpush.bf16.msra.mxu0 %v486
        %508 = vmatpush.bf16.msra.mxu0 %v485
        %509 = vmatmul.bf16.gmra.mxu0 %v437
        %v510 = vpop.f32.mrf.mxu0
        %v511 = vadd.f32 0.0, %v510
        %v512 = vpop.f32.mrf.mxu0
        %v513 = vadd.f32 0.0, %v512
        %514 = vmatmul.bf16.gmra.mxu0 %v438
        %v515 = vpop.f32.mrf.mxu0
        %v516 = vadd.f32 0.0, %v515
        %v517 = vpop.f32.mrf.mxu0
        %v518 = vadd.f32 0.0, %v517
        %519 = vmatmul.bf16.gmra.mxu0 %v439
        %v520 = vpop.f32.mrf.mxu0
        %v521 = vadd.f32 0.0, %v520
        %v522 = vpop.f32.mrf.mxu0
        %v523 = vadd.f32 0.0, %v522
        %524 = vmatmul.bf16.gmra.mxu0 %v440
        %v525 = vpop.f32.mrf.mxu0
        %v526 = vadd.f32 0.0, %v525
        %v527 = vpop.f32.mrf.mxu0
        %v528 = vadd.f32 0.0, %v527
        %529 = vmatmul.bf16.gmra.mxu0 %v441
        %v530 = vpop.f32.mrf.mxu0
        %v531 = vadd.f32 0.0, %v530
        %v532 = vpop.f32.mrf.mxu0
        %v533 = vadd.f32 0.0, %v532
        %534 = vmatmul.bf16.gmra.mxu0 %v442
        %v535 = vpop.f32.mrf.mxu0
        %v536 = vadd.f32 0.0, %v535
        %v537 = vpop.f32.mrf.mxu0
        %v538 = vadd.f32 0.0, %v537
        %539 = vmatmul.bf16.gmra.mxu0 %v443
        %v540 = vpop.f32.mrf.mxu0
        %v541 = vadd.f32 0.0, %v540
        %v542 = vpop.f32.mrf.mxu0
        %v543 = vadd.f32 0.0, %v542
        %544 = vmatmul.bf16.gmra.mxu0 %v444
        %v545 = vpop.f32.mrf.mxu0
        %v546 = vadd.f32 0.0, %v545
        %v547 = vpop.f32.mrf.mxu0
        %v548 = vadd.f32 0.0, %v547
        %549 = vdwg.mxu0
        %v550 = vadd.f32 %v357, %v511
        %v551 = vadd.f32 %v358, %v513
        %v552 = vadd.f32 %v359, %v516
        %v553 = vadd.f32 %v360, %v518
        %v554 = vadd.f32 %v361, %v521
        %v555 = vadd.f32 %v362, %v523
        %v556 = vadd.f32 %v363, %v526
        %v557 = vadd.f32 %v364, %v528
        %v558 = vadd.f32 %v365, %v531
        %v559 = vadd.f32 %v366, %v533
        %v560 = vadd.f32 %v367, %v536
        %v561 = vadd.f32 %v368, %v538
        %v562 = vadd.f32 %v369, %v541
        %v563 = vadd.f32 %v370, %v543
        %v564 = vadd.f32 %v371, %v546
        %v565 = vadd.f32 %v372, %v548
        %566 = vst [vmem:[#allocation2] sm:$0xff] %v550
        %567 = vst [vmem:[#allocation2 + $0x8] sm:$0xff] %v551
        %568 = vst [vmem:[#allocation2 + $0x10] sm:$0xff] %v552
        %569 = vst [vmem:[#allocation2 + $0x18] sm:$0xff] %v553
        %570 = vst [vmem:[#allocation2 + $0x20] sm:$0xff] %v554
        %571 = vst [vmem:[#allocation2 + $0x28] sm:$0xff] %v555
        %572 = vst [vmem:[#allocation2 + $0x30] sm:$0xff] %v556
        %573 = vst [vmem:[#allocation2 + $0x38] sm:$0xff] %v557
        %574 = vst [vmem:[#allocation2 + $0x40] sm:$0xff] %v558
        %575 = vst [vmem:[#allocation2 + $0x48] sm:$0xff] %v559
        %576 = vst [vmem:[#allocation2 + $0x50] sm:$0xff] %v560
        %577 = vst [vmem:[#allocation2 + $0x58] sm:$0xff] %v561
        %578 = vst [vmem:[#allocation2 + $0x60] sm:$0xff] %v562
        %579 = vst [vmem:[#allocation2 + $0x68] sm:$0xff] %v563
        %580 = vst [vmem:[#allocation2 + $0x70] sm:$0xff] %v564
        %581 = vst [vmem:[#allocation2 + $0x78] sm:$0xff] %v565
        %p582 = scmp.eq.s32.totalorder %s19, 2
        // Predicated region
        $region78: #{wavelet2_forward.10} parent=68 // pred_check
          %p583 = pneg %p582
        $region79: #{wavelet2_forward.10} parent=68 // pred_check_branch
          %585 = sbr.rel (%p583) target = $region81
        $region80: #{wavelet2_forward.10} parent=68 // pred_region
          %v586 = vld [vmem:[#allocation2] sm:$0xff]
          %v587 = vld [vmem:[#allocation2 + $0x8] sm:$0xff]
          %v588 = vld [vmem:[#allocation2 + $0x10] sm:$0xff]
          %v589 = vld [vmem:[#allocation2 + $0x18] sm:$0xff]
          %v590 = vld [vmem:[#allocation2 + $0x20] sm:$0xff]
          %v591 = vld [vmem:[#allocation2 + $0x28] sm:$0xff]
          %v592 = vld [vmem:[#allocation2 + $0x30] sm:$0xff]
          %v593 = vld [vmem:[#allocation2 + $0x38] sm:$0xff]
          %v594 = vld [vmem:[#allocation2 + $0x40] sm:$0xff]
          %v595 = vld [vmem:[#allocation2 + $0x48] sm:$0xff]
          %v596 = vld [vmem:[#allocation2 + $0x50] sm:$0xff]
          %v597 = vld [vmem:[#allocation2 + $0x58] sm:$0xff]
          %v598 = vld [vmem:[#allocation2 + $0x60] sm:$0xff]
          %v599 = vld [vmem:[#allocation2 + $0x68] sm:$0xff]
          %v600 = vld [vmem:[#allocation2 + $0x70] sm:$0xff]
          %v601 = vld [vmem:[#allocation2 + $0x78] sm:$0xff]
          %v602 = vld [vmem:[%s329] sm:$0xff]
          %v603 = vld [vmem:[%s329 + $0x8] sm:$0xff]
          %v604 = vld [vmem:[%s329 + $0x10] sm:$0xff]
          %v605 = vld [vmem:[%s329 + $0x18] sm:$0xff]
          %v606 = vld [vmem:[%s329 + $0x20] sm:$0xff]
          %v607 = vld [vmem:[%s329 + $0x28] sm:$0xff]
          %v608 = vld [vmem:[%s329 + $0x30] sm:$0xff]
          %v609 = vld [vmem:[%s329 + $0x38] sm:$0xff]
          %v610 = vld [vmem:[%s329 + $0x40] sm:$0xff]
          %v611 = vld [vmem:[%s329 + $0x48] sm:$0xff]
          %v612 = vld [vmem:[%s329 + $0x50] sm:$0xff]
          %v613 = vld [vmem:[%s329 + $0x58] sm:$0xff]
          %v614 = vld [vmem:[%s329 + $0x60] sm:$0xff]
          %v615 = vld [vmem:[%s329 + $0x68] sm:$0xff]
          %v616 = vld [vmem:[%s329 + $0x70] sm:$0xff]
          %v617 = vld [vmem:[%s329 + $0x78] sm:$0xff]
          %619 = vset.pattern.permute.xlu0 0
          %620 = vperm.xlu0 %619, %v602
          %v621 = vpop.permute.xlu0 %620
          %624 = vset.pattern.permute.xlu0 0
          %625 = vperm.xlu0 %624, %v603
          %v626 = vpop.permute.xlu0 %625
          %629 = vset.pattern.permute.xlu0 0
          %630 = vperm.xlu0 %629, %v604
          %v631 = vpop.permute.xlu0 %630
          %634 = vset.pattern.permute.xlu0 0
          %635 = vperm.xlu0 %634, %v605
          %v636 = vpop.permute.xlu0 %635
          %639 = vset.pattern.permute.xlu0 0
          %640 = vperm.xlu0 %639, %v606
          %v641 = vpop.permute.xlu0 %640
          %644 = vset.pattern.permute.xlu0 0
          %645 = vperm.xlu0 %644, %v607
          %v646 = vpop.permute.xlu0 %645
          %649 = vset.pattern.permute.xlu0 0
          %650 = vperm.xlu0 %649, %v608
          %v651 = vpop.permute.xlu0 %650
          %654 = vset.pattern.permute.xlu0 0
          %655 = vperm.xlu0 %654, %v609
          %v656 = vpop.permute.xlu0 %655
          %659 = vset.pattern.permute.xlu0 0
          %660 = vperm.xlu0 %659, %v610
          %v661 = vpop.permute.xlu0 %660
          %664 = vset.pattern.permute.xlu0 0
          %665 = vperm.xlu0 %664, %v611
          %v666 = vpop.permute.xlu0 %665
          %669 = vset.pattern.permute.xlu0 0
          %670 = vperm.xlu0 %669, %v612
          %v671 = vpop.permute.xlu0 %670
          %674 = vset.pattern.permute.xlu0 0
          %675 = vperm.xlu0 %674, %v613
          %v676 = vpop.permute.xlu0 %675
          %679 = vset.pattern.permute.xlu0 0
          %680 = vperm.xlu0 %679, %v614
          %v681 = vpop.permute.xlu0 %680
          %684 = vset.pattern.permute.xlu0 0
          %685 = vperm.xlu0 %684, %v615
          %v686 = vpop.permute.xlu0 %685
          %689 = vset.pattern.permute.xlu0 0
          %690 = vperm.xlu0 %689, %v616
          %v691 = vpop.permute.xlu0 %690
          %694 = vset.pattern.permute.xlu0 0
          %695 = vperm.xlu0 %694, %v617
          %v696 = vpop.permute.xlu0 %695
          %v698 = vmul.f32 %v586, %v621
          %v699 = vmul.f32 %v587, %v626
          %v700 = vmul.f32 %v588, %v631
          %v701 = vmul.f32 %v589, %v636
          %v702 = vmul.f32 %v590, %v641
          %v703 = vmul.f32 %v591, %v646
          %v704 = vmul.f32 %v592, %v651
          %v705 = vmul.f32 %v593, %v656
          %v706 = vmul.f32 %v594, %v661
          %v707 = vmul.f32 %v595, %v666
          %v708 = vmul.f32 %v596, %v671
          %v709 = vmul.f32 %v597, %v676
          %v710 = vmul.f32 %v598, %v681
          %v711 = vmul.f32 %v599, %v686
          %v712 = vmul.f32 %v600, %v691
          %v713 = vmul.f32 %v601, %v696
          %v714 = vpack.c.bf16 %v698, %v698
          %v715 = vpack.c.bf16 %v699, %v699
          %v716 = vpack.c.bf16 %v700, %v700
          %v717 = vpack.c.bf16 %v701, %v701
          %v718 = vpack.c.bf16 %v702, %v702
          %v719 = vpack.c.bf16 %v703, %v703
          %v720 = vpack.c.bf16 %v704, %v704
          %v721 = vpack.c.bf16 %v705, %v705
          %v722 = vpack.c.bf16 %v706, %v706
          %v723 = vpack.c.bf16 %v707, %v707
          %v724 = vpack.c.bf16 %v708, %v708
          %v725 = vpack.c.bf16 %v709, %v709
          %v726 = vpack.c.bf16 %v710, %v710
          %v727 = vpack.c.bf16 %v711, %v711
          %v728 = vpack.c.bf16 %v712, %v712
          %v729 = vpack.c.bf16 %v713, %v713
          %730 = vst [vmem:[%s335] sm:$0xf] %v714
          %731 = vst [vmem:[%s335 + $0x4] sm:$0xf] %v715
          %732 = vst [vmem:[%s335 + $0x8] sm:$0xf] %v716
          %733 = vst [vmem:[%s335 + $0xc] sm:$0xf] %v717
          %734 = vst [vmem:[%s335 + $0x10] sm:$0xf] %v718
          %735 = vst [vmem:[%s335 + $0x14] sm:$0xf] %v719
          %736 = vst [vmem:[%s335 + $0x18] sm:$0xf] %v720
          %737 = vst [vmem:[%s335 + $0x1c] sm:$0xf] %v721
          %738 = vst [vmem:[%s335 + $0x20] sm:$0xf] %v722
          %739 = vst [vmem:[%s335 + $0x24] sm:$0xf] %v723
          %740 = vst [vmem:[%s335 + $0x28] sm:$0xf] %v724
          %741 = vst [vmem:[%s335 + $0x2c] sm:$0xf] %v725
          %742 = vst [vmem:[%s335 + $0x30] sm:$0xf] %v726
          %743 = vst [vmem:[%s335 + $0x34] sm:$0xf] %v727
          %744 = vst [vmem:[%s335 + $0x38] sm:$0xf] %v728
          %745 = vst [vmem:[%s335 + $0x3c] sm:$0xf] %v729
        $region81: #{wavelet2_forward.10} parent=68 // pred_fallthru
          _
        %s746 = smul.u32 16, %s18
        %p747 = scmp.lt.s32.totalorder %s746, 47
        %s748 = scalar_select %p747, %s746, 47
        %s749 = smul.addr %s748, 4
        %s750 = scalar_lea.vmem %s3, %s749
        // Predicated region
        $region82: #{wavelet2_forward.10} parent=68 // pred_check
          %p751 = pneg %p124
        $region83: #{wavelet2_forward.10} parent=68 // pred_check_branch
          %753 = sbr.rel (%p751) target = $region85
        $region84: #{wavelet2_forward.10} parent=68 // pred_region
          %s754 = smul.u32 16, %s18
        $region85: #{wavelet2_forward.10} parent=68 // pred_fallthru
          _
      $region69: #{wavelet2_forward.10} parent=5 // pred_fallthru
        _
      %p755 = scmp.le.s32.totalorder 2, %s9
      // Predicated region
      $region86: #{wavelet2_forward.10} parent=5 // pred_check
        %p756 = pneg %p755
      $region87: #{wavelet2_forward.10} parent=5 // pred_check_branch
        %758 = sbr.rel (%p756) target = $region89
      $region88: #{wavelet2_forward.10} parent=5 // pred_region
        %s759 = ssub.s32 %s9, 2
        // Predicated region
        $region90: #{wavelet2_forward.10} parent=88 // pred_check
          %p760 = pneg %p130
        $region91: #{wavelet2_forward.10} parent=88 // pred_check_branch
          %762 = sbr.rel (%p760) target = $region93
        $region92: #{wavelet2_forward.10} parent=88 // pred_region
          %s763 = smul.u32 16, %s20
          %p764 = scmp.lt.s32.totalorder %s763, 47
          %s765 = scalar_select %p764, %s763, 47
          %s766 = smul.addr %s765, 4
          %s767 = scalar_lea.vmem %s3, %s766
        $region93: #{wavelet2_forward.10} parent=88 // pred_fallthru
          _
      $region89: #{wavelet2_forward.10} parent=5 // pred_fallthru
        _
    $region6: #{wavelet2_forward.10} parent=1 // loop_footer
      %s13 = sadd.s32 1, %s9
    $region7: #{wavelet2_forward.10} parent=1 // loop_footer_branch
      %8 = sbr.rel target = $region3
    $region8: #{wavelet2_forward.10} parent=1 // loop_exit
      _

</llo_original>
